<compile_context>
chip_gen: v5e
topology: v5e:2x2
jax: 0.10.0
libtpu: 0.0.40
codegen_flags: <defaults>
</compile_context>

<pallas_src>
import functools

import jax
import jax.numpy as jnp
from jax.experimental import pallas as pl
from jax.experimental.pallas import tpu as pltpu

MXU_DTYPE = jnp.bfloat16   # set to None for exact-f32 (tight tolerance) mode
RAN_UNROLL = 8             # partial unroll of the in-chunk recurrence loop


def _round_up(x, m):
    return ((x + m - 1) // m) * m


def _pick_chunk(s):
    """Time-chunk size; S is padded up to a multiple of it (no chunk=1 cliff)."""
    if s <= 32:
        return s
    for c in (64, 48, 32, 24, 16):
        if s % c == 0:
            return c
    return 32


def _vmem_limit(block_bytes):
    try:
        cap = int(pltpu.get_tpu_info().vmem_capacity_bytes) * 3 // 4
    except Exception:  # no hw query available
        cap = 48 << 20
    cap = max(cap, 32 << 20)
    return int(min(max(2 * block_bytes + (1 << 20), 32 << 20), cap))


# ----------------------------------------------------------------------------
# Generic tiled linear (y = x @ w + b), f32 accumulation directly into the
# resident output block (no accumulator scratch).  Used for the h2o projection.
# ----------------------------------------------------------------------------
def _linear_kernel(x_ref, w_ref, b_ref, o_ref):
    k = pl.program_id(2)

    @pl.when(k == 0)
    def _():
        o_ref[...] = jnp.broadcast_to(b_ref[...], o_ref.shape)

    x = x_ref[...]
    if x.dtype != w_ref.dtype:
        x = x.astype(w_ref.dtype)
    o_ref[...] += jnp.dot(x, w_ref[...], preferred_element_type=jnp.float32)


def tiled_linear(x2d, w, b, *, tm=256, tn=512, tk=512):
    """x2d: (M, K); w: (K, N); b: (N,).  Returns (M, N) float32."""
    M, K = x2d.shape
    Kw, N = w.shape
    assert K == Kw and b.shape == (N,)

    def _dims(dim, target):
        if dim <= target:          # full-extent block (always legal)
            return dim, dim
        return _round_up(dim, target), target

    Mp, bm = _dims(M, tm)
    Np, bn = _dims(N, tn)
    Kp, bk = _dims(K, tk)

    if (Mp, Kp) != (M, K):
        x2d = jnp.pad(x2d, ((0, Mp - M), (0, Kp - K)))
    if (Kp, Np) != (K, N):
        w = jnp.pad(w, ((0, Kp - K), (0, Np - N)))
    b2 = (b if Np == N else jnp.pad(b, (0, Np - N)))
    b2 = b2.reshape(1, Np).astype(jnp.float32)

    block_bytes = (2 * (bm * bk * x2d.dtype.itemsize + bk * bn * w.dtype.itemsize)
                   + 2 * bn * 4
                   + 2 * bm * bn * 4)

    grid = (Mp // bm, Np // bn, Kp // bk)
    out = pl.pallas_call(
        _linear_kernel,
        out_shape=jax.ShapeDtypeStruct((Mp, Np), jnp.float32),
        grid_spec=pltpu.PrefetchScalarGridSpec(
            num_scalar_prefetch=0,
            grid=grid,
            in_specs=[
                pl.BlockSpec((bm, bk), lambda i, j, k: (i, k)),
                pl.BlockSpec((bk, bn), lambda i, j, k: (k, j)),
                pl.BlockSpec((1, bn), lambda i, j, k: (0, j)),
            ],
            out_specs=pl.BlockSpec((bm, bn), lambda i, j, k: (i, j)),
        ),
        compiler_params=pltpu.CompilerParams(
            dimension_semantics=("parallel", "parallel", "arbitrary"),
            vmem_limit_bytes=_vmem_limit(block_bytes)),
    )(x2d, w, b2)

    if (Mp, Np) != (M, N):
        out = out[:M, :N]
    return out


# ----------------------------------------------------------------------------
# Recurrent RAN layer kernel.
#   grid = (batch_blocks [parallel], time_chunks [arbitrary])
# Chunk prologue: one wide MXU matmul computes the fused x-projection for the
# whole chunk (with x- and h- biases folded) and stages the 3 gate inputs in
# VMEM scratch.  The serial loop then needs exactly one small MXU matmul
# (h @ [Whi|Whf]) plus VPU/EUP gate math per timestep.
# ----------------------------------------------------------------------------
def _make_ran_kernel(seq_len, s_pad, unroll):
    needs_mask = (s_pad != seq_len)

    def kernel(x_ref, h0_ref, l0_ref, wx_ref, bx_ref, wh_ref,
               out_ref, hN_ref, lN_ref, state_sc, xc_sc, xi_sc, xf_sc):
        c = pl.program_id(1)

        @pl.when(c == 0)
        def _():
            state_sc[0] = h0_ref[...]
            state_sc[1] = l0_ref[...]

        t_chunk, bb, E = x_ref.shape
        H = wh_ref.shape[0]
        wh = wh_ref[...]                                   # (H, 2H), resident
        wx = wx_ref[...]                                   # (E, 3H), resident

        # ---- fused x-projection for the whole chunk: one MXU matmul ----
        x2 = x_ref[...].reshape(t_chunk * bb, E)
        if x2.dtype != wx.dtype:
            x2 = x2.astype(wx.dtype)
        xp = jnp.dot(x2, wx, preferred_element_type=jnp.float32) + bx_ref[...]
        # Split gates once per chunk; per-step access below is major-axis only.
        xc_sc[...] = xp[:, :H]
        xi_sc[...] = xp[:, H:2 * H]
        xf_sc[...] = xp[:, 2 * H:]

        def step(i, carry):
            h, l = carry
            off = pl.multiple_of(i * bb, bb)
            c_tilde = xc_sc[pl.ds(off, bb), :]
            x_i = xi_sc[pl.ds(off, bb), :]
            x_f = xf_sc[pl.ds(off, bb), :]
            gh = jnp.dot(h.astype(wh.dtype), wh,
                         preferred_element_type=jnp.float32)     # (bb, 2H)
            input_gate = jax.nn.sigmoid(gh[:, :H] + x_i)
            forget_gate = jax.nn.sigmoid(gh[:, H:] + x_f)
            l_new = input_gate * c_tilde + forget_gate * l
            h_new = jnp.tanh(l_new)
            if needs_mask:                      # only traced if S was padded
                valid = (c * t_chunk + i) < seq_len
                h_new = jnp.where(valid, h_new, h)
                l_new = jnp.where(valid, l_new, l)
            out_ref[i] = h_new.astype(out_ref.dtype)
            return h_new, l_new

        h_fin, l_fin = jax.lax.fori_loop(
            0, t_chunk, step, (state_sc[0], state_sc[1]),
            unroll=min(unroll, t_chunk))

        state_sc[0] = h_fin
        state_sc[1] = l_fin

        @pl.when(c == pl.num_programs(1) - 1)
        def _():
            hN_ref[...] = h_fin
            lN_ref[...] = l_fin

    return kernel


def ran_layer(x, h0, l0, wx_cat, bx_cat, wh_cat, *, t_chunk, seq_len,
              n_bblocks, out_dtype):
    """x: (S_pad, B_pad, E); h0/l0: (B_pad, H); wx_cat: (E,3H); wh_cat: (H,2H)."""
    S_pad, B_pad, E = x.shape
    H = h0.shape[-1]
    assert S_pad % t_chunk == 0 and B_pad % n_bblocks == 0
    bb = B_pad // n_bblocks
    n_chunks = S_pad // t_chunk
    bx2 = bx_cat.reshape(1, 3 * H).astype(jnp.float32)

    itm_x = x.dtype.itemsize
    itm_w = wx_cat.dtype.itemsize
    itm_o = jnp.dtype(out_dtype).itemsize
    block_bytes = (2 * t_chunk * bb * E * itm_x                 # x chunk
                   + 2 * 2 * bb * H * 4                         # h0, l0
                   + 2 * (E * 3 * H + H * 2 * H) * itm_w        # wx, wh
                   + 2 * 3 * H * 4                              # bias
                   + 2 * t_chunk * bb * H * itm_o               # hiddens block
                   + 2 * 2 * bb * H * 4                         # hN, lN
                   + 2 * bb * H * 4                             # state scratch
                   + 3 * t_chunk * bb * H * 4)                  # gate scratch

    kernel = _make_ran_kernel(seq_len=seq_len, s_pad=S_pad, unroll=RAN_UNROLL)

    grid_spec = pltpu.PrefetchScalarGridSpec(
        num_scalar_prefetch=0,
        grid=(n_bblocks, n_chunks),
        in_specs=[
            pl.BlockSpec((t_chunk, bb, E), lambda b, c: (c, b, 0)),   # x chunk
            pl.BlockSpec((bb, H), lambda b, c: (b, 0)),               # h0
            pl.BlockSpec((bb, H), lambda b, c: (b, 0)),               # l0
            pl.BlockSpec((E, 3 * H), lambda b, c: (0, 0)),            # wx_cat
            pl.BlockSpec((1, 3 * H), lambda b, c: (0, 0)),            # bx_cat
            pl.BlockSpec((H, 2 * H), lambda b, c: (0, 0)),            # wh_cat
        ],
        out_specs=[
            pl.BlockSpec((t_chunk, bb, H), lambda b, c: (c, b, 0)),   # hiddens
            pl.BlockSpec((bb, H), lambda b, c: (b, 0)),               # final h
            pl.BlockSpec((bb, H), lambda b, c: (b, 0)),               # final l
        ],
        scratch_shapes=[
            pltpu.VMEM((2, bb, H), jnp.float32),                      # h/l state
            pltpu.VMEM((t_chunk * bb, H), jnp.float32),               # c_tilde
            pltpu.VMEM((t_chunk * bb, H), jnp.float32),               # x->i gate
            pltpu.VMEM((t_chunk * bb, H), jnp.float32),               # x->f gate
        ],
    )
    out_shape = (jax.ShapeDtypeStruct((S_pad, B_pad, H), out_dtype),
                 jax.ShapeDtypeStruct((B_pad, H), jnp.float32),
                 jax.ShapeDtypeStruct((B_pad, H), jnp.float32))
    return pl.pallas_call(
        kernel,
        out_shape=out_shape,
        grid_spec=grid_spec,
        compiler_params=pltpu.CompilerParams(
            dimension_semantics=("parallel", "arbitrary"),
            vmem_limit_bytes=_vmem_limit(block_bytes)),
    )(x, h0, l0, wx_cat, bx2, wh_cat)


# ----------------------------------------------------------------------------
# Parameter init (mirrors the module's __init__/init_weights) + one-time fusion
# ----------------------------------------------------------------------------
def xavier_uniform(key, shape):
    fan_out, fan_in = shape
    limit = (6.0 / (fan_in + fan_out)) ** 0.5
    return jax.random.uniform(key, shape, jnp.float32, -limit, limit)


def init_params(key, vocab, emb, hid, nlayers):
    keys = jax.random.split(key, 2 + 5 * nlayers)
    emb_w = xavier_uniform(keys[0], (vocab, emb))
    h2o_w = xavier_uniform(keys[1], (vocab, hid))
    h2o_b = jnp.zeros((vocab,), jnp.float32)
    layers = []
    for layer in range(nlayers):
        k = keys[2 + 5 * layer: 2 + 5 * (layer + 1)]
        w_x2c = xavier_uniform(k[0], (hid, emb))
        w_h2i = xavier_uniform(k[1], (hid, hid))
        w_x2i = xavier_uniform(k[2], (hid, emb))
        w_h2f = xavier_uniform(k[3], (hid, hid))
        w_x2f = xavier_uniform(k[4], (hid, emb))
        biases = tuple(jnp.zeros((hid,), jnp.float32) for _ in range(5))
        layers.append(((w_x2c, w_h2i, w_x2i, w_h2f, w_x2f), biases))
    return emb_w, h2o_w, h2o_b, layers


def prepare_params(params, mxu_dtype=MXU_DTYPE):
    """One-time weight fusion: transposes/concats/casts hoisted out of forward."""
    emb_w, h2o_w, h2o_b, layers = params
    wdt = mxu_dtype if mxu_dtype is not None else jnp.float32
    fused_layers = []
    for (w_x2c, w_h2i, w_x2i, w_h2f, w_x2f), \
            (b_x2c, b_h2i, b_x2i, b_h2f, b_x2f) in layers:
        wx_cat = jnp.concatenate([w_x2c.T, w_x2i.T, w_x2f.T], axis=1).astype(wdt)
        bx_cat = jnp.concatenate([b_x2c, b_x2i + b_h2i, b_x2f + b_h2f]
                                 ).astype(jnp.float32)
        wh_cat = jnp.concatenate([w_h2i.T, w_h2f.T], axis=1).astype(wdt)
        fused_layers.append((wx_cat, bx_cat, wh_cat))
    return (emb_w, h2o_w.T.astype(wdt), h2o_b.astype(jnp.float32), fused_layers)


# ----------------------------------------------------------------------------
# Full forward pass: embedding lookup + fused recurrent Pallas kernel per layer
# + tiled h2o projection.  Dropout is identity (inference).
# ----------------------------------------------------------------------------
def ran_forward(word, h_s, l_s, fused_params):
    emb_w, h2o_wT, h2o_b, layers = fused_params
    S, B = word.shape
    H = h_s.shape[-1]

    B_pad = _round_up(B, 8)                  # sublane grain
    n_bblocks = 1
    if B_pad >= 16:                          # let v7x's 2 TCs split the batch
        B_pad = _round_up(B_pad, 16)
        n_bblocks = 2
    t_chunk = _pick_chunk(S)
    S_pad = _round_up(S, t_chunk)

    hid_dtype = MXU_DTYPE if MXU_DTYPE is not None else jnp.float32

    x = jnp.take(emb_w, word, axis=0)        # (S, B, E) embedding gather (glue)
    x = jnp.pad(x, ((0, S_pad - S), (0, B_pad - B), (0, 0)))
    # TODO(synk): dropout is identity (inference); training dropout not implemented.

    next_h, next_l = [], []
    for li, (wx_cat, bx_cat, wh_cat) in enumerate(layers):
        h0 = jnp.pad(h_s[li], ((0, B_pad - B), (0, 0)))
        l0 = jnp.pad(l_s[li], ((0, B_pad - B), (0, 0)))
        out, hN, lN = ran_layer(x, h0, l0, wx_cat, bx_cat, wh_cat,
                                t_chunk=t_chunk, seq_len=S,
                                n_bblocks=n_bblocks, out_dtype=hid_dtype)
        next_h.append(hN[:B])
        next_l.append(lN[:B])
        x = out                               # (S_pad, B_pad, H), bf16 if MXU bf16

    h_s_new = jnp.stack(next_h, 0)            # (nlayers, B, H) f32
    l_s_new = jnp.stack(next_l, 0)

    hid = x[:S, :B]                           # drop time/batch padding
    logits = tiled_linear(hid.reshape(S * B, H), h2o_wT, h2o_b)
    logits = logits.reshape(S, B, -1)         # (S, B, V) f32
    return h_s_new, l_s_new, logits


# ----------------------------------------------------------------------------
# Pure-JAX f32 reference (mirrors the PyTorch forward) for verification
# ----------------------------------------------------------------------------
def ran_forward_ref(word, h_s, l_s, params):
    emb_w, h2o_w, h2o_b, layers = params
    x = emb_w[word]
    next_h, next_l = [], []
    for layer, (weights, biases) in enumerate(layers):
        w_x2c, w_h2i, w_x2i, w_h2f, w_x2f = weights
        b_x2c, b_h2i, b_x2i, b_h2f, b_x2f = biases
        h, l = h_s[layer], l_s[layer]
        outs = []
        for t in range(x.shape[0]):
            xt = x[t]
            c_tilde = xt @ w_x2c.T + b_x2c
            ig = jax.nn.sigmoid(h @ w_h2i.T + b_h2i + xt @ w_x2i.T + b_x2i)
            fg = jax.nn.sigmoid(h @ w_h2f.T + b_h2f + xt @ w_x2f.T + b_x2f)
            l = ig * c_tilde + fg * l
            h = jnp.tanh(l)
            outs.append(h)
        next_h.append(h)
        next_l.append(l)
        x = jnp.stack(outs, 0)
    logits = x @ h2o_w.T + h2o_b
    return jnp.stack(next_h, 0), jnp.stack(next_l, 0), logits


if __name__ == "__main__":
    SEQ, BATCH = 8, 2
    EMB = HID = 32            # tie-compatible sizing (emb == hid), nlayers > 1
    VOCAB = 64
    NLAYERS = 2

    key = jax.random.PRNGKey(0)
    k_params, k_word = jax.random.split(key)
    params = init_params(k_params, VOCAB, EMB, HID, NLAYERS)
    fused = prepare_params(params)           # one-time weight fusion/casts

    word = jax.random.randint(k_word, (SEQ, BATCH), 0, VOCAB, dtype=jnp.int32)
    h_s = jnp.zeros((NLAYERS, BATCH, HID), jnp.float32)   # init_states
    l_s = jnp.zeros((NLAYERS, BATCH, HID), jnp.float32)

    fwd = jax.jit(ran_forward)
    h_new, l_new, logits = fwd(word, h_s, l_s, fused)
    jax.block_until_ready((h_new, l_new, logits))

    h_ref, l_ref, logits_ref = ran_forward_ref(word, h_s, l_s, params)
    if MXU_DTYPE is None:
        tol = dict(atol=1e-4, rtol=1e-4)
    else:                                      # bf16 MXU inputs, f32 accumulate
        tol = dict(atol=2e-2, rtol=2e-2)
    assert jnp.allclose(h_new, h_ref, **tol)
    assert jnp.allclose(l_new, l_ref, **tol)
    assert jnp.allclose(logits, logits_ref, **tol)

    print("KERNEL_OK")
</pallas_src>

<mosaic_0001>
module attributes {stable_mosaic.version = 11 : i64} {
  func.func @kernel(%arg0: i32, %arg1: i32, %arg2: memref<8x8x32xbf16, #tpu.memory_space<vmem>>, %arg3: memref<8x32xf32, #tpu.memory_space<vmem>>, %arg4: memref<8x32xf32, #tpu.memory_space<vmem>>, %arg5: memref<32x96xbf16, #tpu.memory_space<vmem>>, %arg6: memref<1x96xf32, #tpu.memory_space<vmem>>, %arg7: memref<32x64xbf16, #tpu.memory_space<vmem>>, %arg8: memref<8x8x32xbf16, #tpu.memory_space<vmem>>, %arg9: memref<8x32xf32, #tpu.memory_space<vmem>>, %arg10: memref<8x32xf32, #tpu.memory_space<vmem>>, %arg11: memref<2x8x32xf32, #tpu.memory_space<vmem>>, %arg12: memref<64x32xf32, #tpu.memory_space<vmem>>, %arg13: memref<64x32xf32, #tpu.memory_space<vmem>>, %arg14: memref<64x32xf32, #tpu.memory_space<vmem>>) attributes {dimension_semantics = [#tpu.dimension_semantics<parallel>, #tpu.dimension_semantics<arbitrary>], iteration_bounds = array<i64: 1, 1>, scalar_prefetch = 0 : i64, scratch_operands = 4 : i64, tpu.core_type = #tpu.core_type<tc>, window_params = [{transform_indices = @transform_0, window_bounds = array<i64: 8, 8, 32>}, {transform_indices = @transform_1, window_bounds = array<i64: 8, 32>}, {transform_indices = @transform_2, window_bounds = array<i64: 8, 32>}, {pipeline_mode = #tpu.pipeline_mode<synchronous>, transform_indices = @transform_3, window_bounds = array<i64: 32, 96>}, {pipeline_mode = #tpu.pipeline_mode<synchronous>, transform_indices = @transform_4, window_bounds = array<i64: 1, 96>}, {pipeline_mode = #tpu.pipeline_mode<synchronous>, transform_indices = @transform_5, window_bounds = array<i64: 32, 64>}, {transform_indices = @transform_6, window_bounds = array<i64: 8, 8, 32>}, {transform_indices = @transform_7, window_bounds = array<i64: 8, 32>}, {transform_indices = @transform_8, window_bounds = array<i64: 8, 32>}]} {
    %c0_i32 = arith.constant 0 : i32
    %0 = arith.cmpi eq, %arg1, %c0_i32 : i32
    %1 = arith.extui %0 : i1 to i32
    %c0_i32_0 = arith.constant 0 : i32
    %2 = arith.cmpi ne, %1, %c0_i32_0 : i32
    scf.if %2 {
      %c0_101 = arith.constant 0 : index
      %c0_102 = arith.constant 0 : index
      %294 = vector.load %arg3[%c0_101, %c0_102] : memref<8x32xf32, #tpu.memory_space<vmem>>, vector<8x32xf32>
      %c0_103 = arith.constant 0 : index
      %c0_104 = arith.constant 0 : index
      %c0_105 = arith.constant 0 : index
      %295 = vector.load %arg11[%c0_103, %c0_104, %c0_105] : memref<2x8x32xf32, #tpu.memory_space<vmem>>, vector<1x8x32xf32>
      %296 = vector.shape_cast %295 : vector<1x8x32xf32> to vector<8x32xf32>
      %297 = vector.shape_cast %294 : vector<8x32xf32> to vector<1x8x32xf32>
      tpu.vector_store %arg11[%c0_103, %c0_104, %c0_105], %297 {strides = array<i32>} : memref<2x8x32xf32, #tpu.memory_space<vmem>>, vector<1x8x32xf32>,
      %c0_106 = arith.constant 0 : index
      %c0_107 = arith.constant 0 : index
      %298 = vector.load %arg4[%c0_106, %c0_107] : memref<8x32xf32, #tpu.memory_space<vmem>>, vector<8x32xf32>
      %c1_108 = arith.constant 1 : index
      %c0_109 = arith.constant 0 : index
      %c0_110 = arith.constant 0 : index
      %299 = vector.load %arg11[%c1_108, %c0_109, %c0_110] : memref<2x8x32xf32, #tpu.memory_space<vmem>>, vector<1x8x32xf32>
      %300 = vector.shape_cast %299 : vector<1x8x32xf32> to vector<8x32xf32>
      %301 = vector.shape_cast %298 : vector<8x32xf32> to vector<1x8x32xf32>
      tpu.vector_store %arg11[%c1_108, %c0_109, %c0_110], %301 {strides = array<i32>} : memref<2x8x32xf32, #tpu.memory_space<vmem>>, vector<1x8x32xf32>,
    } else {
    }
    %c0 = arith.constant 0 : index
    %c0_1 = arith.constant 0 : index
    %3 = vector.load %arg7[%c0, %c0_1] : memref<32x64xbf16, #tpu.memory_space<vmem>>, vector<32x64xbf16>
    %c0_2 = arith.constant 0 : index
    %c0_3 = arith.constant 0 : index
    %4 = vector.load %arg5[%c0_2, %c0_3] : memref<32x96xbf16, #tpu.memory_space<vmem>>, vector<32x96xbf16>
    %c0_4 = arith.constant 0 : index
    %c0_5 = arith.constant 0 : index
    %c0_6 = arith.constant 0 : index
    %5 = vector.load %arg2[%c0_4, %c0_5, %c0_6] : memref<8x8x32xbf16, #tpu.memory_space<vmem>>, vector<8x8x32xbf16>
    %6 = vector.shape_cast %5 : vector<8x8x32xbf16> to vector<64x32xbf16>
    %cst = arith.constant dense<0.000000e+00> : vector<64x96xf32>
    %7 = tpu.matmul %6, %4, %cst {dimension_numbers = #tpu.dot_dimension_numbers<[1], [0], [0], [1], [0, 0, 1, 1], [], []>} : vector<64x32xbf16>, vector<32x96xbf16>, vector<64x96xf32> -> vector<64x96xf32>
    %c0_7 = arith.constant 0 : index
    %c0_8 = arith.constant 0 : index
    %8 = vector.load %arg6[%c0_7, %c0_8] : memref<1x96xf32, #tpu.memory_space<vmem>>, vector<1x96xf32>
    %9 = vector.broadcast %8 : vector<1x96xf32> to vector<64x96xf32>
    %10 = arith.addf %7, %9 : vector<64x96xf32>
    %11 = vector.extract_strided_slice %10 {offsets = [0, 0], sizes = [64, 32], strides = [1, 1]} : vector<64x96xf32> to vector<64x32xf32>
    %c0_9 = arith.constant 0 : index
    %c0_10 = arith.constant 0 : index
    %12 = vector.load %arg12[%c0_9, %c0_10] : memref<64x32xf32, #tpu.memory_space<vmem>>, vector<64x32xf32>
    tpu.vector_store %arg12[%c0_9, %c0_10], %11 {strides = array<i32>} : memref<64x32xf32, #tpu.memory_space<vmem>>, vector<64x32xf32>,
    %13 = vector.extract_strided_slice %10 {offsets = [0, 32], sizes = [64, 32], strides = [1, 1]} : vector<64x96xf32> to vector<64x32xf32>
    %c0_11 = arith.constant 0 : index
    %c0_12 = arith.constant 0 : index
    %14 = vector.load %arg13[%c0_11, %c0_12] : memref<64x32xf32, #tpu.memory_space<vmem>>, vector<64x32xf32>
    tpu.vector_store %arg13[%c0_11, %c0_12], %13 {strides = array<i32>} : memref<64x32xf32, #tpu.memory_space<vmem>>, vector<64x32xf32>,
    %15 = vector.extract_strided_slice %10 {offsets = [0, 64], sizes = [64, 32], strides = [1, 1]} : vector<64x96xf32> to vector<64x32xf32>
    %c0_13 = arith.constant 0 : index
    %c0_14 = arith.constant 0 : index
    %16 = vector.load %arg14[%c0_13, %c0_14] : memref<64x32xf32, #tpu.memory_space<vmem>>, vector<64x32xf32>
    tpu.vector_store %arg14[%c0_13, %c0_14], %15 {strides = array<i32>} : memref<64x32xf32, #tpu.memory_space<vmem>>, vector<64x32xf32>,
    %c0_15 = arith.constant 0 : index
    %c0_16 = arith.constant 0 : index
    %c0_17 = arith.constant 0 : index
    %17 = vector.load %arg11[%c0_15, %c0_16, %c0_17] : memref<2x8x32xf32, #tpu.memory_space<vmem>>, vector<1x8x32xf32>
    %18 = vector.shape_cast %17 : vector<1x8x32xf32> to vector<8x32xf32>
    %c1 = arith.constant 1 : index
    %c0_18 = arith.constant 0 : index
    %c0_19 = arith.constant 0 : index
    %19 = vector.load %arg11[%c1, %c0_18, %c0_19] : memref<2x8x32xf32, #tpu.memory_space<vmem>>, vector<1x8x32xf32>
    %20 = vector.shape_cast %19 : vector<1x8x32xf32> to vector<8x32xf32>
    %c0_i32_20 = arith.constant 0 : i32
    %c8_i32 = arith.constant 8 : i32
    %21 = arith.muli %c0_i32_20, %c8_i32 : i32
    %22 = tpu.assume_multiple %21, 8 : i32
    %23 = arith.index_cast %22 : i32 to index
    %c0_21 = arith.constant 0 : index
    %24 = vector.load %arg12[%23, %c0_21] : memref<64x32xf32, #tpu.memory_space<vmem>>, vector<8x32xf32>
    %25 = arith.index_cast %22 : i32 to index
    %c0_22 = arith.constant 0 : index
    %26 = vector.load %arg13[%25, %c0_22] : memref<64x32xf32, #tpu.memory_space<vmem>>, vector<8x32xf32>
    %27 = arith.index_cast %22 : i32 to index
    %c0_23 = arith.constant 0 : index
    %28 = vector.load %arg14[%27, %c0_23] : memref<64x32xf32, #tpu.memory_space<vmem>>, vector<8x32xf32>
    %29 = arith.truncf %18 : vector<8x32xf32> to vector<8x32xbf16>
    %cst_24 = arith.constant dense<0.000000e+00> : vector<8x64xf32>
    %30 = tpu.matmul %29, %3, %cst_24 {dimension_numbers = #tpu.dot_dimension_numbers<[1], [0], [0], [1], [0, 0, 1, 1], [], []>} : vector<8x32xbf16>, vector<32x64xbf16>, vector<8x64xf32> -> vector<8x64xf32>
    %31 = vector.extract_strided_slice %30 {offsets = [0, 0], sizes = [8, 32], strides = [1, 1]} : vector<8x64xf32> to vector<8x32xf32>
    %32 = arith.addf %31, %26 : vector<8x32xf32>
    %33 = arith.negf %32 : vector<8x32xf32>
    %34 = math.exp %33 : vector<8x32xf32>
    %cst_25 = arith.constant 1.000000e+00 : f32
    %35 = vector.broadcast %cst_25 : f32 to vector<8x32xf32>
    %36 = arith.addf %35, %34 : vector<8x32xf32>
    %37 = arith.divf %35, %36 : vector<8x32xf32>
    %38 = vector.extract_strided_slice %30 {offsets = [0, 32], sizes = [8, 32], strides = [1, 1]} : vector<8x64xf32> to vector<8x32xf32>
    %39 = arith.addf %38, %28 : vector<8x32xf32>
    %40 = arith.negf %39 : vector<8x32xf32>
    %41 = math.exp %40 : vector<8x32xf32>
    %cst_26 = arith.constant 1.000000e+00 : f32
    %42 = vector.broadcast %cst_26 : f32 to vector<8x32xf32>
    %43 = arith.addf %42, %41 : vector<8x32xf32>
    %44 = arith.divf %42, %43 : vector<8x32xf32>
    %45 = arith.mulf %37, %24 : vector<8x32xf32>
    %46 = arith.mulf %44, %20 : vector<8x32xf32>
    %47 = arith.addf %45, %46 : vector<8x32xf32>
    %48 = math.tanh %47 : vector<8x32xf32>
    %49 = arith.truncf %48 : vector<8x32xf32> to vector<8x32xbf16>
    %50 = arith.index_cast %c0_i32_20 : i32 to index
    %c0_27 = arith.constant 0 : index
    %c0_28 = arith.constant 0 : index
    %51 = vector.load %arg8[%50, %c0_27, %c0_28] : memref<8x8x32xbf16, #tpu.memory_space<vmem>>, vector<1x8x32xbf16>
    %52 = vector.shape_cast %51 : vector<1x8x32xbf16> to vector<8x32xbf16>
    %53 = vector.shape_cast %49 : vector<8x32xbf16> to vector<1x8x32xbf16>
    tpu.vector_store %arg8[%50, %c0_27, %c0_28], %53 {strides = array<i32>} : memref<8x8x32xbf16, #tpu.memory_space<vmem>>, vector<1x8x32xbf16>,
    %c1_i32 = arith.constant 1 : i32
    %c8_i32_29 = arith.constant 8 : i32
    %54 = arith.muli %c1_i32, %c8_i32_29 : i32
    %55 = tpu.assume_multiple %54, 8 : i32
    %56 = arith.index_cast %55 : i32 to index
    %c0_30 = arith.constant 0 : index
    %57 = vector.load %arg12[%56, %c0_30] : memref<64x32xf32, #tpu.memory_space<vmem>>, vector<8x32xf32>
    %58 = arith.index_cast %55 : i32 to index
    %c0_31 = arith.constant 0 : index
    %59 = vector.load %arg13[%58, %c0_31] : memref<64x32xf32, #tpu.memory_space<vmem>>, vector<8x32xf32>
    %60 = arith.index_cast %55 : i32 to index
    %c0_32 = arith.constant 0 : index
    %61 = vector.load %arg14[%60, %c0_32] : memref<64x32xf32, #tpu.memory_space<vmem>>, vector<8x32xf32>
    %62 = arith.truncf %48 : vector<8x32xf32> to vector<8x32xbf16>
    %cst_33 = arith.constant dense<0.000000e+00> : vector<8x64xf32>
    %63 = tpu.matmul %62, %3, %cst_33 {dimension_numbers = #tpu.dot_dimension_numbers<[1], [0], [0], [1], [0, 0, 1, 1], [], []>} : vector<8x32xbf16>, vector<32x64xbf16>, vector<8x64xf32> -> vector<8x64xf32>
    %64 = vector.extract_strided_slice %63 {offsets = [0, 0], sizes = [8, 32], strides = [1, 1]} : vector<8x64xf32> to vector<8x32xf32>
    %65 = arith.addf %64, %59 : vector<8x32xf32>
    %66 = arith.negf %65 : vector<8x32xf32>
    %67 = math.exp %66 : vector<8x32xf32>
    %cst_34 = arith.constant 1.000000e+00 : f32
    %68 = vector.broadcast %cst_34 : f32 to vector<8x32xf32>
    %69 = arith.addf %68, %67 : vector<8x32xf32>
    %70 = arith.divf %68, %69 : vector<8x32xf32>
    %71 = vector.extract_strided_slice %63 {offsets = [0, 32], sizes = [8, 32], strides = [1, 1]} : vector<8x64xf32> to vector<8x32xf32>
    %72 = arith.addf %71, %61 : vector<8x32xf32>
    %73 = arith.negf %72 : vector<8x32xf32>
    %74 = math.exp %73 : vector<8x32xf32>
    %cst_35 = arith.constant 1.000000e+00 : f32
    %75 = vector.broadcast %cst_35 : f32 to vector<8x32xf32>
    %76 = arith.addf %75, %74 : vector<8x32xf32>
    %77 = arith.divf %75, %76 : vector<8x32xf32>
    %78 = arith.mulf %70, %57 : vector<8x32xf32>
    %79 = arith.mulf %77, %47 : vector<8x32xf32>
    %80 = arith.addf %78, %79 : vector<8x32xf32>
    %81 = math.tanh %80 : vector<8x32xf32>
    %82 = arith.truncf %81 : vector<8x32xf32> to vector<8x32xbf16>
    %83 = arith.index_cast %c1_i32 : i32 to index
    %c0_36 = arith.constant 0 : index
    %c0_37 = arith.constant 0 : index
    %84 = vector.load %arg8[%83, %c0_36, %c0_37] : memref<8x8x32xbf16, #tpu.memory_space<vmem>>, vector<1x8x32xbf16>
    %85 = vector.shape_cast %84 : vector<1x8x32xbf16> to vector<8x32xbf16>
    %86 = vector.shape_cast %82 : vector<8x32xbf16> to vector<1x8x32xbf16>
    tpu.vector_store %arg8[%83, %c0_36, %c0_37], %86 {strides = array<i32>} : memref<8x8x32xbf16, #tpu.memory_space<vmem>>, vector<1x8x32xbf16>,
    %c2_i32 = arith.constant 2 : i32
    %c8_i32_38 = arith.constant 8 : i32
    %87 = arith.muli %c2_i32, %c8_i32_38 : i32
    %88 = tpu.assume_multiple %87, 8 : i32
    %89 = arith.index_cast %88 : i32 to index
    %c0_39 = arith.constant 0 : index
    %90 = vector.load %arg12[%89, %c0_39] : memref<64x32xf32, #tpu.memory_space<vmem>>, vector<8x32xf32>
    %91 = arith.index_cast %88 : i32 to index
    %c0_40 = arith.constant 0 : index
    %92 = vector.load %arg13[%91, %c0_40] : memref<64x32xf32, #tpu.memory_space<vmem>>, vector<8x32xf32>
    %93 = arith.index_cast %88 : i32 to index
    %c0_41 = arith.constant 0 : index
    %94 = vector.load %arg14[%93, %c0_41] : memref<64x32xf32, #tpu.memory_space<vmem>>, vector<8x32xf32>
    %95 = arith.truncf %81 : vector<8x32xf32> to vector<8x32xbf16>
    %cst_42 = arith.constant dense<0.000000e+00> : vector<8x64xf32>
    %96 = tpu.matmul %95, %3, %cst_42 {dimension_numbers = #tpu.dot_dimension_numbers<[1], [0], [0], [1], [0, 0, 1, 1], [], []>} : vector<8x32xbf16>, vector<32x64xbf16>, vector<8x64xf32> -> vector<8x64xf32>
    %97 = vector.extract_strided_slice %96 {offsets = [0, 0], sizes = [8, 32], strides = [1, 1]} : vector<8x64xf32> to vector<8x32xf32>
    %98 = arith.addf %97, %92 : vector<8x32xf32>
    %99 = arith.negf %98 : vector<8x32xf32>
    %100 = math.exp %99 : vector<8x32xf32>
    %cst_43 = arith.constant 1.000000e+00 : f32
    %101 = vector.broadcast %cst_43 : f32 to vector<8x32xf32>
    %102 = arith.addf %101, %100 : vector<8x32xf32>
    %103 = arith.divf %101, %102 : vector<8x32xf32>
    %104 = vector.extract_strided_slice %96 {offsets = [0, 32], sizes = [8, 32], strides = [1, 1]} : vector<8x64xf32> to vector<8x32xf32>
    %105 = arith.addf %104, %94 : vector<8x32xf32>
    %106 = arith.negf %105 : vector<8x32xf32>
    %107 = math.exp %106 : vector<8x32xf32>
    %cst_44 = arith.constant 1.000000e+00 : f32
    %108 = vector.broadcast %cst_44 : f32 to vector<8x32xf32>
    %109 = arith.addf %108, %107 : vector<8x32xf32>
    %110 = arith.divf %108, %109 : vector<8x32xf32>
    %111 = arith.mulf %103, %90 : vector<8x32xf32>
    %112 = arith.mulf %110, %80 : vector<8x32xf32>
    %113 = arith.addf %111, %112 : vector<8x32xf32>
    %114 = math.tanh %113 : vector<8x32xf32>
    %115 = arith.truncf %114 : vector<8x32xf32> to vector<8x32xbf16>
    %116 = arith.index_cast %c2_i32 : i32 to index
    %c0_45 = arith.constant 0 : index
    %c0_46 = arith.constant 0 : index
    %117 = vector.load %arg8[%116, %c0_45, %c0_46] : memref<8x8x32xbf16, #tpu.memory_space<vmem>>, vector<1x8x32xbf16>
    %118 = vector.shape_cast %117 : vector<1x8x32xbf16> to vector<8x32xbf16>
    %119 = vector.shape_cast %115 : vector<8x32xbf16> to vector<1x8x32xbf16>
    tpu.vector_store %arg8[%116, %c0_45, %c0_46], %119 {strides = array<i32>} : memref<8x8x32xbf16, #tpu.memory_space<vmem>>, vector<1x8x32xbf16>,
    %c3_i32 = arith.constant 3 : i32
    %c8_i32_47 = arith.constant 8 : i32
    %120 = arith.muli %c3_i32, %c8_i32_47 : i32
    %121 = tpu.assume_multiple %120, 8 : i32
    %122 = arith.index_cast %121 : i32 to index
    %c0_48 = arith.constant 0 : index
    %123 = vector.load %arg12[%122, %c0_48] : memref<64x32xf32, #tpu.memory_space<vmem>>, vector<8x32xf32>
    %124 = arith.index_cast %121 : i32 to index
    %c0_49 = arith.constant 0 : index
    %125 = vector.load %arg13[%124, %c0_49] : memref<64x32xf32, #tpu.memory_space<vmem>>, vector<8x32xf32>
    %126 = arith.index_cast %121 : i32 to index
    %c0_50 = arith.constant 0 : index
    %127 = vector.load %arg14[%126, %c0_50] : memref<64x32xf32, #tpu.memory_space<vmem>>, vector<8x32xf32>
    %128 = arith.truncf %114 : vector<8x32xf32> to vector<8x32xbf16>
    %cst_51 = arith.constant dense<0.000000e+00> : vector<8x64xf32>
    %129 = tpu.matmul %128, %3, %cst_51 {dimension_numbers = #tpu.dot_dimension_numbers<[1], [0], [0], [1], [0, 0, 1, 1], [], []>} : vector<8x32xbf16>, vector<32x64xbf16>, vector<8x64xf32> -> vector<8x64xf32>
    %130 = vector.extract_strided_slice %129 {offsets = [0, 0], sizes = [8, 32], strides = [1, 1]} : vector<8x64xf32> to vector<8x32xf32>
    %131 = arith.addf %130, %125 : vector<8x32xf32>
    %132 = arith.negf %131 : vector<8x32xf32>
    %133 = math.exp %132 : vector<8x32xf32>
    %cst_52 = arith.constant 1.000000e+00 : f32
    %134 = vector.broadcast %cst_52 : f32 to vector<8x32xf32>
    %135 = arith.addf %134, %133 : vector<8x32xf32>
    %136 = arith.divf %134, %135 : vector<8x32xf32>
    %137 = vector.extract_strided_slice %129 {offsets = [0, 32], sizes = [8, 32], strides = [1, 1]} : vector<8x64xf32> to vector<8x32xf32>
    %138 = arith.addf %137, %127 : vector<8x32xf32>
    %139 = arith.negf %138 : vector<8x32xf32>
    %140 = math.exp %139 : vector<8x32xf32>
    %cst_53 = arith.constant 1.000000e+00 : f32
    %141 = vector.broadcast %cst_53 : f32 to vector<8x32xf32>
    %142 = arith.addf %141, %140 : vector<8x32xf32>
    %143 = arith.divf %141, %142 : vector<8x32xf32>
    %144 = arith.mulf %136, %123 : vector<8x32xf32>
    %145 = arith.mulf %143, %113 : vector<8x32xf32>
    %146 = arith.addf %144, %145 : vector<8x32xf32>
    %147 = math.tanh %146 : vector<8x32xf32>
    %148 = arith.truncf %147 : vector<8x32xf32> to vector<8x32xbf16>
    %149 = arith.index_cast %c3_i32 : i32 to index
    %c0_54 = arith.constant 0 : index
    %c0_55 = arith.constant 0 : index
    %150 = vector.load %arg8[%149, %c0_54, %c0_55] : memref<8x8x32xbf16, #tpu.memory_space<vmem>>, vector<1x8x32xbf16>
    %151 = vector.shape_cast %150 : vector<1x8x32xbf16> to vector<8x32xbf16>
    %152 = vector.shape_cast %148 : vector<8x32xbf16> to vector<1x8x32xbf16>
    tpu.vector_store %arg8[%149, %c0_54, %c0_55], %152 {strides = array<i32>} : memref<8x8x32xbf16, #tpu.memory_space<vmem>>, vector<1x8x32xbf16>,
    %c4_i32 = arith.constant 4 : i32
    %c8_i32_56 = arith.constant 8 : i32
    %153 = arith.muli %c4_i32, %c8_i32_56 : i32
    %154 = tpu.assume_multiple %153, 8 : i32
    %155 = arith.index_cast %154 : i32 to index
    %c0_57 = arith.constant 0 : index
    %156 = vector.load %arg12[%155, %c0_57] : memref<64x32xf32, #tpu.memory_space<vmem>>, vector<8x32xf32>
    %157 = arith.index_cast %154 : i32 to index
    %c0_58 = arith.constant 0 : index
    %158 = vector.load %arg13[%157, %c0_58] : memref<64x32xf32, #tpu.memory_space<vmem>>, vector<8x32xf32>
    %159 = arith.index_cast %154 : i32 to index
    %c0_59 = arith.constant 0 : index
    %160 = vector.load %arg14[%159, %c0_59] : memref<64x32xf32, #tpu.memory_space<vmem>>, vector<8x32xf32>
    %161 = arith.truncf %147 : vector<8x32xf32> to vector<8x32xbf16>
    %cst_60 = arith.constant dense<0.000000e+00> : vector<8x64xf32>
    %162 = tpu.matmul %161, %3, %cst_60 {dimension_numbers = #tpu.dot_dimension_numbers<[1], [0], [0], [1], [0, 0, 1, 1], [], []>} : vector<8x32xbf16>, vector<32x64xbf16>, vector<8x64xf32> -> vector<8x64xf32>
    %163 = vector.extract_strided_slice %162 {offsets = [0, 0], sizes = [8, 32], strides = [1, 1]} : vector<8x64xf32> to vector<8x32xf32>
    %164 = arith.addf %163, %158 : vector<8x32xf32>
    %165 = arith.negf %164 : vector<8x32xf32>
    %166 = math.exp %165 : vector<8x32xf32>
    %cst_61 = arith.constant 1.000000e+00 : f32
    %167 = vector.broadcast %cst_61 : f32 to vector<8x32xf32>
    %168 = arith.addf %167, %166 : vector<8x32xf32>
    %169 = arith.divf %167, %168 : vector<8x32xf32>
    %170 = vector.extract_strided_slice %162 {offsets = [0, 32], sizes = [8, 32], strides = [1, 1]} : vector<8x64xf32> to vector<8x32xf32>
    %171 = arith.addf %170, %160 : vector<8x32xf32>
    %172 = arith.negf %171 : vector<8x32xf32>
    %173 = math.exp %172 : vector<8x32xf32>
    %cst_62 = arith.constant 1.000000e+00 : f32
    %174 = vector.broadcast %cst_62 : f32 to vector<8x32xf32>
    %175 = arith.addf %174, %173 : vector<8x32xf32>
    %176 = arith.divf %174, %175 : vector<8x32xf32>
    %177 = arith.mulf %169, %156 : vector<8x32xf32>
    %178 = arith.mulf %176, %146 : vector<8x32xf32>
    %179 = arith.addf %177, %178 : vector<8x32xf32>
    %180 = math.tanh %179 : vector<8x32xf32>
    %181 = arith.truncf %180 : vector<8x32xf32> to vector<8x32xbf16>
    %182 = arith.index_cast %c4_i32 : i32 to index
    %c0_63 = arith.constant 0 : index
    %c0_64 = arith.constant 0 : index
    %183 = vector.load %arg8[%182, %c0_63, %c0_64] : memref<8x8x32xbf16, #tpu.memory_space<vmem>>, vector<1x8x32xbf16>
    %184 = vector.shape_cast %183 : vector<1x8x32xbf16> to vector<8x32xbf16>
    %185 = vector.shape_cast %181 : vector<8x32xbf16> to vector<1x8x32xbf16>
    tpu.vector_store %arg8[%182, %c0_63, %c0_64], %185 {strides = array<i32>} : memref<8x8x32xbf16, #tpu.memory_space<vmem>>, vector<1x8x32xbf16>,
    %c5_i32 = arith.constant 5 : i32
    %c8_i32_65 = arith.constant 8 : i32
    %186 = arith.muli %c5_i32, %c8_i32_65 : i32
    %187 = tpu.assume_multiple %186, 8 : i32
    %188 = arith.index_cast %187 : i32 to index
    %c0_66 = arith.constant 0 : index
    %189 = vector.load %arg12[%188, %c0_66] : memref<64x32xf32, #tpu.memory_space<vmem>>, vector<8x32xf32>
    %190 = arith.index_cast %187 : i32 to index
    %c0_67 = arith.constant 0 : index
    %191 = vector.load %arg13[%190, %c0_67] : memref<64x32xf32, #tpu.memory_space<vmem>>, vector<8x32xf32>
    %192 = arith.index_cast %187 : i32 to index
    %c0_68 = arith.constant 0 : index
    %193 = vector.load %arg14[%192, %c0_68] : memref<64x32xf32, #tpu.memory_space<vmem>>, vector<8x32xf32>
    %194 = arith.truncf %180 : vector<8x32xf32> to vector<8x32xbf16>
    %cst_69 = arith.constant dense<0.000000e+00> : vector<8x64xf32>
    %195 = tpu.matmul %194, %3, %cst_69 {dimension_numbers = #tpu.dot_dimension_numbers<[1], [0], [0], [1], [0, 0, 1, 1], [], []>} : vector<8x32xbf16>, vector<32x64xbf16>, vector<8x64xf32> -> vector<8x64xf32>
    %196 = vector.extract_strided_slice %195 {offsets = [0, 0], sizes = [8, 32], strides = [1, 1]} : vector<8x64xf32> to vector<8x32xf32>
    %197 = arith.addf %196, %191 : vector<8x32xf32>
    %198 = arith.negf %197 : vector<8x32xf32>
    %199 = math.exp %198 : vector<8x32xf32>
    %cst_70 = arith.constant 1.000000e+00 : f32
    %200 = vector.broadcast %cst_70 : f32 to vector<8x32xf32>
    %201 = arith.addf %200, %199 : vector<8x32xf32>
    %202 = arith.divf %200, %201 : vector<8x32xf32>
    %203 = vector.extract_strided_slice %195 {offsets = [0, 32], sizes = [8, 32], strides = [1, 1]} : vector<8x64xf32> to vector<8x32xf32>
    %204 = arith.addf %203, %193 : vector<8x32xf32>
    %205 = arith.negf %204 : vector<8x32xf32>
    %206 = math.exp %205 : vector<8x32xf32>
    %cst_71 = arith.constant 1.000000e+00 : f32
    %207 = vector.broadcast %cst_71 : f32 to vector<8x32xf32>
    %208 = arith.addf %207, %206 : vector<8x32xf32>
    %209 = arith.divf %207, %208 : vector<8x32xf32>
    %210 = arith.mulf %202, %189 : vector<8x32xf32>
    %211 = arith.mulf %209, %179 : vector<8x32xf32>
    %212 = arith.addf %210, %211 : vector<8x32xf32>
    %213 = math.tanh %212 : vector<8x32xf32>
    %214 = arith.truncf %213 : vector<8x32xf32> to vector<8x32xbf16>
    %215 = arith.index_cast %c5_i32 : i32 to index
    %c0_72 = arith.constant 0 : index
    %c0_73 = arith.constant 0 : index
    %216 = vector.load %arg8[%215, %c0_72, %c0_73] : memref<8x8x32xbf16, #tpu.memory_space<vmem>>, vector<1x8x32xbf16>
    %217 = vector.shape_cast %216 : vector<1x8x32xbf16> to vector<8x32xbf16>
    %218 = vector.shape_cast %214 : vector<8x32xbf16> to vector<1x8x32xbf16>
    tpu.vector_store %arg8[%215, %c0_72, %c0_73], %218 {strides = array<i32>} : memref<8x8x32xbf16, #tpu.memory_space<vmem>>, vector<1x8x32xbf16>,
    %c6_i32 = arith.constant 6 : i32
    %c8_i32_74 = arith.constant 8 : i32
    %219 = arith.muli %c6_i32, %c8_i32_74 : i32
    %220 = tpu.assume_multiple %219, 8 : i32
    %221 = arith.index_cast %220 : i32 to index
    %c0_75 = arith.constant 0 : index
    %222 = vector.load %arg12[%221, %c0_75] : memref<64x32xf32, #tpu.memory_space<vmem>>, vector<8x32xf32>
    %223 = arith.index_cast %220 : i32 to index
    %c0_76 = arith.constant 0 : index
    %224 = vector.load %arg13[%223, %c0_76] : memref<64x32xf32, #tpu.memory_space<vmem>>, vector<8x32xf32>
    %225 = arith.index_cast %220 : i32 to index
    %c0_77 = arith.constant 0 : index
    %226 = vector.load %arg14[%225, %c0_77] : memref<64x32xf32, #tpu.memory_space<vmem>>, vector<8x32xf32>
    %227 = arith.truncf %213 : vector<8x32xf32> to vector<8x32xbf16>
    %cst_78 = arith.constant dense<0.000000e+00> : vector<8x64xf32>
    %228 = tpu.matmul %227, %3, %cst_78 {dimension_numbers = #tpu.dot_dimension_numbers<[1], [0], [0], [1], [0, 0, 1, 1], [], []>} : vector<8x32xbf16>, vector<32x64xbf16>, vector<8x64xf32> -> vector<8x64xf32>
    %229 = vector.extract_strided_slice %228 {offsets = [0, 0], sizes = [8, 32], strides = [1, 1]} : vector<8x64xf32> to vector<8x32xf32>
    %230 = arith.addf %229, %224 : vector<8x32xf32>
    %231 = arith.negf %230 : vector<8x32xf32>
    %232 = math.exp %231 : vector<8x32xf32>
    %cst_79 = arith.constant 1.000000e+00 : f32
    %233 = vector.broadcast %cst_79 : f32 to vector<8x32xf32>
    %234 = arith.addf %233, %232 : vector<8x32xf32>
    %235 = arith.divf %233, %234 : vector<8x32xf32>
    %236 = vector.extract_strided_slice %228 {offsets = [0, 32], sizes = [8, 32], strides = [1, 1]} : vector<8x64xf32> to vector<8x32xf32>
    %237 = arith.addf %236, %226 : vector<8x32xf32>
    %238 = arith.negf %237 : vector<8x32xf32>
    %239 = math.exp %238 : vector<8x32xf32>
    %cst_80 = arith.constant 1.000000e+00 : f32
    %240 = vector.broadcast %cst_80 : f32 to vector<8x32xf32>
    %241 = arith.addf %240, %239 : vector<8x32xf32>
    %242 = arith.divf %240, %241 : vector<8x32xf32>
    %243 = arith.mulf %235, %222 : vector<8x32xf32>
    %244 = arith.mulf %242, %212 : vector<8x32xf32>
    %245 = arith.addf %243, %244 : vector<8x32xf32>
    %246 = math.tanh %245 : vector<8x32xf32>
    %247 = arith.truncf %246 : vector<8x32xf32> to vector<8x32xbf16>
    %248 = arith.index_cast %c6_i32 : i32 to index
    %c0_81 = arith.constant 0 : index
    %c0_82 = arith.constant 0 : index
    %249 = vector.load %arg8[%248, %c0_81, %c0_82] : memref<8x8x32xbf16, #tpu.memory_space<vmem>>, vector<1x8x32xbf16>
    %250 = vector.shape_cast %249 : vector<1x8x32xbf16> to vector<8x32xbf16>
    %251 = vector.shape_cast %247 : vector<8x32xbf16> to vector<1x8x32xbf16>
    tpu.vector_store %arg8[%248, %c0_81, %c0_82], %251 {strides = array<i32>} : memref<8x8x32xbf16, #tpu.memory_space<vmem>>, vector<1x8x32xbf16>,
    %c7_i32 = arith.constant 7 : i32
    %c8_i32_83 = arith.constant 8 : i32
    %252 = arith.muli %c7_i32, %c8_i32_83 : i32
    %253 = tpu.assume_multiple %252, 8 : i32
    %254 = arith.index_cast %253 : i32 to index
    %c0_84 = arith.constant 0 : index
    %255 = vector.load %arg12[%254, %c0_84] : memref<64x32xf32, #tpu.memory_space<vmem>>, vector<8x32xf32>
    %256 = arith.index_cast %253 : i32 to index
    %c0_85 = arith.constant 0 : index
    %257 = vector.load %arg13[%256, %c0_85] : memref<64x32xf32, #tpu.memory_space<vmem>>, vector<8x32xf32>
    %258 = arith.index_cast %253 : i32 to index
    %c0_86 = arith.constant 0 : index
    %259 = vector.load %arg14[%258, %c0_86] : memref<64x32xf32, #tpu.memory_space<vmem>>, vector<8x32xf32>
    %260 = arith.truncf %246 : vector<8x32xf32> to vector<8x32xbf16>
    %cst_87 = arith.constant dense<0.000000e+00> : vector<8x64xf32>
    %261 = tpu.matmul %260, %3, %cst_87 {dimension_numbers = #tpu.dot_dimension_numbers<[1], [0], [0], [1], [0, 0, 1, 1], [], []>} : vector<8x32xbf16>, vector<32x64xbf16>, vector<8x64xf32> -> vector<8x64xf32>
    %262 = vector.extract_strided_slice %261 {offsets = [0, 0], sizes = [8, 32], strides = [1, 1]} : vector<8x64xf32> to vector<8x32xf32>
    %263 = arith.addf %262, %257 : vector<8x32xf32>
    %264 = arith.negf %263 : vector<8x32xf32>
    %265 = math.exp %264 : vector<8x32xf32>
    %cst_88 = arith.constant 1.000000e+00 : f32
    %266 = vector.broadcast %cst_88 : f32 to vector<8x32xf32>
    %267 = arith.addf %266, %265 : vector<8x32xf32>
    %268 = arith.divf %266, %267 : vector<8x32xf32>
    %269 = vector.extract_strided_slice %261 {offsets = [0, 32], sizes = [8, 32], strides = [1, 1]} : vector<8x64xf32> to vector<8x32xf32>
    %270 = arith.addf %269, %259 : vector<8x32xf32>
    %271 = arith.negf %270 : vector<8x32xf32>
    %272 = math.exp %271 : vector<8x32xf32>
    %cst_89 = arith.constant 1.000000e+00 : f32
    %273 = vector.broadcast %cst_89 : f32 to vector<8x32xf32>
    %274 = arith.addf %273, %272 : vector<8x32xf32>
    %275 = arith.divf %273, %274 : vector<8x32xf32>
    %276 = arith.mulf %268, %255 : vector<8x32xf32>
    %277 = arith.mulf %275, %245 : vector<8x32xf32>
    %278 = arith.addf %276, %277 : vector<8x32xf32>
    %279 = math.tanh %278 : vector<8x32xf32>
    %280 = arith.truncf %279 : vector<8x32xf32> to vector<8x32xbf16>
    %281 = arith.index_cast %c7_i32 : i32 to index
    %c0_90 = arith.constant 0 : index
    %c0_91 = arith.constant 0 : index
    %282 = vector.load %arg8[%281, %c0_90, %c0_91] : memref<8x8x32xbf16, #tpu.memory_space<vmem>>, vector<1x8x32xbf16>
    %283 = vector.shape_cast %282 : vector<1x8x32xbf16> to vector<8x32xbf16>
    %284 = vector.shape_cast %280 : vector<8x32xbf16> to vector<1x8x32xbf16>
    tpu.vector_store %arg8[%281, %c0_90, %c0_91], %284 {strides = array<i32>} : memref<8x8x32xbf16, #tpu.memory_space<vmem>>, vector<1x8x32xbf16>,
    %c8_i32_92 = arith.constant 8 : i32
    %c0_93 = arith.constant 0 : index
    %c0_94 = arith.constant 0 : index
    %c0_95 = arith.constant 0 : index
    %285 = vector.load %arg11[%c0_93, %c0_94, %c0_95] : memref<2x8x32xf32, #tpu.memory_space<vmem>>, vector<1x8x32xf32>
    %286 = vector.shape_cast %285 : vector<1x8x32xf32> to vector<8x32xf32>
    %287 = vector.shape_cast %279 : vector<8x32xf32> to vector<1x8x32xf32>
    tpu.vector_store %arg11[%c0_93, %c0_94, %c0_95], %287 {strides = array<i32>} : memref<2x8x32xf32, #tpu.memory_space<vmem>>, vector<1x8x32xf32>,
    %c1_96 = arith.constant 1 : index
    %c0_97 = arith.constant 0 : index
    %c0_98 = arith.constant 0 : index
    %288 = vector.load %arg11[%c1_96, %c0_97, %c0_98] : memref<2x8x32xf32, #tpu.memory_space<vmem>>, vector<1x8x32xf32>
    %289 = vector.shape_cast %288 : vector<1x8x32xf32> to vector<8x32xf32>
    %290 = vector.shape_cast %278 : vector<8x32xf32> to vector<1x8x32xf32>
    tpu.vector_store %arg11[%c1_96, %c0_97, %c0_98], %290 {strides = array<i32>} : memref<2x8x32xf32, #tpu.memory_space<vmem>>, vector<1x8x32xf32>,
    %c0_i32_99 = arith.constant 0 : i32
    %291 = arith.cmpi eq, %arg1, %c0_i32_99 : i32
    %292 = arith.extui %291 : i1 to i32
    %c0_i32_100 = arith.constant 0 : i32
    %293 = arith.cmpi ne, %292, %c0_i32_100 : i32
    scf.if %293 {
      %c0_101 = arith.constant 0 : index
      %c0_102 = arith.constant 0 : index
      %294 = vector.load %arg9[%c0_101, %c0_102] : memref<8x32xf32, #tpu.memory_space<vmem>>, vector<8x32xf32>
      tpu.vector_store %arg9[%c0_101, %c0_102], %279 {strides = array<i32>} : memref<8x32xf32, #tpu.memory_space<vmem>>, vector<8x32xf32>,
      %c0_103 = arith.constant 0 : index
      %c0_104 = arith.constant 0 : index
      %295 = vector.load %arg10[%c0_103, %c0_104] : memref<8x32xf32, #tpu.memory_space<vmem>>, vector<8x32xf32>
      tpu.vector_store %arg10[%c0_103, %c0_104], %278 {strides = array<i32>} : memref<8x32xf32, #tpu.memory_space<vmem>>, vector<8x32xf32>,
    } else {
    }
    return
  }
  func.func @transform_0(%arg0: i32, %arg1: i32) -> (i32, i32, i32) {
    %c0_i32 = arith.constant 0 : i32
    %c0_i32_0 = arith.constant 0 : i32
    return %arg1, %arg0, %c0_i32 : i32, i32, i32
  }
  func.func @transform_1(%arg0: i32, %arg1: i32) -> (i32, i32) {
    %c0_i32 = arith.constant 0 : i32
    %c0_i32_0 = arith.constant 0 : i32
    return %arg0, %c0_i32 : i32, i32
  }
  func.func @transform_2(%arg0: i32, %arg1: i32) -> (i32, i32) {
    %c0_i32 = arith.constant 0 : i32
    %c0_i32_0 = arith.constant 0 : i32
    return %arg0, %c0_i32 : i32, i32
  }
  func.func @transform_3(%arg0: i32, %arg1: i32) -> (i32, i32) {
    %c0_i32 = arith.constant 0 : i32
    %c0_i32_0 = arith.constant 0 : i32
    %c0_i32_1 = arith.constant 0 : i32
    return %c0_i32, %c0_i32_0 : i32, i32
  }
  func.func @transform_4(%arg0: i32, %arg1: i32) -> (i32, i32) {
    %c0_i32 = arith.constant 0 : i32
    %c0_i32_0 = arith.constant 0 : i32
    %c0_i32_1 = arith.constant 0 : i32
    return %c0_i32, %c0_i32_0 : i32, i32
  }
  func.func @transform_5(%arg0: i32, %arg1: i32) -> (i32, i32) {
    %c0_i32 = arith.constant 0 : i32
    %c0_i32_0 = arith.constant 0 : i32
    %c0_i32_1 = arith.constant 0 : i32
    return %c0_i32, %c0_i32_0 : i32, i32
  }
  func.func @transform_6(%arg0: i32, %arg1: i32) -> (i32, i32, i32) {
    %c0_i32 = arith.constant 0 : i32
    %c0_i32_0 = arith.constant 0 : i32
    return %arg1, %arg0, %c0_i32 : i32, i32, i32
  }
  func.func @transform_7(%arg0: i32, %arg1: i32) -> (i32, i32) {
    %c0_i32 = arith.constant 0 : i32
    %c0_i32_0 = arith.constant 0 : i32
    return %arg0, %c0_i32 : i32, i32
  }
  func.func @transform_8(%arg0: i32, %arg1: i32) -> (i32, i32) {
    %c0_i32 = arith.constant 0 : i32
    %c0_i32_0 = arith.constant 0 : i32
    return %arg0, %c0_i32 : i32, i32
  }
}

module attributes {stable_mosaic.version = 11 : i64} {
  func.func @kernel(%arg0: i32, %arg1: i32, %arg2: memref<8x8x32xf32, #tpu.memory_space<vmem>>, %arg3: memref<8x32xf32, #tpu.memory_space<vmem>>, %arg4: memref<8x32xf32, #tpu.memory_space<vmem>>, %arg5: memref<32x96xbf16, #tpu.memory_space<vmem>>, %arg6: memref<1x96xf32, #tpu.memory_space<vmem>>, %arg7: memref<32x64xbf16, #tpu.memory_space<vmem>>, %arg8: memref<8x8x32xbf16, #tpu.memory_space<vmem>>, %arg9: memref<8x32xf32, #tpu.memory_space<vmem>>, %arg10: memref<8x32xf32, #tpu.memory_space<vmem>>, %arg11: memref<2x8x32xf32, #tpu.memory_space<vmem>>, %arg12: memref<64x32xf32, #tpu.memory_space<vmem>>, %arg13: memref<64x32xf32, #tpu.memory_space<vmem>>, %arg14: memref<64x32xf32, #tpu.memory_space<vmem>>) attributes {dimension_semantics = [#tpu.dimension_semantics<parallel>, #tpu.dimension_semantics<arbitrary>], iteration_bounds = array<i64: 1, 1>, scalar_prefetch = 0 : i64, scratch_operands = 4 : i64, tpu.core_type = #tpu.core_type<tc>, window_params = [{transform_indices = @transform_0, window_bounds = array<i64: 8, 8, 32>}, {transform_indices = @transform_1, window_bounds = array<i64: 8, 32>}, {transform_indices = @transform_2, window_bounds = array<i64: 8, 32>}, {pipeline_mode = #tpu.pipeline_mode<synchronous>, transform_indices = @transform_3, window_bounds = array<i64: 32, 96>}, {pipeline_mode = #tpu.pipeline_mode<synchronous>, transform_indices = @transform_4, window_bounds = array<i64: 1, 96>}, {pipeline_mode = #tpu.pipeline_mode<synchronous>, transform_indices = @transform_5, window_bounds = array<i64: 32, 64>}, {transform_indices = @transform_6, window_bounds = array<i64: 8, 8, 32>}, {transform_indices = @transform_7, window_bounds = array<i64: 8, 32>}, {transform_indices = @transform_8, window_bounds = array<i64: 8, 32>}]} {
    %c0_i32 = arith.constant 0 : i32
    %0 = arith.cmpi eq, %arg1, %c0_i32 : i32
    %1 = arith.extui %0 : i1 to i32
    %c0_i32_0 = arith.constant 0 : i32
    %2 = arith.cmpi ne, %1, %c0_i32_0 : i32
    scf.if %2 {
      %c0_101 = arith.constant 0 : index
      %c0_102 = arith.constant 0 : index
      %295 = vector.load %arg3[%c0_101, %c0_102] : memref<8x32xf32, #tpu.memory_space<vmem>>, vector<8x32xf32>
      %c0_103 = arith.constant 0 : index
      %c0_104 = arith.constant 0 : index
      %c0_105 = arith.constant 0 : index
      %296 = vector.load %arg11[%c0_103, %c0_104, %c0_105] : memref<2x8x32xf32, #tpu.memory_space<vmem>>, vector<1x8x32xf32>
      %297 = vector.shape_cast %296 : vector<1x8x32xf32> to vector<8x32xf32>
      %298 = vector.shape_cast %295 : vector<8x32xf32> to vector<1x8x32xf32>
      tpu.vector_store %arg11[%c0_103, %c0_104, %c0_105], %298 {strides = array<i32>} : memref<2x8x32xf32, #tpu.memory_space<vmem>>, vector<1x8x32xf32>,
      %c0_106 = arith.constant 0 : index
      %c0_107 = arith.constant 0 : index
      %299 = vector.load %arg4[%c0_106, %c0_107] : memref<8x32xf32, #tpu.memory_space<vmem>>, vector<8x32xf32>
      %c1_108 = arith.constant 1 : index
      %c0_109 = arith.constant 0 : index
      %c0_110 = arith.constant 0 : index
      %300 = vector.load %arg11[%c1_108, %c0_109, %c0_110] : memref<2x8x32xf32, #tpu.memory_space<vmem>>, vector<1x8x32xf32>
      %301 = vector.shape_cast %300 : vector<1x8x32xf32> to vector<8x32xf32>
      %302 = vector.shape_cast %299 : vector<8x32xf32> to vector<1x8x32xf32>
      tpu.vector_store %arg11[%c1_108, %c0_109, %c0_110], %302 {strides = array<i32>} : memref<2x8x32xf32, #tpu.memory_space<vmem>>, vector<1x8x32xf32>,
    } else {
    }
    %c0 = arith.constant 0 : index
    %c0_1 = arith.constant 0 : index
    %3 = vector.load %arg7[%c0, %c0_1] : memref<32x64xbf16, #tpu.memory_space<vmem>>, vector<32x64xbf16>
    %c0_2 = arith.constant 0 : index
    %c0_3 = arith.constant 0 : index
    %4 = vector.load %arg5[%c0_2, %c0_3] : memref<32x96xbf16, #tpu.memory_space<vmem>>, vector<32x96xbf16>
    %c0_4 = arith.constant 0 : index
    %c0_5 = arith.constant 0 : index
    %c0_6 = arith.constant 0 : index
    %5 = vector.load %arg2[%c0_4, %c0_5, %c0_6] : memref<8x8x32xf32, #tpu.memory_space<vmem>>, vector<8x8x32xf32>
    %6 = vector.shape_cast %5 : vector<8x8x32xf32> to vector<64x32xf32>
    %7 = arith.truncf %6 : vector<64x32xf32> to vector<64x32xbf16>
    %cst = arith.constant dense<0.000000e+00> : vector<64x96xf32>
    %8 = tpu.matmul %7, %4, %cst {dimension_numbers = #tpu.dot_dimension_numbers<[1], [0], [0], [1], [0, 0, 1, 1], [], []>} : vector<64x32xbf16>, vector<32x96xbf16>, vector<64x96xf32> -> vector<64x96xf32>
    %c0_7 = arith.constant 0 : index
    %c0_8 = arith.constant 0 : index
    %9 = vector.load %arg6[%c0_7, %c0_8] : memref<1x96xf32, #tpu.memory_space<vmem>>, vector<1x96xf32>
    %10 = vector.broadcast %9 : vector<1x96xf32> to vector<64x96xf32>
    %11 = arith.addf %8, %10 : vector<64x96xf32>
    %12 = vector.extract_strided_slice %11 {offsets = [0, 0], sizes = [64, 32], strides = [1, 1]} : vector<64x96xf32> to vector<64x32xf32>
    %c0_9 = arith.constant 0 : index
    %c0_10 = arith.constant 0 : index
    %13 = vector.load %arg12[%c0_9, %c0_10] : memref<64x32xf32, #tpu.memory_space<vmem>>, vector<64x32xf32>
    tpu.vector_store %arg12[%c0_9, %c0_10], %12 {strides = array<i32>} : memref<64x32xf32, #tpu.memory_space<vmem>>, vector<64x32xf32>,
    %14 = vector.extract_strided_slice %11 {offsets = [0, 32], sizes = [64, 32], strides = [1, 1]} : vector<64x96xf32> to vector<64x32xf32>
    %c0_11 = arith.constant 0 : index
    %c0_12 = arith.constant 0 : index
    %15 = vector.load %arg13[%c0_11, %c0_12] : memref<64x32xf32, #tpu.memory_space<vmem>>, vector<64x32xf32>
    tpu.vector_store %arg13[%c0_11, %c0_12], %14 {strides = array<i32>} : memref<64x32xf32, #tpu.memory_space<vmem>>, vector<64x32xf32>,
    %16 = vector.extract_strided_slice %11 {offsets = [0, 64], sizes = [64, 32], strides = [1, 1]} : vector<64x96xf32> to vector<64x32xf32>
    %c0_13 = arith.constant 0 : index
    %c0_14 = arith.constant 0 : index
    %17 = vector.load %arg14[%c0_13, %c0_14] : memref<64x32xf32, #tpu.memory_space<vmem>>, vector<64x32xf32>
    tpu.vector_store %arg14[%c0_13, %c0_14], %16 {strides = array<i32>} : memref<64x32xf32, #tpu.memory_space<vmem>>, vector<64x32xf32>,
    %c0_15 = arith.constant 0 : index
    %c0_16 = arith.constant 0 : index
    %c0_17 = arith.constant 0 : index
    %18 = vector.load %arg11[%c0_15, %c0_16, %c0_17] : memref<2x8x32xf32, #tpu.memory_space<vmem>>, vector<1x8x32xf32>
    %19 = vector.shape_cast %18 : vector<1x8x32xf32> to vector<8x32xf32>
    %c1 = arith.constant 1 : index
    %c0_18 = arith.constant 0 : index
    %c0_19 = arith.constant 0 : index
    %20 = vector.load %arg11[%c1, %c0_18, %c0_19] : memref<2x8x32xf32, #tpu.memory_space<vmem>>, vector<1x8x32xf32>
    %21 = vector.shape_cast %20 : vector<1x8x32xf32> to vector<8x32xf32>
    %c0_i32_20 = arith.constant 0 : i32
    %c8_i32 = arith.constant 8 : i32
    %22 = arith.muli %c0_i32_20, %c8_i32 : i32
    %23 = tpu.assume_multiple %22, 8 : i32
    %24 = arith.index_cast %23 : i32 to index
    %c0_21 = arith.constant 0 : index
    %25 = vector.load %arg12[%24, %c0_21] : memref<64x32xf32, #tpu.memory_space<vmem>>, vector<8x32xf32>
    %26 = arith.index_cast %23 : i32 to index
    %c0_22 = arith.constant 0 : index
    %27 = vector.load %arg13[%26, %c0_22] : memref<64x32xf32, #tpu.memory_space<vmem>>, vector<8x32xf32>
    %28 = arith.index_cast %23 : i32 to index
    %c0_23 = arith.constant 0 : index
    %29 = vector.load %arg14[%28, %c0_23] : memref<64x32xf32, #tpu.memory_space<vmem>>, vector<8x32xf32>
    %30 = arith.truncf %19 : vector<8x32xf32> to vector<8x32xbf16>
    %cst_24 = arith.constant dense<0.000000e+00> : vector<8x64xf32>
    %31 = tpu.matmul %30, %3, %cst_24 {dimension_numbers = #tpu.dot_dimension_numbers<[1], [0], [0], [1], [0, 0, 1, 1], [], []>} : vector<8x32xbf16>, vector<32x64xbf16>, vector<8x64xf32> -> vector<8x64xf32>
    %32 = vector.extract_strided_slice %31 {offsets = [0, 0], sizes = [8, 32], strides = [1, 1]} : vector<8x64xf32> to vector<8x32xf32>
    %33 = arith.addf %32, %27 : vector<8x32xf32>
    %34 = arith.negf %33 : vector<8x32xf32>
    %35 = math.exp %34 : vector<8x32xf32>
    %cst_25 = arith.constant 1.000000e+00 : f32
    %36 = vector.broadcast %cst_25 : f32 to vector<8x32xf32>
    %37 = arith.addf %36, %35 : vector<8x32xf32>
    %38 = arith.divf %36, %37 : vector<8x32xf32>
    %39 = vector.extract_strided_slice %31 {offsets = [0, 32], sizes = [8, 32], strides = [1, 1]} : vector<8x64xf32> to vector<8x32xf32>
    %40 = arith.addf %39, %29 : vector<8x32xf32>
    %41 = arith.negf %40 : vector<8x32xf32>
    %42 = math.exp %41 : vector<8x32xf32>
    %cst_26 = arith.constant 1.000000e+00 : f32
    %43 = vector.broadcast %cst_26 : f32 to vector<8x32xf32>
    %44 = arith.addf %43, %42 : vector<8x32xf32>
    %45 = arith.divf %43, %44 : vector<8x32xf32>
    %46 = arith.mulf %38, %25 : vector<8x32xf32>
    %47 = arith.mulf %45, %21 : vector<8x32xf32>
    %48 = arith.addf %46, %47 : vector<8x32xf32>
    %49 = math.tanh %48 : vector<8x32xf32>
    %50 = arith.truncf %49 : vector<8x32xf32> to vector<8x32xbf16>
    %51 = arith.index_cast %c0_i32_20 : i32 to index
    %c0_27 = arith.constant 0 : index
    %c0_28 = arith.constant 0 : index
    %52 = vector.load %arg8[%51, %c0_27, %c0_28] : memref<8x8x32xbf16, #tpu.memory_space<vmem>>, vector<1x8x32xbf16>
    %53 = vector.shape_cast %52 : vector<1x8x32xbf16> to vector<8x32xbf16>
    %54 = vector.shape_cast %50 : vector<8x32xbf16> to vector<1x8x32xbf16>
    tpu.vector_store %arg8[%51, %c0_27, %c0_28], %54 {strides = array<i32>} : memref<8x8x32xbf16, #tpu.memory_space<vmem>>, vector<1x8x32xbf16>,
    %c1_i32 = arith.constant 1 : i32
    %c8_i32_29 = arith.constant 8 : i32
    %55 = arith.muli %c1_i32, %c8_i32_29 : i32
    %56 = tpu.assume_multiple %55, 8 : i32
    %57 = arith.index_cast %56 : i32 to index
    %c0_30 = arith.constant 0 : index
    %58 = vector.load %arg12[%57, %c0_30] : memref<64x32xf32, #tpu.memory_space<vmem>>, vector<8x32xf32>
    %59 = arith.index_cast %56 : i32 to index
    %c0_31 = arith.constant 0 : index
    %60 = vector.load %arg13[%59, %c0_31] : memref<64x32xf32, #tpu.memory_space<vmem>>, vector<8x32xf32>
    %61 = arith.index_cast %56 : i32 to index
    %c0_32 = arith.constant 0 : index
    %62 = vector.load %arg14[%61, %c0_32] : memref<64x32xf32, #tpu.memory_space<vmem>>, vector<8x32xf32>
    %63 = arith.truncf %49 : vector<8x32xf32> to vector<8x32xbf16>
    %cst_33 = arith.constant dense<0.000000e+00> : vector<8x64xf32>
    %64 = tpu.matmul %63, %3, %cst_33 {dimension_numbers = #tpu.dot_dimension_numbers<[1], [0], [0], [1], [0, 0, 1, 1], [], []>} : vector<8x32xbf16>, vector<32x64xbf16>, vector<8x64xf32> -> vector<8x64xf32>
    %65 = vector.extract_strided_slice %64 {offsets = [0, 0], sizes = [8, 32], strides = [1, 1]} : vector<8x64xf32> to vector<8x32xf32>
    %66 = arith.addf %65, %60 : vector<8x32xf32>
    %67 = arith.negf %66 : vector<8x32xf32>
    %68 = math.exp %67 : vector<8x32xf32>
    %cst_34 = arith.constant 1.000000e+00 : f32
    %69 = vector.broadcast %cst_34 : f32 to vector<8x32xf32>
    %70 = arith.addf %69, %68 : vector<8x32xf32>
    %71 = arith.divf %69, %70 : vector<8x32xf32>
    %72 = vector.extract_strided_slice %64 {offsets = [0, 32], sizes = [8, 32], strides = [1, 1]} : vector<8x64xf32> to vector<8x32xf32>
    %73 = arith.addf %72, %62 : vector<8x32xf32>
    %74 = arith.negf %73 : vector<8x32xf32>
    %75 = math.exp %74 : vector<8x32xf32>
    %cst_35 = arith.constant 1.000000e+00 : f32
    %76 = vector.broadcast %cst_35 : f32 to vector<8x32xf32>
    %77 = arith.addf %76, %75 : vector<8x32xf32>
    %78 = arith.divf %76, %77 : vector<8x32xf32>
    %79 = arith.mulf %71, %58 : vector<8x32xf32>
    %80 = arith.mulf %78, %48 : vector<8x32xf32>
    %81 = arith.addf %79, %80 : vector<8x32xf32>
    %82 = math.tanh %81 : vector<8x32xf32>
    %83 = arith.truncf %82 : vector<8x32xf32> to vector<8x32xbf16>
    %84 = arith.index_cast %c1_i32 : i32 to index
    %c0_36 = arith.constant 0 : index
    %c0_37 = arith.constant 0 : index
    %85 = vector.load %arg8[%84, %c0_36, %c0_37] : memref<8x8x32xbf16, #tpu.memory_space<vmem>>, vector<1x8x32xbf16>
    %86 = vector.shape_cast %85 : vector<1x8x32xbf16> to vector<8x32xbf16>
    %87 = vector.shape_cast %83 : vector<8x32xbf16> to vector<1x8x32xbf16>
    tpu.vector_store %arg8[%84, %c0_36, %c0_37], %87 {strides = array<i32>} : memref<8x8x32xbf16, #tpu.memory_space<vmem>>, vector<1x8x32xbf16>,
    %c2_i32 = arith.constant 2 : i32
    %c8_i32_38 = arith.constant 8 : i32
    %88 = arith.muli %c2_i32, %c8_i32_38 : i32
    %89 = tpu.assume_multiple %88, 8 : i32
    %90 = arith.index_cast %89 : i32 to index
    %c0_39 = arith.constant 0 : index
    %91 = vector.load %arg12[%90, %c0_39] : memref<64x32xf32, #tpu.memory_space<vmem>>, vector<8x32xf32>
    %92 = arith.index_cast %89 : i32 to index
    %c0_40 = arith.constant 0 : index
    %93 = vector.load %arg13[%92, %c0_40] : memref<64x32xf32, #tpu.memory_space<vmem>>, vector<8x32xf32>
    %94 = arith.index_cast %89 : i32 to index
    %c0_41 = arith.constant 0 : index
    %95 = vector.load %arg14[%94, %c0_41] : memref<64x32xf32, #tpu.memory_space<vmem>>, vector<8x32xf32>
    %96 = arith.truncf %82 : vector<8x32xf32> to vector<8x32xbf16>
    %cst_42 = arith.constant dense<0.000000e+00> : vector<8x64xf32>
    %97 = tpu.matmul %96, %3, %cst_42 {dimension_numbers = #tpu.dot_dimension_numbers<[1], [0], [0], [1], [0, 0, 1, 1], [], []>} : vector<8x32xbf16>, vector<32x64xbf16>, vector<8x64xf32> -> vector<8x64xf32>
    %98 = vector.extract_strided_slice %97 {offsets = [0, 0], sizes = [8, 32], strides = [1, 1]} : vector<8x64xf32> to vector<8x32xf32>
    %99 = arith.addf %98, %93 : vector<8x32xf32>
    %100 = arith.negf %99 : vector<8x32xf32>
    %101 = math.exp %100 : vector<8x32xf32>
    %cst_43 = arith.constant 1.000000e+00 : f32
    %102 = vector.broadcast %cst_43 : f32 to vector<8x32xf32>
    %103 = arith.addf %102, %101 : vector<8x32xf32>
    %104 = arith.divf %102, %103 : vector<8x32xf32>
    %105 = vector.extract_strided_slice %97 {offsets = [0, 32], sizes = [8, 32], strides = [1, 1]} : vector<8x64xf32> to vector<8x32xf32>
    %106 = arith.addf %105, %95 : vector<8x32xf32>
    %107 = arith.negf %106 : vector<8x32xf32>
    %108 = math.exp %107 : vector<8x32xf32>
    %cst_44 = arith.constant 1.000000e+00 : f32
    %109 = vector.broadcast %cst_44 : f32 to vector<8x32xf32>
    %110 = arith.addf %109, %108 : vector<8x32xf32>
    %111 = arith.divf %109, %110 : vector<8x32xf32>
    %112 = arith.mulf %104, %91 : vector<8x32xf32>
    %113 = arith.mulf %111, %81 : vector<8x32xf32>
    %114 = arith.addf %112, %113 : vector<8x32xf32>
    %115 = math.tanh %114 : vector<8x32xf32>
    %116 = arith.truncf %115 : vector<8x32xf32> to vector<8x32xbf16>
    %117 = arith.index_cast %c2_i32 : i32 to index
    %c0_45 = arith.constant 0 : index
    %c0_46 = arith.constant 0 : index
    %118 = vector.load %arg8[%117, %c0_45, %c0_46] : memref<8x8x32xbf16, #tpu.memory_space<vmem>>, vector<1x8x32xbf16>
    %119 = vector.shape_cast %118 : vector<1x8x32xbf16> to vector<8x32xbf16>
    %120 = vector.shape_cast %116 : vector<8x32xbf16> to vector<1x8x32xbf16>
    tpu.vector_store %arg8[%117, %c0_45, %c0_46], %120 {strides = array<i32>} : memref<8x8x32xbf16, #tpu.memory_space<vmem>>, vector<1x8x32xbf16>,
    %c3_i32 = arith.constant 3 : i32
    %c8_i32_47 = arith.constant 8 : i32
    %121 = arith.muli %c3_i32, %c8_i32_47 : i32
    %122 = tpu.assume_multiple %121, 8 : i32
    %123 = arith.index_cast %122 : i32 to index
    %c0_48 = arith.constant 0 : index
    %124 = vector.load %arg12[%123, %c0_48] : memref<64x32xf32, #tpu.memory_space<vmem>>, vector<8x32xf32>
    %125 = arith.index_cast %122 : i32 to index
    %c0_49 = arith.constant 0 : index
    %126 = vector.load %arg13[%125, %c0_49] : memref<64x32xf32, #tpu.memory_space<vmem>>, vector<8x32xf32>
    %127 = arith.index_cast %122 : i32 to index
    %c0_50 = arith.constant 0 : index
    %128 = vector.load %arg14[%127, %c0_50] : memref<64x32xf32, #tpu.memory_space<vmem>>, vector<8x32xf32>
    %129 = arith.truncf %115 : vector<8x32xf32> to vector<8x32xbf16>
    %cst_51 = arith.constant dense<0.000000e+00> : vector<8x64xf32>
    %130 = tpu.matmul %129, %3, %cst_51 {dimension_numbers = #tpu.dot_dimension_numbers<[1], [0], [0], [1], [0, 0, 1, 1], [], []>} : vector<8x32xbf16>, vector<32x64xbf16>, vector<8x64xf32> -> vector<8x64xf32>
    %131 = vector.extract_strided_slice %130 {offsets = [0, 0], sizes = [8, 32], strides = [1, 1]} : vector<8x64xf32> to vector<8x32xf32>
    %132 = arith.addf %131, %126 : vector<8x32xf32>
    %133 = arith.negf %132 : vector<8x32xf32>
    %134 = math.exp %133 : vector<8x32xf32>
    %cst_52 = arith.constant 1.000000e+00 : f32
    %135 = vector.broadcast %cst_52 : f32 to vector<8x32xf32>
    %136 = arith.addf %135, %134 : vector<8x32xf32>
    %137 = arith.divf %135, %136 : vector<8x32xf32>
    %138 = vector.extract_strided_slice %130 {offsets = [0, 32], sizes = [8, 32], strides = [1, 1]} : vector<8x64xf32> to vector<8x32xf32>
    %139 = arith.addf %138, %128 : vector<8x32xf32>
    %140 = arith.negf %139 : vector<8x32xf32>
    %141 = math.exp %140 : vector<8x32xf32>
    %cst_53 = arith.constant 1.000000e+00 : f32
    %142 = vector.broadcast %cst_53 : f32 to vector<8x32xf32>
    %143 = arith.addf %142, %141 : vector<8x32xf32>
    %144 = arith.divf %142, %143 : vector<8x32xf32>
    %145 = arith.mulf %137, %124 : vector<8x32xf32>
    %146 = arith.mulf %144, %114 : vector<8x32xf32>
    %147 = arith.addf %145, %146 : vector<8x32xf32>
    %148 = math.tanh %147 : vector<8x32xf32>
    %149 = arith.truncf %148 : vector<8x32xf32> to vector<8x32xbf16>
    %150 = arith.index_cast %c3_i32 : i32 to index
    %c0_54 = arith.constant 0 : index
    %c0_55 = arith.constant 0 : index
    %151 = vector.load %arg8[%150, %c0_54, %c0_55] : memref<8x8x32xbf16, #tpu.memory_space<vmem>>, vector<1x8x32xbf16>
    %152 = vector.shape_cast %151 : vector<1x8x32xbf16> to vector<8x32xbf16>
    %153 = vector.shape_cast %149 : vector<8x32xbf16> to vector<1x8x32xbf16>
    tpu.vector_store %arg8[%150, %c0_54, %c0_55], %153 {strides = array<i32>} : memref<8x8x32xbf16, #tpu.memory_space<vmem>>, vector<1x8x32xbf16>,
    %c4_i32 = arith.constant 4 : i32
    %c8_i32_56 = arith.constant 8 : i32
    %154 = arith.muli %c4_i32, %c8_i32_56 : i32
    %155 = tpu.assume_multiple %154, 8 : i32
    %156 = arith.index_cast %155 : i32 to index
    %c0_57 = arith.constant 0 : index
    %157 = vector.load %arg12[%156, %c0_57] : memref<64x32xf32, #tpu.memory_space<vmem>>, vector<8x32xf32>
    %158 = arith.index_cast %155 : i32 to index
    %c0_58 = arith.constant 0 : index
    %159 = vector.load %arg13[%158, %c0_58] : memref<64x32xf32, #tpu.memory_space<vmem>>, vector<8x32xf32>
    %160 = arith.index_cast %155 : i32 to index
    %c0_59 = arith.constant 0 : index
    %161 = vector.load %arg14[%160, %c0_59] : memref<64x32xf32, #tpu.memory_space<vmem>>, vector<8x32xf32>
    %162 = arith.truncf %148 : vector<8x32xf32> to vector<8x32xbf16>
    %cst_60 = arith.constant dense<0.000000e+00> : vector<8x64xf32>
    %163 = tpu.matmul %162, %3, %cst_60 {dimension_numbers = #tpu.dot_dimension_numbers<[1], [0], [0], [1], [0, 0, 1, 1], [], []>} : vector<8x32xbf16>, vector<32x64xbf16>, vector<8x64xf32> -> vector<8x64xf32>
    %164 = vector.extract_strided_slice %163 {offsets = [0, 0], sizes = [8, 32], strides = [1, 1]} : vector<8x64xf32> to vector<8x32xf32>
    %165 = arith.addf %164, %159 : vector<8x32xf32>
    %166 = arith.negf %165 : vector<8x32xf32>
    %167 = math.exp %166 : vector<8x32xf32>
    %cst_61 = arith.constant 1.000000e+00 : f32
    %168 = vector.broadcast %cst_61 : f32 to vector<8x32xf32>
    %169 = arith.addf %168, %167 : vector<8x32xf32>
    %170 = arith.divf %168, %169 : vector<8x32xf32>
    %171 = vector.extract_strided_slice %163 {offsets = [0, 32], sizes = [8, 32], strides = [1, 1]} : vector<8x64xf32> to vector<8x32xf32>
    %172 = arith.addf %171, %161 : vector<8x32xf32>
    %173 = arith.negf %172 : vector<8x32xf32>
    %174 = math.exp %173 : vector<8x32xf32>
    %cst_62 = arith.constant 1.000000e+00 : f32
    %175 = vector.broadcast %cst_62 : f32 to vector<8x32xf32>
    %176 = arith.addf %175, %174 : vector<8x32xf32>
    %177 = arith.divf %175, %176 : vector<8x32xf32>
    %178 = arith.mulf %170, %157 : vector<8x32xf32>
    %179 = arith.mulf %177, %147 : vector<8x32xf32>
    %180 = arith.addf %178, %179 : vector<8x32xf32>
    %181 = math.tanh %180 : vector<8x32xf32>
    %182 = arith.truncf %181 : vector<8x32xf32> to vector<8x32xbf16>
    %183 = arith.index_cast %c4_i32 : i32 to index
    %c0_63 = arith.constant 0 : index
    %c0_64 = arith.constant 0 : index
    %184 = vector.load %arg8[%183, %c0_63, %c0_64] : memref<8x8x32xbf16, #tpu.memory_space<vmem>>, vector<1x8x32xbf16>
    %185 = vector.shape_cast %184 : vector<1x8x32xbf16> to vector<8x32xbf16>
    %186 = vector.shape_cast %182 : vector<8x32xbf16> to vector<1x8x32xbf16>
    tpu.vector_store %arg8[%183, %c0_63, %c0_64], %186 {strides = array<i32>} : memref<8x8x32xbf16, #tpu.memory_space<vmem>>, vector<1x8x32xbf16>,
    %c5_i32 = arith.constant 5 : i32
    %c8_i32_65 = arith.constant 8 : i32
    %187 = arith.muli %c5_i32, %c8_i32_65 : i32
    %188 = tpu.assume_multiple %187, 8 : i32
    %189 = arith.index_cast %188 : i32 to index
    %c0_66 = arith.constant 0 : index
    %190 = vector.load %arg12[%189, %c0_66] : memref<64x32xf32, #tpu.memory_space<vmem>>, vector<8x32xf32>
    %191 = arith.index_cast %188 : i32 to index
    %c0_67 = arith.constant 0 : index
    %192 = vector.load %arg13[%191, %c0_67] : memref<64x32xf32, #tpu.memory_space<vmem>>, vector<8x32xf32>
    %193 = arith.index_cast %188 : i32 to index
    %c0_68 = arith.constant 0 : index
    %194 = vector.load %arg14[%193, %c0_68] : memref<64x32xf32, #tpu.memory_space<vmem>>, vector<8x32xf32>
    %195 = arith.truncf %181 : vector<8x32xf32> to vector<8x32xbf16>
    %cst_69 = arith.constant dense<0.000000e+00> : vector<8x64xf32>
    %196 = tpu.matmul %195, %3, %cst_69 {dimension_numbers = #tpu.dot_dimension_numbers<[1], [0], [0], [1], [0, 0, 1, 1], [], []>} : vector<8x32xbf16>, vector<32x64xbf16>, vector<8x64xf32> -> vector<8x64xf32>
    %197 = vector.extract_strided_slice %196 {offsets = [0, 0], sizes = [8, 32], strides = [1, 1]} : vector<8x64xf32> to vector<8x32xf32>
    %198 = arith.addf %197, %192 : vector<8x32xf32>
    %199 = arith.negf %198 : vector<8x32xf32>
    %200 = math.exp %199 : vector<8x32xf32>
    %cst_70 = arith.constant 1.000000e+00 : f32
    %201 = vector.broadcast %cst_70 : f32 to vector<8x32xf32>
    %202 = arith.addf %201, %200 : vector<8x32xf32>
    %203 = arith.divf %201, %202 : vector<8x32xf32>
    %204 = vector.extract_strided_slice %196 {offsets = [0, 32], sizes = [8, 32], strides = [1, 1]} : vector<8x64xf32> to vector<8x32xf32>
    %205 = arith.addf %204, %194 : vector<8x32xf32>
    %206 = arith.negf %205 : vector<8x32xf32>
    %207 = math.exp %206 : vector<8x32xf32>
    %cst_71 = arith.constant 1.000000e+00 : f32
    %208 = vector.broadcast %cst_71 : f32 to vector<8x32xf32>
    %209 = arith.addf %208, %207 : vector<8x32xf32>
    %210 = arith.divf %208, %209 : vector<8x32xf32>
    %211 = arith.mulf %203, %190 : vector<8x32xf32>
    %212 = arith.mulf %210, %180 : vector<8x32xf32>
    %213 = arith.addf %211, %212 : vector<8x32xf32>
    %214 = math.tanh %213 : vector<8x32xf32>
    %215 = arith.truncf %214 : vector<8x32xf32> to vector<8x32xbf16>
    %216 = arith.index_cast %c5_i32 : i32 to index
    %c0_72 = arith.constant 0 : index
    %c0_73 = arith.constant 0 : index
    %217 = vector.load %arg8[%216, %c0_72, %c0_73] : memref<8x8x32xbf16, #tpu.memory_space<vmem>>, vector<1x8x32xbf16>
    %218 = vector.shape_cast %217 : vector<1x8x32xbf16> to vector<8x32xbf16>
    %219 = vector.shape_cast %215 : vector<8x32xbf16> to vector<1x8x32xbf16>
    tpu.vector_store %arg8[%216, %c0_72, %c0_73], %219 {strides = array<i32>} : memref<8x8x32xbf16, #tpu.memory_space<vmem>>, vector<1x8x32xbf16>,
    %c6_i32 = arith.constant 6 : i32
    %c8_i32_74 = arith.constant 8 : i32
    %220 = arith.muli %c6_i32, %c8_i32_74 : i32
    %221 = tpu.assume_multiple %220, 8 : i32
    %222 = arith.index_cast %221 : i32 to index
    %c0_75 = arith.constant 0 : index
    %223 = vector.load %arg12[%222, %c0_75] : memref<64x32xf32, #tpu.memory_space<vmem>>, vector<8x32xf32>
    %224 = arith.index_cast %221 : i32 to index
    %c0_76 = arith.constant 0 : index
    %225 = vector.load %arg13[%224, %c0_76] : memref<64x32xf32, #tpu.memory_space<vmem>>, vector<8x32xf32>
    %226 = arith.index_cast %221 : i32 to index
    %c0_77 = arith.constant 0 : index
    %227 = vector.load %arg14[%226, %c0_77] : memref<64x32xf32, #tpu.memory_space<vmem>>, vector<8x32xf32>
    %228 = arith.truncf %214 : vector<8x32xf32> to vector<8x32xbf16>
    %cst_78 = arith.constant dense<0.000000e+00> : vector<8x64xf32>
    %229 = tpu.matmul %228, %3, %cst_78 {dimension_numbers = #tpu.dot_dimension_numbers<[1], [0], [0], [1], [0, 0, 1, 1], [], []>} : vector<8x32xbf16>, vector<32x64xbf16>, vector<8x64xf32> -> vector<8x64xf32>
    %230 = vector.extract_strided_slice %229 {offsets = [0, 0], sizes = [8, 32], strides = [1, 1]} : vector<8x64xf32> to vector<8x32xf32>
    %231 = arith.addf %230, %225 : vector<8x32xf32>
    %232 = arith.negf %231 : vector<8x32xf32>
    %233 = math.exp %232 : vector<8x32xf32>
    %cst_79 = arith.constant 1.000000e+00 : f32
    %234 = vector.broadcast %cst_79 : f32 to vector<8x32xf32>
    %235 = arith.addf %234, %233 : vector<8x32xf32>
    %236 = arith.divf %234, %235 : vector<8x32xf32>
    %237 = vector.extract_strided_slice %229 {offsets = [0, 32], sizes = [8, 32], strides = [1, 1]} : vector<8x64xf32> to vector<8x32xf32>
    %238 = arith.addf %237, %227 : vector<8x32xf32>
    %239 = arith.negf %238 : vector<8x32xf32>
    %240 = math.exp %239 : vector<8x32xf32>
    %cst_80 = arith.constant 1.000000e+00 : f32
    %241 = vector.broadcast %cst_80 : f32 to vector<8x32xf32>
    %242 = arith.addf %241, %240 : vector<8x32xf32>
    %243 = arith.divf %241, %242 : vector<8x32xf32>
    %244 = arith.mulf %236, %223 : vector<8x32xf32>
    %245 = arith.mulf %243, %213 : vector<8x32xf32>
    %246 = arith.addf %244, %245 : vector<8x32xf32>
    %247 = math.tanh %246 : vector<8x32xf32>
    %248 = arith.truncf %247 : vector<8x32xf32> to vector<8x32xbf16>
    %249 = arith.index_cast %c6_i32 : i32 to index
    %c0_81 = arith.constant 0 : index
    %c0_82 = arith.constant 0 : index
    %250 = vector.load %arg8[%249, %c0_81, %c0_82] : memref<8x8x32xbf16, #tpu.memory_space<vmem>>, vector<1x8x32xbf16>
    %251 = vector.shape_cast %250 : vector<1x8x32xbf16> to vector<8x32xbf16>
    %252 = vector.shape_cast %248 : vector<8x32xbf16> to vector<1x8x32xbf16>
    tpu.vector_store %arg8[%249, %c0_81, %c0_82], %252 {strides = array<i32>} : memref<8x8x32xbf16, #tpu.memory_space<vmem>>, vector<1x8x32xbf16>,
    %c7_i32 = arith.constant 7 : i32
    %c8_i32_83 = arith.constant 8 : i32
    %253 = arith.muli %c7_i32, %c8_i32_83 : i32
    %254 = tpu.assume_multiple %253, 8 : i32
    %255 = arith.index_cast %254 : i32 to index
    %c0_84 = arith.constant 0 : index
    %256 = vector.load %arg12[%255, %c0_84] : memref<64x32xf32, #tpu.memory_space<vmem>>, vector<8x32xf32>
    %257 = arith.index_cast %254 : i32 to index
    %c0_85 = arith.constant 0 : index
    %258 = vector.load %arg13[%257, %c0_85] : memref<64x32xf32, #tpu.memory_space<vmem>>, vector<8x32xf32>
    %259 = arith.index_cast %254 : i32 to index
    %c0_86 = arith.constant 0 : index
    %260 = vector.load %arg14[%259, %c0_86] : memref<64x32xf32, #tpu.memory_space<vmem>>, vector<8x32xf32>
    %261 = arith.truncf %247 : vector<8x32xf32> to vector<8x32xbf16>
    %cst_87 = arith.constant dense<0.000000e+00> : vector<8x64xf32>
    %262 = tpu.matmul %261, %3, %cst_87 {dimension_numbers = #tpu.dot_dimension_numbers<[1], [0], [0], [1], [0, 0, 1, 1], [], []>} : vector<8x32xbf16>, vector<32x64xbf16>, vector<8x64xf32> -> vector<8x64xf32>
    %263 = vector.extract_strided_slice %262 {offsets = [0, 0], sizes = [8, 32], strides = [1, 1]} : vector<8x64xf32> to vector<8x32xf32>
    %264 = arith.addf %263, %258 : vector<8x32xf32>
    %265 = arith.negf %264 : vector<8x32xf32>
    %266 = math.exp %265 : vector<8x32xf32>
    %cst_88 = arith.constant 1.000000e+00 : f32
    %267 = vector.broadcast %cst_88 : f32 to vector<8x32xf32>
    %268 = arith.addf %267, %266 : vector<8x32xf32>
    %269 = arith.divf %267, %268 : vector<8x32xf32>
    %270 = vector.extract_strided_slice %262 {offsets = [0, 32], sizes = [8, 32], strides = [1, 1]} : vector<8x64xf32> to vector<8x32xf32>
    %271 = arith.addf %270, %260 : vector<8x32xf32>
    %272 = arith.negf %271 : vector<8x32xf32>
    %273 = math.exp %272 : vector<8x32xf32>
    %cst_89 = arith.constant 1.000000e+00 : f32
    %274 = vector.broadcast %cst_89 : f32 to vector<8x32xf32>
    %275 = arith.addf %274, %273 : vector<8x32xf32>
    %276 = arith.divf %274, %275 : vector<8x32xf32>
    %277 = arith.mulf %269, %256 : vector<8x32xf32>
    %278 = arith.mulf %276, %246 : vector<8x32xf32>
    %279 = arith.addf %277, %278 : vector<8x32xf32>
    %280 = math.tanh %279 : vector<8x32xf32>
    %281 = arith.truncf %280 : vector<8x32xf32> to vector<8x32xbf16>
    %282 = arith.index_cast %c7_i32 : i32 to index
    %c0_90 = arith.constant 0 : index
    %c0_91 = arith.constant 0 : index
    %283 = vector.load %arg8[%282, %c0_90, %c0_91] : memref<8x8x32xbf16, #tpu.memory_space<vmem>>, vector<1x8x32xbf16>
    %284 = vector.shape_cast %283 : vector<1x8x32xbf16> to vector<8x32xbf16>
    %285 = vector.shape_cast %281 : vector<8x32xbf16> to vector<1x8x32xbf16>
    tpu.vector_store %arg8[%282, %c0_90, %c0_91], %285 {strides = array<i32>} : memref<8x8x32xbf16, #tpu.memory_space<vmem>>, vector<1x8x32xbf16>,
    %c8_i32_92 = arith.constant 8 : i32
    %c0_93 = arith.constant 0 : index
    %c0_94 = arith.constant 0 : index
    %c0_95 = arith.constant 0 : index
    %286 = vector.load %arg11[%c0_93, %c0_94, %c0_95] : memref<2x8x32xf32, #tpu.memory_space<vmem>>, vector<1x8x32xf32>
    %287 = vector.shape_cast %286 : vector<1x8x32xf32> to vector<8x32xf32>
    %288 = vector.shape_cast %280 : vector<8x32xf32> to vector<1x8x32xf32>
    tpu.vector_store %arg11[%c0_93, %c0_94, %c0_95], %288 {strides = array<i32>} : memref<2x8x32xf32, #tpu.memory_space<vmem>>, vector<1x8x32xf32>,
    %c1_96 = arith.constant 1 : index
    %c0_97 = arith.constant 0 : index
    %c0_98 = arith.constant 0 : index
    %289 = vector.load %arg11[%c1_96, %c0_97, %c0_98] : memref<2x8x32xf32, #tpu.memory_space<vmem>>, vector<1x8x32xf32>
    %290 = vector.shape_cast %289 : vector<1x8x32xf32> to vector<8x32xf32>
    %291 = vector.shape_cast %279 : vector<8x32xf32> to vector<1x8x32xf32>
    tpu.vector_store %arg11[%c1_96, %c0_97, %c0_98], %291 {strides = array<i32>} : memref<2x8x32xf32, #tpu.memory_space<vmem>>, vector<1x8x32xf32>,
    %c0_i32_99 = arith.constant 0 : i32
    %292 = arith.cmpi eq, %arg1, %c0_i32_99 : i32
    %293 = arith.extui %292 : i1 to i32
    %c0_i32_100 = arith.constant 0 : i32
    %294 = arith.cmpi ne, %293, %c0_i32_100 : i32
    scf.if %294 {
      %c0_101 = arith.constant 0 : index
      %c0_102 = arith.constant 0 : index
      %295 = vector.load %arg9[%c0_101, %c0_102] : memref<8x32xf32, #tpu.memory_space<vmem>>, vector<8x32xf32>
      tpu.vector_store %arg9[%c0_101, %c0_102], %280 {strides = array<i32>} : memref<8x32xf32, #tpu.memory_space<vmem>>, vector<8x32xf32>,
      %c0_103 = arith.constant 0 : index
      %c0_104 = arith.constant 0 : index
      %296 = vector.load %arg10[%c0_103, %c0_104] : memref<8x32xf32, #tpu.memory_space<vmem>>, vector<8x32xf32>
      tpu.vector_store %arg10[%c0_103, %c0_104], %279 {strides = array<i32>} : memref<8x32xf32, #tpu.memory_space<vmem>>, vector<8x32xf32>,
    } else {
    }
    return
  }
  func.func @transform_0(%arg0: i32, %arg1: i32) -> (i32, i32, i32) {
    %c0_i32 = arith.constant 0 : i32
    %c0_i32_0 = arith.constant 0 : i32
    return %arg1, %arg0, %c0_i32 : i32, i32, i32
  }
  func.func @transform_1(%arg0: i32, %arg1: i32) -> (i32, i32) {
    %c0_i32 = arith.constant 0 : i32
    %c0_i32_0 = arith.constant 0 : i32
    return %arg0, %c0_i32 : i32, i32
  }
  func.func @transform_2(%arg0: i32, %arg1: i32) -> (i32, i32) {
    %c0_i32 = arith.constant 0 : i32
    %c0_i32_0 = arith.constant 0 : i32
    return %arg0, %c0_i32 : i32, i32
  }
  func.func @transform_3(%arg0: i32, %arg1: i32) -> (i32, i32) {
    %c0_i32 = arith.constant 0 : i32
    %c0_i32_0 = arith.constant 0 : i32
    %c0_i32_1 = arith.constant 0 : i32
    return %c0_i32, %c0_i32_0 : i32, i32
  }
  func.func @transform_4(%arg0: i32, %arg1: i32) -> (i32, i32) {
    %c0_i32 = arith.constant 0 : i32
    %c0_i32_0 = arith.constant 0 : i32
    %c0_i32_1 = arith.constant 0 : i32
    return %c0_i32, %c0_i32_0 : i32, i32
  }
  func.func @transform_5(%arg0: i32, %arg1: i32) -> (i32, i32) {
    %c0_i32 = arith.constant 0 : i32
    %c0_i32_0 = arith.constant 0 : i32
    %c0_i32_1 = arith.constant 0 : i32
    return %c0_i32, %c0_i32_0 : i32, i32
  }
  func.func @transform_6(%arg0: i32, %arg1: i32) -> (i32, i32, i32) {
    %c0_i32 = arith.constant 0 : i32
    %c0_i32_0 = arith.constant 0 : i32
    return %arg1, %arg0, %c0_i32 : i32, i32, i32
  }
  func.func @transform_7(%arg0: i32, %arg1: i32) -> (i32, i32) {
    %c0_i32 = arith.constant 0 : i32
    %c0_i32_0 = arith.constant 0 : i32
    return %arg0, %c0_i32 : i32, i32
  }
  func.func @transform_8(%arg0: i32, %arg1: i32) -> (i32, i32) {
    %c0_i32 = arith.constant 0 : i32
    %c0_i32_0 = arith.constant 0 : i32
    return %arg0, %c0_i32 : i32, i32
  }
}

module attributes {stable_mosaic.version = 11 : i64} {
  func.func @_linear_kernel(%arg0: i32, %arg1: i32, %arg2: i32, %arg3: memref<16x32xbf16, #tpu.memory_space<vmem>>, %arg4: memref<32x64xbf16, #tpu.memory_space<vmem>>, %arg5: memref<1x64xf32, #tpu.memory_space<vmem>>, %arg6: memref<16x64xf32, #tpu.memory_space<vmem>>) attributes {dimension_semantics = [#tpu.dimension_semantics<parallel>, #tpu.dimension_semantics<parallel>, #tpu.dimension_semantics<arbitrary>], iteration_bounds = array<i64: 1, 1, 1>, scalar_prefetch = 0 : i64, scratch_operands = 0 : i64, tpu.core_type = #tpu.core_type<tc>, window_params = [{transform_indices = @transform_0, window_bounds = array<i64: 16, 32>}, {transform_indices = @transform_1, window_bounds = array<i64: 32, 64>}, {transform_indices = @transform_2, window_bounds = array<i64: 1, 64>}, {transform_indices = @transform_3, window_bounds = array<i64: 16, 64>}]} {
    %c0_i32 = arith.constant 0 : i32
    %0 = arith.cmpi eq, %arg2, %c0_i32 : i32
    %1 = arith.extui %0 : i1 to i32
    %c0_i32_0 = arith.constant 0 : i32
    %2 = arith.cmpi ne, %1, %c0_i32_0 : i32
    scf.if %2 {
      %c0_8 = arith.constant 0 : index
      %c0_9 = arith.constant 0 : index
      %9 = vector.load %arg5[%c0_8, %c0_9] : memref<1x64xf32, #tpu.memory_space<vmem>>, vector<1x64xf32>
      %10 = vector.shape_cast %9 : vector<1x64xf32> to vector<1x64xf32>
      %11 = vector.broadcast %10 : vector<1x64xf32> to vector<16x64xf32>
      %c0_10 = arith.constant 0 : index
      %c0_11 = arith.constant 0 : index
      %12 = vector.load %arg6[%c0_10, %c0_11] : memref<16x64xf32, #tpu.memory_space<vmem>>, vector<16x64xf32>
      tpu.vector_store %arg6[%c0_10, %c0_11], %11 {strides = array<i32>} : memref<16x64xf32, #tpu.memory_space<vmem>>, vector<16x64xf32>,
    } else {
    }
    %c0 = arith.constant 0 : index
    %c0_1 = arith.constant 0 : index
    %3 = vector.load %arg3[%c0, %c0_1] : memref<16x32xbf16, #tpu.memory_space<vmem>>, vector<16x32xbf16>
    %c0_2 = arith.constant 0 : index
    %c0_3 = arith.constant 0 : index
    %4 = vector.load %arg6[%c0_2, %c0_3] : memref<16x64xf32, #tpu.memory_space<vmem>>, vector<16x64xf32>
    %c0_4 = arith.constant 0 : index
    %c0_5 = arith.constant 0 : index
    %5 = vector.load %arg4[%c0_4, %c0_5] : memref<32x64xbf16, #tpu.memory_space<vmem>>, vector<32x64xbf16>
    %cst = arith.constant dense<0.000000e+00> : vector<16x64xf32>
    %6 = tpu.matmul %3, %5, %cst {dimension_numbers = #tpu.dot_dimension_numbers<[1], [0], [0], [1], [0, 0, 1, 1], [], []>} : vector<16x32xbf16>, vector<32x64xbf16>, vector<16x64xf32> -> vector<16x64xf32>
    %7 = arith.addf %4, %6 : vector<16x64xf32>
    %c0_6 = arith.constant 0 : index
    %c0_7 = arith.constant 0 : index
    %8 = vector.load %arg6[%c0_6, %c0_7] : memref<16x64xf32, #tpu.memory_space<vmem>>, vector<16x64xf32>
    tpu.vector_store %arg6[%c0_6, %c0_7], %7 {strides = array<i32>} : memref<16x64xf32, #tpu.memory_space<vmem>>, vector<16x64xf32>,
    return
  }
  func.func @transform_0(%arg0: i32, %arg1: i32, %arg2: i32) -> (i32, i32) {
    %c0_i32 = arith.constant 0 : i32
    return %arg0, %arg2 : i32, i32
  }
  func.func @transform_1(%arg0: i32, %arg1: i32, %arg2: i32) -> (i32, i32) {
    %c0_i32 = arith.constant 0 : i32
    return %arg2, %arg1 : i32, i32
  }
  func.func @transform_2(%arg0: i32, %arg1: i32, %arg2: i32) -> (i32, i32) {
    %c0_i32 = arith.constant 0 : i32
    %c0_i32_0 = arith.constant 0 : i32
    return %c0_i32, %arg1 : i32, i32
  }
  func.func @transform_3(%arg0: i32, %arg1: i32, %arg2: i32) -> (i32, i32) {
    %c0_i32 = arith.constant 0 : i32
    return %arg0, %arg1 : i32, i32
  }
}

</mosaic_0001>

<llo_original>
// kernel: ran_forward.5
$region0: #{ran_forward.5}
  #allocation0 [shape = 'u32[]', space=smem, size = 0x4, offset = 0x4, fixed_abs, tag = 'smem constant byte address 0x4 - core index']
  #allocation1 [shape = 'u32[72,128]{1,0:T(1,128)}', space=vmem, size = 0x9000, scoped, tag = 'internal scratch']
  %s0 = inlined_call_operand.vmem [shape: bf16[16,32], index: 0, kind: input, shape index: {}]
  %s1 = inlined_call_operand.vmem [shape: bf16[32,64], index: 1, kind: input, shape index: {}]
  %s2 = inlined_call_operand.vmem [shape: f32[1,64], index: 2, kind: input, shape index: {}]
  %s3 = inlined_call_operand.hbm [shape: f32[16,64], index: 3, kind: output, shape index: {}]
  %s4 = sld [smem:[#allocation0]]
  $region26: #{ran_forward.5} parent=0
    _
  %s6 = ssub.s32 1, %s4
  %s7 = scalar_select 0, %s6, %s4
  $region1: #{ran_forward.5} parent=0
    #allocation2 [shape = 'u8[8192]{0}', space=vmem, size = 0x2000, scoped, tag = 'output window, operand 0, single buffered']
    #allocation3 [shape = 's32[1]{0}', space=sflag, size = 0x4, scoped, tag = 'scoped memory for ran_forward.5']
    %8 = vsyncpa [#allocation3], 0
    // Predicated region
    $region2: #{ran_forward.5} parent=1 // pred_check
      _
    $region3: #{ran_forward.5} parent=1 // pred_check_branch
      %10 = sbr.rel (0) target = $region5
    $region4: #{ran_forward.5} parent=1 // pred_region
      _
    $region5: #{ran_forward.5} parent=1 // pred_fallthru
      _
    // Predicated region
    $region6: #{ran_forward.5} parent=1 // pred_check
      _
    $region7: #{ran_forward.5} parent=1 // pred_check_branch
      %12 = sbr.rel (0) target = $region9
    $region8: #{ran_forward.5} parent=1 // pred_region
      _
    $region9: #{ran_forward.5} parent=1 // pred_fallthru
      _
    // Predicated region
    $region10: #{ran_forward.5} parent=1 // pred_check
      _
    $region11: #{ran_forward.5} parent=1 // pred_check_branch
      %14 = sbr.rel (0) target = $region13
    $region12: #{ran_forward.5} parent=1 // pred_region
      _
    $region13: #{ran_forward.5} parent=1 // pred_fallthru
      _
    %p16 = scmp.eq.s32.totalorder 0, 0
    // Predicated region
    $region14: #{ran_forward.5} parent=1 // pred_check
      %p17 = pneg %p16
    $region15: #{ran_forward.5} parent=1 // pred_check_branch
      %19 = sbr.rel (%p17) target = $region17
    $region16: #{ran_forward.5} parent=1 // pred_region
      %v20 = vld [vmem:[%s2] sm:$0x1]
      %v22 = vperm.slane %v20, 0
      %vm24 = vcmask 523264
      %25 = vst.msk [vmem:[#allocation2] sm:$0xff] %vm24, %v22
      %26 = vst.msk [vmem:[#allocation2 + $0x8] sm:$0xff] %vm24, %v22
    $region17: #{ran_forward.5} parent=1 // pred_fallthru
      _
    %v27 = vld [vmem:[%s0] sm:$0xf]
    %v28 = vld [vmem:[%s0 + $0x4] sm:$0xf]
    %v29 = vld [vmem:[#allocation2] sm:$0xff]
    %v30 = vld [vmem:[#allocation2 + $0x8] sm:$0xff]
    %v31 = vld [vmem:[%s1] sm:$0xf]
    %v32 = vld [vmem:[%s1 + $0x4] sm:$0xf]
    %v33 = vld [vmem:[%s1 + $0x8] sm:$0xf]
    %v34 = vld [vmem:[%s1 + $0xc] sm:$0xf]
    %v37 = vunpack.c.l.b16 %v27
    %v38 = vunpack.c.l.b16 %v28
    %v39 = vpack.c.b16 %v38, %v37
    %v44 = vunpack.c.l.b16 %v31
    %v45 = vunpack.c.l.b16 %v32
    %v46 = vunpack.c.l.b16 %v33
    %v47 = vunpack.c.l.b16 %v34
    %v48 = vpack.c.b16 %v45, %v44
    %v49 = vpack.c.b16 %v47, %v46
    %vm52 = vcmask 261120
    %v54 = vsel %vm52, %v39, 0
    %56 = vmatpush.bf16.msra.mxu0 0
    %57 = vmatpush.bf16.msra.mxu0 0
    %58 = vmatpush.bf16.msra.mxu0 0
    %59 = vmatpush.bf16.msra.mxu0 0
    %60 = vmatpush.bf16.msra.mxu0 0
    %61 = vmatpush.bf16.msra.mxu0 0
    %62 = vmatpush.bf16.msra.mxu0 %v49
    %63 = vmatpush.bf16.msra.mxu0 %v48
    %64 = vmatmul.bf16.gmra.mxu0 %v54
    %v65 = vpop.f32.mrf.mxu0
    %v66 = vadd.f32 0.0, %v65
    %v67 = vpop.f32.mrf.mxu0
    %v68 = vadd.f32 0.0, %v67
    %69 = vdwg.mxu0
    %v70 = vadd.f32 %v29, %v66
    %v71 = vadd.f32 %v30, %v68
    %vm72 = vcmask 523264
    %73 = vst.msk [vmem:[#allocation2] sm:$0xff] %vm72, %v70
    %74 = vst.msk [vmem:[#allocation2 + $0x8] sm:$0xff] %vm72, %v71
    // Predicated region
    $region18: #{ran_forward.5} parent=1 // pred_check
      _
    $region19: #{ran_forward.5} parent=1 // pred_check_branch
      %76 = sbr.rel (0) target = $region21
    $region20: #{ran_forward.5} parent=1 // pred_region
      %78 = vsyncadd [#allocation3], 0
      %s79 = sshll.u32 [#allocation2], 4
      %s80 = int_to_ptr.vmem [resolvable:$true] %s79
      %s81 = sshll.u32 %s3, 4
      %s82 = int_to_ptr.hbm [resolvable:$true] %s81
      %87 = dma.vmem_to_hbm [thread:$0]  %s80, 256, %s82, [#allocation3], 128, 128, 8
    $region21: #{ran_forward.5} parent=1 // pred_fallthru
      _
    // Predicated region
    $region22: #{ran_forward.5} parent=1 // pred_check
      _
    $region23: #{ran_forward.5} parent=1 // pred_check_branch
      %89 = sbr.rel (0) target = $region25
    $region24: #{ran_forward.5} parent=1 // pred_region
      %91 = dma.done [#allocation3], 256
    $region25: #{ran_forward.5} parent=1 // pred_fallthru
      _
    %92 = vsyncpa [#allocation3], 1

// kernel: ran_forward.4
$region0: #{ran_forward.4}
  #allocation0 [shape = 'u32[]', space=smem, size = 0x4, offset = 0x4, fixed_abs, tag = 'smem constant byte address 0x4 - core index']
  #allocation1 [shape = 'u32[72,128]{1,0:T(1,128)}', space=vmem, size = 0x9000, scoped, tag = 'internal scratch']
  #allocation2 [shape = 'f32[2,8,32]{2,1,0:T(8,128)}', space=vmem, size = 0x2000, scoped, tag = 'scratch operand']
  #allocation3 [shape = 'f32[64,32]{1,0:T(8,128)}', space=vmem, size = 0x8000, scoped, tag = 'scratch operand']
  #allocation4 [shape = 'f32[64,32]{1,0:T(8,128)}', space=vmem, size = 0x8000, scoped, tag = 'scratch operand']
  #allocation5 [shape = 'f32[64,32]{1,0:T(8,128)}', space=vmem, size = 0x8000, scoped, tag = 'scratch operand']
  %s0 = inlined_call_operand.vmem [shape: bf16[8,8,32], index: 0, kind: input, shape index: {}]
  %s1 = inlined_call_operand.vmem [shape: f32[8,32], index: 1, kind: input, shape index: {}]
  %s2 = inlined_call_operand.vmem [shape: f32[8,32], index: 2, kind: input, shape index: {}]
  %s3 = inlined_call_operand.vmem [shape: bf16[32,96], index: 3, kind: input, shape index: {}]
  %s4 = inlined_call_operand.vmem [shape: f32[1,96], index: 4, kind: input, shape index: {}]
  %s5 = inlined_call_operand.vmem [shape: bf16[32,64], index: 5, kind: input, shape index: {}]
  %s6 = inlined_call_operand.vmem [shape: bf16[8,8,32], index: 6, kind: output, shape index: {0}]
  %s7 = inlined_call_operand.vmem [shape: f32[8,32], index: 7, kind: output, shape index: {1}]
  %s8 = inlined_call_operand.vmem [shape: f32[8,32], index: 8, kind: output, shape index: {2}]
  %9 = xla_tuple %s6, %s7, %s8
  %s10 = sld [smem:[#allocation0]]
  $region58: #{ran_forward.4} parent=0
    _
  %s12 = ssub.s32 1, %s10
  %s13 = scalar_select 0, %s12, %s10
  // Predicated region
  $region2: #{ran_forward.4} parent=0 // pred_check
    _
  $region3: #{ran_forward.4} parent=0 // pred_check_branch
    %15 = sbr.rel (0) target = $region5
  $region4: #{ran_forward.4} parent=0 // pred_region
    _
  $region5: #{ran_forward.4} parent=0 // pred_fallthru
    _
  // Predicated region
  $region6: #{ran_forward.4} parent=0 // pred_check
    _
  $region7: #{ran_forward.4} parent=0 // pred_check_branch
    %17 = sbr.rel (0) target = $region9
  $region8: #{ran_forward.4} parent=0 // pred_region
    _
  $region9: #{ran_forward.4} parent=0 // pred_fallthru
    _
  // Predicated region
  $region10: #{ran_forward.4} parent=0 // pred_check
    _
  $region11: #{ran_forward.4} parent=0 // pred_check_branch
    %19 = sbr.rel (0) target = $region13
  $region12: #{ran_forward.4} parent=0 // pred_region
    _
  $region13: #{ran_forward.4} parent=0 // pred_fallthru
    _
  // Predicated region
  $region14: #{ran_forward.4} parent=0 // pred_check
    _
  $region15: #{ran_forward.4} parent=0 // pred_check_branch
    %21 = sbr.rel (0) target = $region17
  $region16: #{ran_forward.4} parent=0 // pred_region
    _
  $region17: #{ran_forward.4} parent=0 // pred_fallthru
    _
  // Predicated region
  $region18: #{ran_forward.4} parent=0 // pred_check
    _
  $region19: #{ran_forward.4} parent=0 // pred_check_branch
    %23 = sbr.rel (0) target = $region21
  $region20: #{ran_forward.4} parent=0 // pred_region
    _
  $region21: #{ran_forward.4} parent=0 // pred_fallthru
    _
  // Predicated region
  $region22: #{ran_forward.4} parent=0 // pred_check
    _
  $region23: #{ran_forward.4} parent=0 // pred_check_branch
    %25 = sbr.rel (0) target = $region25
  $region24: #{ran_forward.4} parent=0 // pred_region
    _
  $region25: #{ran_forward.4} parent=0 // pred_fallthru
    _
  %p27 = scmp.eq.s32.totalorder 0, 0
  // Predicated region
  $region26: #{ran_forward.4} parent=0 // pred_check
    %p28 = pneg %p27
  $region27: #{ran_forward.4} parent=0 // pred_check_branch
    %30 = sbr.rel (%p28) target = $region29
  $region28: #{ran_forward.4} parent=0 // pred_region
    %v31 = vld [vmem:[%s1] sm:$0xff]
    %vm32 = vcmask 261120
    %33 = vst.msk [vmem:[#allocation2] sm:$0xff] %vm32, %v31
    %v34 = vld [vmem:[%s2] sm:$0xff]
    %s35 = scalar_lea.vmem [#allocation2], 8
    %36 = vst.msk [vmem:[%s35] sm:$0xff] %vm32, %v34
  $region29: #{ran_forward.4} parent=0 // pred_fallthru
    _
  %v37 = vld [vmem:[%s5] sm:$0xf]
  %v38 = vld [vmem:[%s5 + $0x4] sm:$0xf]
  %v39 = vld [vmem:[%s5 + $0x8] sm:$0xf]
  %v40 = vld [vmem:[%s5 + $0xc] sm:$0xf]
  %v41 = vld [vmem:[%s3] sm:$0xf]
  %v42 = vld [vmem:[%s3 + $0x4] sm:$0xf]
  %v43 = vld [vmem:[%s3 + $0x8] sm:$0xf]
  %v44 = vld [vmem:[%s3 + $0xc] sm:$0xf]
  %v45 = vld [vmem:[%s0] sm:$0xf]
  %v46 = vld [vmem:[%s0 + $0x4] sm:$0xf]
  %v47 = vld [vmem:[%s0 + $0x8] sm:$0xf]
  %v48 = vld [vmem:[%s0 + $0xc] sm:$0xf]
  %v49 = vld [vmem:[%s0 + $0x10] sm:$0xf]
  %v50 = vld [vmem:[%s0 + $0x14] sm:$0xf]
  %v51 = vld [vmem:[%s0 + $0x18] sm:$0xf]
  %v52 = vld [vmem:[%s0 + $0x1c] sm:$0xf]
  %v53 = vld [vmem:[%s4] sm:$0x1]
  %v55 = vperm.slane %v53, 0
  %v65 = vunpack.c.l.b16 %v45
  %v66 = vunpack.c.l.b16 %v46
  %v67 = vunpack.c.l.b16 %v47
  %v68 = vunpack.c.l.b16 %v48
  %v69 = vunpack.c.l.b16 %v49
  %v70 = vunpack.c.l.b16 %v50
  %v71 = vunpack.c.l.b16 %v51
  %v72 = vunpack.c.l.b16 %v52
  %v73 = vpack.c.b16 %v66, %v65
  %v74 = vpack.c.b16 %v68, %v67
  %v75 = vpack.c.b16 %v70, %v69
  %v76 = vpack.c.b16 %v72, %v71
  %v81 = vunpack.c.l.b16 %v41
  %v82 = vunpack.c.l.b16 %v42
  %v83 = vunpack.c.l.b16 %v43
  %v84 = vunpack.c.l.b16 %v44
  %v85 = vpack.c.b16 %v82, %v81
  %v86 = vpack.c.b16 %v84, %v83
  %vm89 = vcmask 261120
  %v91 = vsel %vm89, %v73, 0
  %v94 = vsel %vm89, %v74, 0
  %v97 = vsel %vm89, %v75, 0
  %v100 = vsel %vm89, %v76, 0
  %102 = vmatpush.bf16.msra.mxu0 0
  %103 = vmatpush.bf16.msra.mxu0 0
  %104 = vmatpush.bf16.msra.mxu0 0
  %105 = vmatpush.bf16.msra.mxu0 0
  %106 = vmatpush.bf16.msra.mxu0 0
  %107 = vmatpush.bf16.msra.mxu0 0
  %108 = vmatpush.bf16.msra.mxu0 %v86
  %109 = vmatpush.bf16.msra.mxu0 %v85
  %110 = vmatmul.bf16.gmra.mxu0 %v91
  %v111 = vpop.f32.mrf.mxu0
  %v112 = vadd.f32 %v55, %v111
  %v113 = vpop.f32.mrf.mxu0
  %v114 = vadd.f32 %v55, %v113
  %115 = vmatmul.bf16.gmra.mxu0 %v94
  %v116 = vpop.f32.mrf.mxu0
  %v117 = vadd.f32 %v55, %v116
  %v118 = vpop.f32.mrf.mxu0
  %v119 = vadd.f32 %v55, %v118
  %120 = vmatmul.bf16.gmra.mxu0 %v97
  %v121 = vpop.f32.mrf.mxu0
  %v122 = vadd.f32 %v55, %v121
  %v123 = vpop.f32.mrf.mxu0
  %v124 = vadd.f32 %v55, %v123
  %125 = vmatmul.bf16.gmra.mxu0 %v100
  %v126 = vpop.f32.mrf.mxu0
  %v127 = vadd.f32 %v55, %v126
  %v128 = vpop.f32.mrf.mxu0
  %v129 = vadd.f32 %v55, %v128
  %130 = vdwg.mxu0
  %131 = vst.msk [vmem:[#allocation3] sm:$0xff] %vm89, %v112
  %132 = vst.msk [vmem:[#allocation3 + $0x8] sm:$0xff] %vm89, %v114
  %133 = vst.msk [vmem:[#allocation3 + $0x10] sm:$0xff] %vm89, %v117
  %134 = vst.msk [vmem:[#allocation3 + $0x18] sm:$0xff] %vm89, %v119
  %135 = vst.msk [vmem:[#allocation3 + $0x20] sm:$0xff] %vm89, %v122
  %136 = vst.msk [vmem:[#allocation3 + $0x28] sm:$0xff] %vm89, %v124
  %137 = vst.msk [vmem:[#allocation3 + $0x30] sm:$0xff] %vm89, %v127
  %138 = vst.msk [vmem:[#allocation3 + $0x38] sm:$0xff] %vm89, %v129
  %147 = vrot.lane.b32.xlu0 %v112, 96
  %v148 = vpop.permute.xlu0 %147
  %149 = vrot.lane.b32.xlu0 %v114, 96
  %v150 = vpop.permute.xlu0 %149
  %151 = vrot.lane.b32.xlu0 %v117, 96
  %v152 = vpop.permute.xlu0 %151
  %153 = vrot.lane.b32.xlu0 %v119, 96
  %v154 = vpop.permute.xlu0 %153
  %155 = vrot.lane.b32.xlu0 %v122, 96
  %v156 = vpop.permute.xlu0 %155
  %157 = vrot.lane.b32.xlu0 %v124, 96
  %v158 = vpop.permute.xlu0 %157
  %159 = vrot.lane.b32.xlu0 %v127, 96
  %v160 = vpop.permute.xlu0 %159
  %161 = vrot.lane.b32.xlu0 %v129, 96
  %v162 = vpop.permute.xlu0 %161
  %171 = vst.msk [vmem:[#allocation4] sm:$0xff] %vm89, %v148
  %172 = vst.msk [vmem:[#allocation4 + $0x8] sm:$0xff] %vm89, %v150
  %173 = vst.msk [vmem:[#allocation4 + $0x10] sm:$0xff] %vm89, %v152
  %174 = vst.msk [vmem:[#allocation4 + $0x18] sm:$0xff] %vm89, %v154
  %175 = vst.msk [vmem:[#allocation4 + $0x20] sm:$0xff] %vm89, %v156
  %176 = vst.msk [vmem:[#allocation4 + $0x28] sm:$0xff] %vm89, %v158
  %177 = vst.msk [vmem:[#allocation4 + $0x30] sm:$0xff] %vm89, %v160
  %178 = vst.msk [vmem:[#allocation4 + $0x38] sm:$0xff] %vm89, %v162
  %179 = vrot.lane.b32.xlu0 %v112, 64
  %v180 = vpop.permute.xlu0 %179
  %181 = vrot.lane.b32.xlu0 %v114, 64
  %v182 = vpop.permute.xlu0 %181
  %183 = vrot.lane.b32.xlu0 %v117, 64
  %v184 = vpop.permute.xlu0 %183
  %185 = vrot.lane.b32.xlu0 %v119, 64
  %v186 = vpop.permute.xlu0 %185
  %187 = vrot.lane.b32.xlu0 %v122, 64
  %v188 = vpop.permute.xlu0 %187
  %189 = vrot.lane.b32.xlu0 %v124, 64
  %v190 = vpop.permute.xlu0 %189
  %191 = vrot.lane.b32.xlu0 %v127, 64
  %v192 = vpop.permute.xlu0 %191
  %193 = vrot.lane.b32.xlu0 %v129, 64
  %v194 = vpop.permute.xlu0 %193
  %203 = vst.msk [vmem:[#allocation5] sm:$0xff] %vm89, %v180
  %204 = vst.msk [vmem:[#allocation5 + $0x8] sm:$0xff] %vm89, %v182
  %205 = vst.msk [vmem:[#allocation5 + $0x10] sm:$0xff] %vm89, %v184
  %206 = vst.msk [vmem:[#allocation5 + $0x18] sm:$0xff] %vm89, %v186
  %207 = vst.msk [vmem:[#allocation5 + $0x20] sm:$0xff] %vm89, %v188
  %208 = vst.msk [vmem:[#allocation5 + $0x28] sm:$0xff] %vm89, %v190
  %209 = vst.msk [vmem:[#allocation5 + $0x30] sm:$0xff] %vm89, %v192
  %210 = vst.msk [vmem:[#allocation5 + $0x38] sm:$0xff] %vm89, %v194
  %v211 = vld [vmem:[#allocation2] sm:$0xff]
  %s212 = scalar_lea.vmem [#allocation2], 8
  %v213 = vld [vmem:[%s212] sm:$0xff]
  %v214 = vld [vmem:[#allocation3] sm:$0xff]
  %v215 = vld [vmem:[#allocation4] sm:$0xff]
  %v216 = vld [vmem:[#allocation5] sm:$0xff]
  %v217 = vpack.c.bf16 %v211, %v211
  %v222 = vunpack.c.l.b16 %v37
  %v223 = vunpack.c.l.b16 %v38
  %v224 = vunpack.c.l.b16 %v39
  %v225 = vunpack.c.l.b16 %v40
  %v226 = vpack.c.b16 %v223, %v222
  %v227 = vpack.c.b16 %v225, %v224
  %v231 = vsel %vm89, %v217, 0
  %233 = vmatpush.bf16.msra.mxu0 0
  %234 = vmatpush.bf16.msra.mxu0 0
  %235 = vmatpush.bf16.msra.mxu0 0
  %236 = vmatpush.bf16.msra.mxu0 0
  %237 = vmatpush.bf16.msra.mxu0 0
  %238 = vmatpush.bf16.msra.mxu0 0
  %239 = vmatpush.bf16.msra.mxu0 %v227
  %240 = vmatpush.bf16.msra.mxu0 %v226
  %241 = vmatmul.bf16.gmra.mxu0 %v231
  %v242 = vpop.f32.mrf.mxu0
  %v243 = vadd.f32 0.0, %v242
  %v244 = vpop.f32.mrf.mxu0
  %245 = vdwg.mxu0
  %v246 = vadd.f32 %v243, %v215
  %v247 = vxor.u32 %v246, 2147483648
  %v248 = vmul.f32 %v247, 1.442695
  %v249 = vpow.pop %v248
  %v250 = vadd.f32 %v249, 1.0
  %v251 = vrcp.pop %v250
  %v252 = vmul.f32 %v250, %v251
  %v253 = vsub.f32 1.0, %v252
  %v254 = vmul.f32 %v251, %v253
  %v255 = vadd.f32 %v251, %v254
  %vm256 = vweird.f32 %v250
  %vm257 = vweird.f32 %v251
  %vm258 = vmor %vm256, %vm257
  %v259 = vsel %vm258, %v251, %v255
  %v260 = vand.u32 2147483647, %v250
  %vm261 = vcmp.eq.f32.partialorder %v260, 8.507059e+37
  %v262 = vand.u32 %v250, 2147483648
  %v263 = vor.u32 1.1754944e-38, %v262
  %v264 = vsel %vm261, %v263, %v259
  %v265 = vmul.f32 1.0, %v264
  %267 = vrot.lane.b32.xlu0 %v216, 32
  %v268 = vpop.permute.xlu0 %267
  %v270 = vadd.f32 %v243, %v268
  %v271 = vxor.u32 %v270, 2147483648
  %v272 = vmul.f32 %v271, 1.442695
  %v273 = vpow.pop %v272
  %v274 = vadd.f32 %v273, 1.0
  %v275 = vrcp.pop %v274
  %v276 = vmul.f32 %v274, %v275
  %v277 = vsub.f32 1.0, %v276
  %v278 = vmul.f32 %v275, %v277
  %v279 = vadd.f32 %v275, %v278
  %vm280 = vweird.f32 %v274
  %vm281 = vweird.f32 %v275
  %vm282 = vmor %vm280, %vm281
  %v283 = vsel %vm282, %v275, %v279
  %v284 = vand.u32 2147483647, %v274
  %vm285 = vcmp.eq.f32.partialorder %v284, 8.507059e+37
  %v286 = vand.u32 %v274, 2147483648
  %v287 = vor.u32 1.1754944e-38, %v286
  %v288 = vsel %vm285, %v287, %v283
  %v289 = vmul.f32 1.0, %v288
  %v290 = vmul.f32 %v265, %v214
  %292 = vrot.lane.b32.xlu0 %v213, 32
  %v293 = vpop.permute.xlu0 %292
  %v295 = vmul.f32 %v289, %v293
  %297 = vrot.lane.b32.xlu0 %v295, 96
  %v298 = vpop.permute.xlu0 %297
  %v300 = vadd.f32 %v290, %v298
  %v301 = vtanh.pop %v300
  %v302 = vpack.c.bf16 %v301, %v301
  %vm303 = vcmask 257024
  %304 = vst.msk [vmem:[%s6] sm:$0xf] %vm303, %v302
  %s305 = scalar_lea.vmem [#allocation3], 8
  %v306 = vld [vmem:[%s305] sm:$0xff]
  %s307 = scalar_lea.vmem [#allocation4], 8
  %v308 = vld [vmem:[%s307] sm:$0xff]
  %s309 = scalar_lea.vmem [#allocation5], 8
  %v310 = vld [vmem:[%s309] sm:$0xff]
  %v312 = vsel %vm89, %v302, 0
  %314 = vmatpush.bf16.msra.mxu0 0
  %315 = vmatpush.bf16.msra.mxu0 0
  %316 = vmatpush.bf16.msra.mxu0 0
  %317 = vmatpush.bf16.msra.mxu0 0
  %318 = vmatpush.bf16.msra.mxu0 0
  %319 = vmatpush.bf16.msra.mxu0 0
  %320 = vmatpush.bf16.msra.mxu0 %v227
  %321 = vmatpush.bf16.msra.mxu0 %v226
  %322 = vmatmul.bf16.gmra.mxu0 %v312
  %v323 = vpop.f32.mrf.mxu0
  %v324 = vadd.f32 0.0, %v323
  %v325 = vpop.f32.mrf.mxu0
  %326 = vdwg.mxu0
  %v327 = vadd.f32 %v324, %v308
  %v328 = vxor.u32 %v327, 2147483648
  %v329 = vmul.f32 %v328, 1.442695
  %v330 = vpow.pop %v329
  %v331 = vadd.f32 %v330, 1.0
  %v332 = vrcp.pop %v331
  %v333 = vmul.f32 %v331, %v332
  %v334 = vsub.f32 1.0, %v333
  %v335 = vmul.f32 %v332, %v334
  %v336 = vadd.f32 %v332, %v335
  %vm337 = vweird.f32 %v331
  %vm338 = vweird.f32 %v332
  %vm339 = vmor %vm337, %vm338
  %v340 = vsel %vm339, %v332, %v336
  %v341 = vand.u32 2147483647, %v331
  %vm342 = vcmp.eq.f32.partialorder %v341, 8.507059e+37
  %v343 = vand.u32 %v331, 2147483648
  %v344 = vor.u32 1.1754944e-38, %v343
  %v345 = vsel %vm342, %v344, %v340
  %v346 = vmul.f32 1.0, %v345
  %348 = vrot.lane.b32.xlu0 %v310, 32
  %v349 = vpop.permute.xlu0 %348
  %v351 = vadd.f32 %v324, %v349
  %v352 = vxor.u32 %v351, 2147483648
  %v353 = vmul.f32 %v352, 1.442695
  %v354 = vpow.pop %v353
  %v355 = vadd.f32 %v354, 1.0
  %v356 = vrcp.pop %v355
  %v357 = vmul.f32 %v355, %v356
  %v358 = vsub.f32 1.0, %v357
  %v359 = vmul.f32 %v356, %v358
  %v360 = vadd.f32 %v356, %v359
  %vm361 = vweird.f32 %v355
  %vm362 = vweird.f32 %v356
  %vm363 = vmor %vm361, %vm362
  %v364 = vsel %vm363, %v356, %v360
  %v365 = vand.u32 2147483647, %v355
  %vm366 = vcmp.eq.f32.partialorder %v365, 8.507059e+37
  %v367 = vand.u32 %v355, 2147483648
  %v368 = vor.u32 1.1754944e-38, %v367
  %v369 = vsel %vm366, %v368, %v364
  %v370 = vmul.f32 1.0, %v369
  %v371 = vmul.f32 %v346, %v306
  %373 = vrot.lane.b32.xlu0 %v300, 32
  %v374 = vpop.permute.xlu0 %373
  %v376 = vmul.f32 %v370, %v374
  %378 = vrot.lane.b32.xlu0 %v376, 96
  %v379 = vpop.permute.xlu0 %378
  %v381 = vadd.f32 %v371, %v379
  %v382 = vtanh.pop %v381
  %v383 = vpack.c.bf16 %v382, %v382
  %s384 = scalar_lea.vmem %s6, 4
  %385 = vst.msk [vmem:[%s384] sm:$0xf] %vm303, %v383
  %s386 = scalar_lea.vmem [#allocation3], 16
  %v387 = vld [vmem:[%s386] sm:$0xff]
  %s388 = scalar_lea.vmem [#allocation4], 16
  %v389 = vld [vmem:[%s388] sm:$0xff]
  %s390 = scalar_lea.vmem [#allocation5], 16
  %v391 = vld [vmem:[%s390] sm:$0xff]
  %v393 = vsel %vm89, %v383, 0
  %395 = vmatpush.bf16.msra.mxu0 0
  %396 = vmatpush.bf16.msra.mxu0 0
  %397 = vmatpush.bf16.msra.mxu0 0
  %398 = vmatpush.bf16.msra.mxu0 0
  %399 = vmatpush.bf16.msra.mxu0 0
  %400 = vmatpush.bf16.msra.mxu0 0
  %401 = vmatpush.bf16.msra.mxu0 %v227
  %402 = vmatpush.bf16.msra.mxu0 %v226
  %403 = vmatmul.bf16.gmra.mxu0 %v393
  %v404 = vpop.f32.mrf.mxu0
  %v405 = vadd.f32 0.0, %v404
  %v406 = vpop.f32.mrf.mxu0
  %407 = vdwg.mxu0
  %v408 = vadd.f32 %v405, %v389
  %v409 = vxor.u32 %v408, 2147483648
  %v410 = vmul.f32 %v409, 1.442695
  %v411 = vpow.pop %v410
  %v412 = vadd.f32 %v411, 1.0
  %v413 = vrcp.pop %v412
  %v414 = vmul.f32 %v412, %v413
  %v415 = vsub.f32 1.0, %v414
  %v416 = vmul.f32 %v413, %v415
  %v417 = vadd.f32 %v413, %v416
  %vm418 = vweird.f32 %v412
  %vm419 = vweird.f32 %v413
  %vm420 = vmor %vm418, %vm419
  %v421 = vsel %vm420, %v413, %v417
  %v422 = vand.u32 2147483647, %v412
  %vm423 = vcmp.eq.f32.partialorder %v422, 8.507059e+37
  %v424 = vand.u32 %v412, 2147483648
  %v425 = vor.u32 1.1754944e-38, %v424
  %v426 = vsel %vm423, %v425, %v421
  %v427 = vmul.f32 1.0, %v426
  %429 = vrot.lane.b32.xlu0 %v391, 32
  %v430 = vpop.permute.xlu0 %429
  %v432 = vadd.f32 %v405, %v430
  %v433 = vxor.u32 %v432, 2147483648
  %v434 = vmul.f32 %v433, 1.442695
  %v435 = vpow.pop %v434
  %v436 = vadd.f32 %v435, 1.0
  %v437 = vrcp.pop %v436
  %v438 = vmul.f32 %v436, %v437
  %v439 = vsub.f32 1.0, %v438
  %v440 = vmul.f32 %v437, %v439
  %v441 = vadd.f32 %v437, %v440
  %vm442 = vweird.f32 %v436
  %vm443 = vweird.f32 %v437
  %vm444 = vmor %vm442, %vm443
  %v445 = vsel %vm444, %v437, %v441
  %v446 = vand.u32 2147483647, %v436
  %vm447 = vcmp.eq.f32.partialorder %v446, 8.507059e+37
  %v448 = vand.u32 %v436, 2147483648
  %v449 = vor.u32 1.1754944e-38, %v448
  %v450 = vsel %vm447, %v449, %v445
  %v451 = vmul.f32 1.0, %v450
  %v452 = vmul.f32 %v427, %v387
  %454 = vrot.lane.b32.xlu0 %v381, 32
  %v455 = vpop.permute.xlu0 %454
  %v457 = vmul.f32 %v451, %v455
  %459 = vrot.lane.b32.xlu0 %v457, 96
  %v460 = vpop.permute.xlu0 %459
  %v462 = vadd.f32 %v452, %v460
  %v463 = vtanh.pop %v462
  %v464 = vpack.c.bf16 %v463, %v463
  %s465 = scalar_lea.vmem %s6, 8
  %466 = vst.msk [vmem:[%s465] sm:$0xf] %vm303, %v464
  %s467 = scalar_lea.vmem [#allocation3], 24
  %v468 = vld [vmem:[%s467] sm:$0xff]
  %s469 = scalar_lea.vmem [#allocation4], 24
  %v470 = vld [vmem:[%s469] sm:$0xff]
  %s471 = scalar_lea.vmem [#allocation5], 24
  %v472 = vld [vmem:[%s471] sm:$0xff]
  %v474 = vsel %vm89, %v464, 0
  %476 = vmatpush.bf16.msra.mxu0 0
  %477 = vmatpush.bf16.msra.mxu0 0
  %478 = vmatpush.bf16.msra.mxu0 0
  %479 = vmatpush.bf16.msra.mxu0 0
  %480 = vmatpush.bf16.msra.mxu0 0
  %481 = vmatpush.bf16.msra.mxu0 0
  %482 = vmatpush.bf16.msra.mxu0 %v227
  %483 = vmatpush.bf16.msra.mxu0 %v226
  %484 = vmatmul.bf16.gmra.mxu0 %v474
  %v485 = vpop.f32.mrf.mxu0
  %v486 = vadd.f32 0.0, %v485
  %v487 = vpop.f32.mrf.mxu0
  %488 = vdwg.mxu0
  %v489 = vadd.f32 %v486, %v470
  %v490 = vxor.u32 %v489, 2147483648
  %v491 = vmul.f32 %v490, 1.442695
  %v492 = vpow.pop %v491
  %v493 = vadd.f32 %v492, 1.0
  %v494 = vrcp.pop %v493
  %v495 = vmul.f32 %v493, %v494
  %v496 = vsub.f32 1.0, %v495
  %v497 = vmul.f32 %v494, %v496
  %v498 = vadd.f32 %v494, %v497
  %vm499 = vweird.f32 %v493
  %vm500 = vweird.f32 %v494
  %vm501 = vmor %vm499, %vm500
  %v502 = vsel %vm501, %v494, %v498
  %v503 = vand.u32 2147483647, %v493
  %vm504 = vcmp.eq.f32.partialorder %v503, 8.507059e+37
  %v505 = vand.u32 %v493, 2147483648
  %v506 = vor.u32 1.1754944e-38, %v505
  %v507 = vsel %vm504, %v506, %v502
  %v508 = vmul.f32 1.0, %v507
  %510 = vrot.lane.b32.xlu0 %v472, 32
  %v511 = vpop.permute.xlu0 %510
  %v513 = vadd.f32 %v486, %v511
  %v514 = vxor.u32 %v513, 2147483648
  %v515 = vmul.f32 %v514, 1.442695
  %v516 = vpow.pop %v515
  %v517 = vadd.f32 %v516, 1.0
  %v518 = vrcp.pop %v517
  %v519 = vmul.f32 %v517, %v518
  %v520 = vsub.f32 1.0, %v519
  %v521 = vmul.f32 %v518, %v520
  %v522 = vadd.f32 %v518, %v521
  %vm523 = vweird.f32 %v517
  %vm524 = vweird.f32 %v518
  %vm525 = vmor %vm523, %vm524
  %v526 = vsel %vm525, %v518, %v522
  %v527 = vand.u32 2147483647, %v517
  %vm528 = vcmp.eq.f32.partialorder %v527, 8.507059e+37
  %v529 = vand.u32 %v517, 2147483648
  %v530 = vor.u32 1.1754944e-38, %v529
  %v531 = vsel %vm528, %v530, %v526
  %v532 = vmul.f32 1.0, %v531
  %v533 = vmul.f32 %v508, %v468
  %535 = vrot.lane.b32.xlu0 %v462, 32
  %v536 = vpop.permute.xlu0 %535
  %v538 = vmul.f32 %v532, %v536
  %540 = vrot.lane.b32.xlu0 %v538, 96
  %v541 = vpop.permute.xlu0 %540
  %v543 = vadd.f32 %v533, %v541
  %v544 = vtanh.pop %v543
  %v545 = vpack.c.bf16 %v544, %v544
  %s546 = scalar_lea.vmem %s6, 12
  %547 = vst.msk [vmem:[%s546] sm:$0xf] %vm303, %v545
  %s548 = scalar_lea.vmem [#allocation3], 32
  %v549 = vld [vmem:[%s548] sm:$0xff]
  %s550 = scalar_lea.vmem [#allocation4], 32
  %v551 = vld [vmem:[%s550] sm:$0xff]
  %s552 = scalar_lea.vmem [#allocation5], 32
  %v553 = vld [vmem:[%s552] sm:$0xff]
  %v555 = vsel %vm89, %v545, 0
  %557 = vmatpush.bf16.msra.mxu0 0
  %558 = vmatpush.bf16.msra.mxu0 0
  %559 = vmatpush.bf16.msra.mxu0 0
  %560 = vmatpush.bf16.msra.mxu0 0
  %561 = vmatpush.bf16.msra.mxu0 0
  %562 = vmatpush.bf16.msra.mxu0 0
  %563 = vmatpush.bf16.msra.mxu0 %v227
  %564 = vmatpush.bf16.msra.mxu0 %v226
  %565 = vmatmul.bf16.gmra.mxu0 %v555
  %v566 = vpop.f32.mrf.mxu0
  %v567 = vadd.f32 0.0, %v566
  %v568 = vpop.f32.mrf.mxu0
  %569 = vdwg.mxu0
  %v570 = vadd.f32 %v567, %v551
  %v571 = vxor.u32 %v570, 2147483648
  %v572 = vmul.f32 %v571, 1.442695
  %v573 = vpow.pop %v572
  %v574 = vadd.f32 %v573, 1.0
  %v575 = vrcp.pop %v574
  %v576 = vmul.f32 %v574, %v575
  %v577 = vsub.f32 1.0, %v576
  %v578 = vmul.f32 %v575, %v577
  %v579 = vadd.f32 %v575, %v578
  %vm580 = vweird.f32 %v574
  %vm581 = vweird.f32 %v575
  %vm582 = vmor %vm580, %vm581
  %v583 = vsel %vm582, %v575, %v579
  %v584 = vand.u32 2147483647, %v574
  %vm585 = vcmp.eq.f32.partialorder %v584, 8.507059e+37
  %v586 = vand.u32 %v574, 2147483648
  %v587 = vor.u32 1.1754944e-38, %v586
  %v588 = vsel %vm585, %v587, %v583
  %v589 = vmul.f32 1.0, %v588
  %591 = vrot.lane.b32.xlu0 %v553, 32
  %v592 = vpop.permute.xlu0 %591
  %v594 = vadd.f32 %v567, %v592
  %v595 = vxor.u32 %v594, 2147483648
  %v596 = vmul.f32 %v595, 1.442695
  %v597 = vpow.pop %v596
  %v598 = vadd.f32 %v597, 1.0
  %v599 = vrcp.pop %v598
  %v600 = vmul.f32 %v598, %v599
  %v601 = vsub.f32 1.0, %v600
  %v602 = vmul.f32 %v599, %v601
  %v603 = vadd.f32 %v599, %v602
  %vm604 = vweird.f32 %v598
  %vm605 = vweird.f32 %v599
  %vm606 = vmor %vm604, %vm605
  %v607 = vsel %vm606, %v599, %v603
  %v608 = vand.u32 2147483647, %v598
  %vm609 = vcmp.eq.f32.partialorder %v608, 8.507059e+37
  %v610 = vand.u32 %v598, 2147483648
  %v611 = vor.u32 1.1754944e-38, %v610
  %v612 = vsel %vm609, %v611, %v607
  %v613 = vmul.f32 1.0, %v612
  %v614 = vmul.f32 %v589, %v549
  %616 = vrot.lane.b32.xlu0 %v543, 32
  %v617 = vpop.permute.xlu0 %616
  %v619 = vmul.f32 %v613, %v617
  %621 = vrot.lane.b32.xlu0 %v619, 96
  %v622 = vpop.permute.xlu0 %621
  %v624 = vadd.f32 %v614, %v622
  %v625 = vtanh.pop %v624
  %v626 = vpack.c.bf16 %v625, %v625
  %s627 = scalar_lea.vmem %s6, 16
  %628 = vst.msk [vmem:[%s627] sm:$0xf] %vm303, %v626
  %s629 = scalar_lea.vmem [#allocation3], 40
  %v630 = vld [vmem:[%s629] sm:$0xff]
  %s631 = scalar_lea.vmem [#allocation4], 40
  %v632 = vld [vmem:[%s631] sm:$0xff]
  %s633 = scalar_lea.vmem [#allocation5], 40
  %v634 = vld [vmem:[%s633] sm:$0xff]
  %v636 = vsel %vm89, %v626, 0
  %638 = vmatpush.bf16.msra.mxu0 0
  %639 = vmatpush.bf16.msra.mxu0 0
  %640 = vmatpush.bf16.msra.mxu0 0
  %641 = vmatpush.bf16.msra.mxu0 0
  %642 = vmatpush.bf16.msra.mxu0 0
  %643 = vmatpush.bf16.msra.mxu0 0
  %644 = vmatpush.bf16.msra.mxu0 %v227
  %645 = vmatpush.bf16.msra.mxu0 %v226
  %646 = vmatmul.bf16.gmra.mxu0 %v636
  %v647 = vpop.f32.mrf.mxu0
  %v648 = vadd.f32 0.0, %v647
  %v649 = vpop.f32.mrf.mxu0
  %650 = vdwg.mxu0
  %v651 = vadd.f32 %v648, %v632
  %v652 = vxor.u32 %v651, 2147483648
  %v653 = vmul.f32 %v652, 1.442695
  %v654 = vpow.pop %v653
  %v655 = vadd.f32 %v654, 1.0
  %v656 = vrcp.pop %v655
  %v657 = vmul.f32 %v655, %v656
  %v658 = vsub.f32 1.0, %v657
  %v659 = vmul.f32 %v656, %v658
  %v660 = vadd.f32 %v656, %v659
  %vm661 = vweird.f32 %v655
  %vm662 = vweird.f32 %v656
  %vm663 = vmor %vm661, %vm662
  %v664 = vsel %vm663, %v656, %v660
  %v665 = vand.u32 2147483647, %v655
  %vm666 = vcmp.eq.f32.partialorder %v665, 8.507059e+37
  %v667 = vand.u32 %v655, 2147483648
  %v668 = vor.u32 1.1754944e-38, %v667
  %v669 = vsel %vm666, %v668, %v664
  %v670 = vmul.f32 1.0, %v669
  %672 = vrot.lane.b32.xlu0 %v634, 32
  %v673 = vpop.permute.xlu0 %672
  %v675 = vadd.f32 %v648, %v673
  %v676 = vxor.u32 %v675, 2147483648
  %v677 = vmul.f32 %v676, 1.442695
  %v678 = vpow.pop %v677
  %v679 = vadd.f32 %v678, 1.0
  %v680 = vrcp.pop %v679
  %v681 = vmul.f32 %v679, %v680
  %v682 = vsub.f32 1.0, %v681
  %v683 = vmul.f32 %v680, %v682
  %v684 = vadd.f32 %v680, %v683
  %vm685 = vweird.f32 %v679
  %vm686 = vweird.f32 %v680
  %vm687 = vmor %vm685, %vm686
  %v688 = vsel %vm687, %v680, %v684
  %v689 = vand.u32 2147483647, %v679
  %vm690 = vcmp.eq.f32.partialorder %v689, 8.507059e+37
  %v691 = vand.u32 %v679, 2147483648
  %v692 = vor.u32 1.1754944e-38, %v691
  %v693 = vsel %vm690, %v692, %v688
  %v694 = vmul.f32 1.0, %v693
  %v695 = vmul.f32 %v670, %v630
  %697 = vrot.lane.b32.xlu0 %v624, 32
  %v698 = vpop.permute.xlu0 %697
  %v700 = vmul.f32 %v694, %v698
  %702 = vrot.lane.b32.xlu0 %v700, 96
  %v703 = vpop.permute.xlu0 %702
  %v705 = vadd.f32 %v695, %v703
  %v706 = vtanh.pop %v705
  %v707 = vpack.c.bf16 %v706, %v706
  %s708 = scalar_lea.vmem %s6, 20
  %709 = vst.msk [vmem:[%s708] sm:$0xf] %vm303, %v707
  %s710 = scalar_lea.vmem [#allocation3], 48
  %v711 = vld [vmem:[%s710] sm:$0xff]
  %s712 = scalar_lea.vmem [#allocation4], 48
  %v713 = vld [vmem:[%s712] sm:$0xff]
  %s714 = scalar_lea.vmem [#allocation5], 48
  %v715 = vld [vmem:[%s714] sm:$0xff]
  %v717 = vsel %vm89, %v707, 0
  %719 = vmatpush.bf16.msra.mxu0 0
  %720 = vmatpush.bf16.msra.mxu0 0
  %721 = vmatpush.bf16.msra.mxu0 0
  %722 = vmatpush.bf16.msra.mxu0 0
  %723 = vmatpush.bf16.msra.mxu0 0
  %724 = vmatpush.bf16.msra.mxu0 0
  %725 = vmatpush.bf16.msra.mxu0 %v227
  %726 = vmatpush.bf16.msra.mxu0 %v226
  %727 = vmatmul.bf16.gmra.mxu0 %v717
  %v728 = vpop.f32.mrf.mxu0
  %v729 = vadd.f32 0.0, %v728
  %v730 = vpop.f32.mrf.mxu0
  %731 = vdwg.mxu0
  %v732 = vadd.f32 %v729, %v713
  %v733 = vxor.u32 %v732, 2147483648
  %v734 = vmul.f32 %v733, 1.442695
  %v735 = vpow.pop %v734
  %v736 = vadd.f32 %v735, 1.0
  %v737 = vrcp.pop %v736
  %v738 = vmul.f32 %v736, %v737
  %v739 = vsub.f32 1.0, %v738
  %v740 = vmul.f32 %v737, %v739
  %v741 = vadd.f32 %v737, %v740
  %vm742 = vweird.f32 %v736
  %vm743 = vweird.f32 %v737
  %vm744 = vmor %vm742, %vm743
  %v745 = vsel %vm744, %v737, %v741
  %v746 = vand.u32 2147483647, %v736
  %vm747 = vcmp.eq.f32.partialorder %v746, 8.507059e+37
  %v748 = vand.u32 %v736, 2147483648
  %v749 = vor.u32 1.1754944e-38, %v748
  %v750 = vsel %vm747, %v749, %v745
  %v751 = vmul.f32 1.0, %v750
  %753 = vrot.lane.b32.xlu0 %v715, 32
  %v754 = vpop.permute.xlu0 %753
  %v756 = vadd.f32 %v729, %v754
  %v757 = vxor.u32 %v756, 2147483648
  %v758 = vmul.f32 %v757, 1.442695
  %v759 = vpow.pop %v758
  %v760 = vadd.f32 %v759, 1.0
  %v761 = vrcp.pop %v760
  %v762 = vmul.f32 %v760, %v761
  %v763 = vsub.f32 1.0, %v762
  %v764 = vmul.f32 %v761, %v763
  %v765 = vadd.f32 %v761, %v764
  %vm766 = vweird.f32 %v760
  %vm767 = vweird.f32 %v761
  %vm768 = vmor %vm766, %vm767
  %v769 = vsel %vm768, %v761, %v765
  %v770 = vand.u32 2147483647, %v760
  %vm771 = vcmp.eq.f32.partialorder %v770, 8.507059e+37
  %v772 = vand.u32 %v760, 2147483648
  %v773 = vor.u32 1.1754944e-38, %v772
  %v774 = vsel %vm771, %v773, %v769
  %v775 = vmul.f32 1.0, %v774
  %v776 = vmul.f32 %v751, %v711
  %778 = vrot.lane.b32.xlu0 %v705, 32
  %v779 = vpop.permute.xlu0 %778
  %v781 = vmul.f32 %v775, %v779
  %783 = vrot.lane.b32.xlu0 %v781, 96
  %v784 = vpop.permute.xlu0 %783
  %v786 = vadd.f32 %v776, %v784
  %v787 = vtanh.pop %v786
  %v788 = vpack.c.bf16 %v787, %v787
  %s789 = scalar_lea.vmem %s6, 24
  %790 = vst.msk [vmem:[%s789] sm:$0xf] %vm303, %v788
  %s791 = scalar_lea.vmem [#allocation3], 56
  %v792 = vld [vmem:[%s791] sm:$0xff]
  %s793 = scalar_lea.vmem [#allocation4], 56
  %v794 = vld [vmem:[%s793] sm:$0xff]
  %s795 = scalar_lea.vmem [#allocation5], 56
  %v796 = vld [vmem:[%s795] sm:$0xff]
  %v798 = vsel %vm89, %v788, 0
  %800 = vmatpush.bf16.msra.mxu0 0
  %801 = vmatpush.bf16.msra.mxu0 0
  %802 = vmatpush.bf16.msra.mxu0 0
  %803 = vmatpush.bf16.msra.mxu0 0
  %804 = vmatpush.bf16.msra.mxu0 0
  %805 = vmatpush.bf16.msra.mxu0 0
  %806 = vmatpush.bf16.msra.mxu0 %v227
  %807 = vmatpush.bf16.msra.mxu0 %v226
  %808 = vmatmul.bf16.gmra.mxu0 %v798
  %v809 = vpop.f32.mrf.mxu0
  %v810 = vadd.f32 0.0, %v809
  %v811 = vpop.f32.mrf.mxu0
  %812 = vdwg.mxu0
  %v813 = vadd.f32 %v810, %v794
  %v814 = vxor.u32 %v813, 2147483648
  %v815 = vmul.f32 %v814, 1.442695
  %v816 = vpow.pop %v815
  %v817 = vadd.f32 %v816, 1.0
  %v818 = vrcp.pop %v817
  %v819 = vmul.f32 %v817, %v818
  %v820 = vsub.f32 1.0, %v819
  %v821 = vmul.f32 %v818, %v820
  %v822 = vadd.f32 %v818, %v821
  %vm823 = vweird.f32 %v817
  %vm824 = vweird.f32 %v818
  %vm825 = vmor %vm823, %vm824
  %v826 = vsel %vm825, %v818, %v822
  %v827 = vand.u32 2147483647, %v817
  %vm828 = vcmp.eq.f32.partialorder %v827, 8.507059e+37
  %v829 = vand.u32 %v817, 2147483648
  %v830 = vor.u32 1.1754944e-38, %v829
  %v831 = vsel %vm828, %v830, %v826
  %v832 = vmul.f32 1.0, %v831
  %834 = vrot.lane.b32.xlu0 %v796, 32
  %v835 = vpop.permute.xlu0 %834
  %v837 = vadd.f32 %v810, %v835
  %v838 = vxor.u32 %v837, 2147483648
  %v839 = vmul.f32 %v838, 1.442695
  %v840 = vpow.pop %v839
  %v841 = vadd.f32 %v840, 1.0
  %v842 = vrcp.pop %v841
  %v843 = vmul.f32 %v841, %v842
  %v844 = vsub.f32 1.0, %v843
  %v845 = vmul.f32 %v842, %v844
  %v846 = vadd.f32 %v842, %v845
  %vm847 = vweird.f32 %v841
  %vm848 = vweird.f32 %v842
  %vm849 = vmor %vm847, %vm848
  %v850 = vsel %vm849, %v842, %v846
  %v851 = vand.u32 2147483647, %v841
  %vm852 = vcmp.eq.f32.partialorder %v851, 8.507059e+37
  %v853 = vand.u32 %v841, 2147483648
  %v854 = vor.u32 1.1754944e-38, %v853
  %v855 = vsel %vm852, %v854, %v850
  %v856 = vmul.f32 1.0, %v855
  %v857 = vmul.f32 %v832, %v792
  %859 = vrot.lane.b32.xlu0 %v786, 32
  %v860 = vpop.permute.xlu0 %859
  %v862 = vmul.f32 %v856, %v860
  %864 = vrot.lane.b32.xlu0 %v862, 96
  %v865 = vpop.permute.xlu0 %864
  %v867 = vadd.f32 %v857, %v865
  %v868 = vtanh.pop %v867
  %v869 = vpack.c.bf16 %v868, %v868
  %s870 = scalar_lea.vmem %s6, 28
  %871 = vst.msk [vmem:[%s870] sm:$0xf] %vm303, %v869
  %872 = vst.msk [vmem:[#allocation2] sm:$0xff] %vm89, %v868
  %873 = vst.msk [vmem:[%s212] sm:$0xff] %vm89, %v867
  // Predicated region
  $region30: #{ran_forward.4} parent=0 // pred_check
    %p874 = pneg %p27
  $region31: #{ran_forward.4} parent=0 // pred_check_branch
    %876 = sbr.rel (%p874) target = $region33
  $region32: #{ran_forward.4} parent=0 // pred_region
    %877 = vst.msk [vmem:[%s7] sm:$0xff] %vm89, %v868
    %878 = vst.msk [vmem:[%s8] sm:$0xff] %vm89, %v867
  $region33: #{ran_forward.4} parent=0 // pred_fallthru
    _
  // Predicated region
  $region34: #{ran_forward.4} parent=0 // pred_check
    _
  $region35: #{ran_forward.4} parent=0 // pred_check_branch
    %880 = sbr.rel (0) target = $region37
  $region36: #{ran_forward.4} parent=0 // pred_region
    _
  $region37: #{ran_forward.4} parent=0 // pred_fallthru
    _
  // Predicated region
  $region38: #{ran_forward.4} parent=0 // pred_check
    _
  $region39: #{ran_forward.4} parent=0 // pred_check_branch
    %882 = sbr.rel (0) target = $region41
  $region40: #{ran_forward.4} parent=0 // pred_region
    _
  $region41: #{ran_forward.4} parent=0 // pred_fallthru
    _
  // Predicated region
  $region42: #{ran_forward.4} parent=0 // pred_check
    _
  $region43: #{ran_forward.4} parent=0 // pred_check_branch
    %884 = sbr.rel (0) target = $region45
  $region44: #{ran_forward.4} parent=0 // pred_region
    _
  $region45: #{ran_forward.4} parent=0 // pred_fallthru
    _
  // Predicated region
  $region46: #{ran_forward.4} parent=0 // pred_check
    _
  $region47: #{ran_forward.4} parent=0 // pred_check_branch
    %886 = sbr.rel (0) target = $region49
  $region48: #{ran_forward.4} parent=0 // pred_region
    _
  $region49: #{ran_forward.4} parent=0 // pred_fallthru
    _
  // Predicated region
  $region50: #{ran_forward.4} parent=0 // pred_check
    _
  $region51: #{ran_forward.4} parent=0 // pred_check_branch
    %888 = sbr.rel (0) target = $region53
  $region52: #{ran_forward.4} parent=0 // pred_region
    _
  $region53: #{ran_forward.4} parent=0 // pred_fallthru
    _
  // Predicated region
  $region54: #{ran_forward.4} parent=0 // pred_check
    _
  $region55: #{ran_forward.4} parent=0 // pred_check_branch
    %890 = sbr.rel (0) target = $region57
  $region56: #{ran_forward.4} parent=0 // pred_region
    _
  $region57: #{ran_forward.4} parent=0 // pred_fallthru
    _

// kernel: ran_forward.3
$region0: #{ran_forward.3}
  #allocation0 [shape = 'u32[]', space=smem, size = 0x4, offset = 0x4, fixed_abs, tag = 'smem constant byte address 0x4 - core index']
  #allocation1 [shape = 'u32[72,128]{1,0:T(1,128)}', space=vmem, size = 0x9000, scoped, tag = 'internal scratch']
  #allocation2 [shape = 'f32[2,8,32]{2,1,0:T(8,128)}', space=vmem, size = 0x2000, scoped, tag = 'scratch operand']
  #allocation3 [shape = 'f32[64,32]{1,0:T(8,128)}', space=vmem, size = 0x8000, scoped, tag = 'scratch operand']
  #allocation4 [shape = 'f32[64,32]{1,0:T(8,128)}', space=vmem, size = 0x8000, scoped, tag = 'scratch operand']
  #allocation5 [shape = 'f32[64,32]{1,0:T(8,128)}', space=vmem, size = 0x8000, scoped, tag = 'scratch operand']
  %s0 = inlined_call_operand.vmem [shape: f32[8,8,32], index: 0, kind: input, shape index: {}]
  %s1 = inlined_call_operand.vmem [shape: f32[8,32], index: 1, kind: input, shape index: {}]
  %s2 = inlined_call_operand.vmem [shape: f32[8,32], index: 2, kind: input, shape index: {}]
  %s3 = inlined_call_operand.vmem [shape: bf16[32,96], index: 3, kind: input, shape index: {}]
  %s4 = inlined_call_operand.vmem [shape: f32[1,96], index: 4, kind: input, shape index: {}]
  %s5 = inlined_call_operand.vmem [shape: bf16[32,64], index: 5, kind: input, shape index: {}]
  %s6 = inlined_call_operand.vmem [shape: bf16[8,8,32], index: 6, kind: output, shape index: {0}]
  %s7 = inlined_call_operand.vmem [shape: f32[8,32], index: 7, kind: output, shape index: {1}]
  %s8 = inlined_call_operand.vmem [shape: f32[8,32], index: 8, kind: output, shape index: {2}]
  %9 = xla_tuple %s6, %s7, %s8
  %s10 = sld [smem:[#allocation0]]
  $region58: #{ran_forward.3} parent=0
    _
  %s12 = ssub.s32 1, %s10
  %s13 = scalar_select 0, %s12, %s10
  // Predicated region
  $region2: #{ran_forward.3} parent=0 // pred_check
    _
  $region3: #{ran_forward.3} parent=0 // pred_check_branch
    %15 = sbr.rel (0) target = $region5
  $region4: #{ran_forward.3} parent=0 // pred_region
    _
  $region5: #{ran_forward.3} parent=0 // pred_fallthru
    _
  // Predicated region
  $region6: #{ran_forward.3} parent=0 // pred_check
    _
  $region7: #{ran_forward.3} parent=0 // pred_check_branch
    %17 = sbr.rel (0) target = $region9
  $region8: #{ran_forward.3} parent=0 // pred_region
    _
  $region9: #{ran_forward.3} parent=0 // pred_fallthru
    _
  // Predicated region
  $region10: #{ran_forward.3} parent=0 // pred_check
    _
  $region11: #{ran_forward.3} parent=0 // pred_check_branch
    %19 = sbr.rel (0) target = $region13
  $region12: #{ran_forward.3} parent=0 // pred_region
    _
  $region13: #{ran_forward.3} parent=0 // pred_fallthru
    _
  // Predicated region
  $region14: #{ran_forward.3} parent=0 // pred_check
    _
  $region15: #{ran_forward.3} parent=0 // pred_check_branch
    %21 = sbr.rel (0) target = $region17
  $region16: #{ran_forward.3} parent=0 // pred_region
    _
  $region17: #{ran_forward.3} parent=0 // pred_fallthru
    _
  // Predicated region
  $region18: #{ran_forward.3} parent=0 // pred_check
    _
  $region19: #{ran_forward.3} parent=0 // pred_check_branch
    %23 = sbr.rel (0) target = $region21
  $region20: #{ran_forward.3} parent=0 // pred_region
    _
  $region21: #{ran_forward.3} parent=0 // pred_fallthru
    _
  // Predicated region
  $region22: #{ran_forward.3} parent=0 // pred_check
    _
  $region23: #{ran_forward.3} parent=0 // pred_check_branch
    %25 = sbr.rel (0) target = $region25
  $region24: #{ran_forward.3} parent=0 // pred_region
    _
  $region25: #{ran_forward.3} parent=0 // pred_fallthru
    _
  %p27 = scmp.eq.s32.totalorder 0, 0
  // Predicated region
  $region26: #{ran_forward.3} parent=0 // pred_check
    %p28 = pneg %p27
  $region27: #{ran_forward.3} parent=0 // pred_check_branch
    %30 = sbr.rel (%p28) target = $region29
  $region28: #{ran_forward.3} parent=0 // pred_region
    %v31 = vld [vmem:[%s1] sm:$0xff]
    %vm32 = vcmask 261120
    %33 = vst.msk [vmem:[#allocation2] sm:$0xff] %vm32, %v31
    %v34 = vld [vmem:[%s2] sm:$0xff]
    %s35 = scalar_lea.vmem [#allocation2], 8
    %36 = vst.msk [vmem:[%s35] sm:$0xff] %vm32, %v34
  $region29: #{ran_forward.3} parent=0 // pred_fallthru
    _
  %v37 = vld [vmem:[%s5] sm:$0xf]
  %v38 = vld [vmem:[%s5 + $0x4] sm:$0xf]
  %v39 = vld [vmem:[%s5 + $0x8] sm:$0xf]
  %v40 = vld [vmem:[%s5 + $0xc] sm:$0xf]
  %v41 = vld [vmem:[%s3] sm:$0xf]
  %v42 = vld [vmem:[%s3 + $0x4] sm:$0xf]
  %v43 = vld [vmem:[%s3 + $0x8] sm:$0xf]
  %v44 = vld [vmem:[%s3 + $0xc] sm:$0xf]
  %v45 = vld [vmem:[%s0] sm:$0xff]
  %v46 = vld [vmem:[%s0 + $0x8] sm:$0xff]
  %v47 = vld [vmem:[%s0 + $0x10] sm:$0xff]
  %v48 = vld [vmem:[%s0 + $0x18] sm:$0xff]
  %v49 = vld [vmem:[%s0 + $0x20] sm:$0xff]
  %v50 = vld [vmem:[%s0 + $0x28] sm:$0xff]
  %v51 = vld [vmem:[%s0 + $0x30] sm:$0xff]
  %v52 = vld [vmem:[%s0 + $0x38] sm:$0xff]
  %v53 = vpack.c.bf16 %v46, %v45
  %v54 = vpack.c.bf16 %v48, %v47
  %v55 = vpack.c.bf16 %v50, %v49
  %v56 = vpack.c.bf16 %v52, %v51
  %v57 = vld [vmem:[%s4] sm:$0x1]
  %v59 = vperm.slane %v57, 0
  %v65 = vunpack.c.l.b16 %v41
  %v66 = vunpack.c.l.b16 %v42
  %v67 = vunpack.c.l.b16 %v43
  %v68 = vunpack.c.l.b16 %v44
  %v69 = vpack.c.b16 %v66, %v65
  %v70 = vpack.c.b16 %v68, %v67
  %vm73 = vcmask 261120
  %v75 = vsel %vm73, %v53, 0
  %v78 = vsel %vm73, %v54, 0
  %v81 = vsel %vm73, %v55, 0
  %v84 = vsel %vm73, %v56, 0
  %86 = vmatpush.bf16.msra.mxu0 0
  %87 = vmatpush.bf16.msra.mxu0 0
  %88 = vmatpush.bf16.msra.mxu0 0
  %89 = vmatpush.bf16.msra.mxu0 0
  %90 = vmatpush.bf16.msra.mxu0 0
  %91 = vmatpush.bf16.msra.mxu0 0
  %92 = vmatpush.bf16.msra.mxu0 %v70
  %93 = vmatpush.bf16.msra.mxu0 %v69
  %94 = vmatmul.bf16.gmra.mxu0 %v75
  %v95 = vpop.f32.mrf.mxu0
  %v96 = vadd.f32 %v59, %v95
  %v97 = vpop.f32.mrf.mxu0
  %v98 = vadd.f32 %v59, %v97
  %99 = vmatmul.bf16.gmra.mxu0 %v78
  %v100 = vpop.f32.mrf.mxu0
  %v101 = vadd.f32 %v59, %v100
  %v102 = vpop.f32.mrf.mxu0
  %v103 = vadd.f32 %v59, %v102
  %104 = vmatmul.bf16.gmra.mxu0 %v81
  %v105 = vpop.f32.mrf.mxu0
  %v106 = vadd.f32 %v59, %v105
  %v107 = vpop.f32.mrf.mxu0
  %v108 = vadd.f32 %v59, %v107
  %109 = vmatmul.bf16.gmra.mxu0 %v84
  %v110 = vpop.f32.mrf.mxu0
  %v111 = vadd.f32 %v59, %v110
  %v112 = vpop.f32.mrf.mxu0
  %v113 = vadd.f32 %v59, %v112
  %114 = vdwg.mxu0
  %115 = vst.msk [vmem:[#allocation3] sm:$0xff] %vm73, %v96
  %116 = vst.msk [vmem:[#allocation3 + $0x8] sm:$0xff] %vm73, %v98
  %117 = vst.msk [vmem:[#allocation3 + $0x10] sm:$0xff] %vm73, %v101
  %118 = vst.msk [vmem:[#allocation3 + $0x18] sm:$0xff] %vm73, %v103
  %119 = vst.msk [vmem:[#allocation3 + $0x20] sm:$0xff] %vm73, %v106
  %120 = vst.msk [vmem:[#allocation3 + $0x28] sm:$0xff] %vm73, %v108
  %121 = vst.msk [vmem:[#allocation3 + $0x30] sm:$0xff] %vm73, %v111
  %122 = vst.msk [vmem:[#allocation3 + $0x38] sm:$0xff] %vm73, %v113
  %131 = vrot.lane.b32.xlu0 %v96, 96
  %v132 = vpop.permute.xlu0 %131
  %133 = vrot.lane.b32.xlu0 %v98, 96
  %v134 = vpop.permute.xlu0 %133
  %135 = vrot.lane.b32.xlu0 %v101, 96
  %v136 = vpop.permute.xlu0 %135
  %137 = vrot.lane.b32.xlu0 %v103, 96
  %v138 = vpop.permute.xlu0 %137
  %139 = vrot.lane.b32.xlu0 %v106, 96
  %v140 = vpop.permute.xlu0 %139
  %141 = vrot.lane.b32.xlu0 %v108, 96
  %v142 = vpop.permute.xlu0 %141
  %143 = vrot.lane.b32.xlu0 %v111, 96
  %v144 = vpop.permute.xlu0 %143
  %145 = vrot.lane.b32.xlu0 %v113, 96
  %v146 = vpop.permute.xlu0 %145
  %155 = vst.msk [vmem:[#allocation4] sm:$0xff] %vm73, %v132
  %156 = vst.msk [vmem:[#allocation4 + $0x8] sm:$0xff] %vm73, %v134
  %157 = vst.msk [vmem:[#allocation4 + $0x10] sm:$0xff] %vm73, %v136
  %158 = vst.msk [vmem:[#allocation4 + $0x18] sm:$0xff] %vm73, %v138
  %159 = vst.msk [vmem:[#allocation4 + $0x20] sm:$0xff] %vm73, %v140
  %160 = vst.msk [vmem:[#allocation4 + $0x28] sm:$0xff] %vm73, %v142
  %161 = vst.msk [vmem:[#allocation4 + $0x30] sm:$0xff] %vm73, %v144
  %162 = vst.msk [vmem:[#allocation4 + $0x38] sm:$0xff] %vm73, %v146
  %163 = vrot.lane.b32.xlu0 %v96, 64
  %v164 = vpop.permute.xlu0 %163
  %165 = vrot.lane.b32.xlu0 %v98, 64
  %v166 = vpop.permute.xlu0 %165
  %167 = vrot.lane.b32.xlu0 %v101, 64
  %v168 = vpop.permute.xlu0 %167
  %169 = vrot.lane.b32.xlu0 %v103, 64
  %v170 = vpop.permute.xlu0 %169
  %171 = vrot.lane.b32.xlu0 %v106, 64
  %v172 = vpop.permute.xlu0 %171
  %173 = vrot.lane.b32.xlu0 %v108, 64
  %v174 = vpop.permute.xlu0 %173
  %175 = vrot.lane.b32.xlu0 %v111, 64
  %v176 = vpop.permute.xlu0 %175
  %177 = vrot.lane.b32.xlu0 %v113, 64
  %v178 = vpop.permute.xlu0 %177
  %187 = vst.msk [vmem:[#allocation5] sm:$0xff] %vm73, %v164
  %188 = vst.msk [vmem:[#allocation5 + $0x8] sm:$0xff] %vm73, %v166
  %189 = vst.msk [vmem:[#allocation5 + $0x10] sm:$0xff] %vm73, %v168
  %190 = vst.msk [vmem:[#allocation5 + $0x18] sm:$0xff] %vm73, %v170
  %191 = vst.msk [vmem:[#allocation5 + $0x20] sm:$0xff] %vm73, %v172
  %192 = vst.msk [vmem:[#allocation5 + $0x28] sm:$0xff] %vm73, %v174
  %193 = vst.msk [vmem:[#allocation5 + $0x30] sm:$0xff] %vm73, %v176
  %194 = vst.msk [vmem:[#allocation5 + $0x38] sm:$0xff] %vm73, %v178
  %v195 = vld [vmem:[#allocation2] sm:$0xff]
  %s196 = scalar_lea.vmem [#allocation2], 8
  %v197 = vld [vmem:[%s196] sm:$0xff]
  %v198 = vld [vmem:[#allocation3] sm:$0xff]
  %v199 = vld [vmem:[#allocation4] sm:$0xff]
  %v200 = vld [vmem:[#allocation5] sm:$0xff]
  %v201 = vpack.c.bf16 %v195, %v195
  %v206 = vunpack.c.l.b16 %v37
  %v207 = vunpack.c.l.b16 %v38
  %v208 = vunpack.c.l.b16 %v39
  %v209 = vunpack.c.l.b16 %v40
  %v210 = vpack.c.b16 %v207, %v206
  %v211 = vpack.c.b16 %v209, %v208
  %v215 = vsel %vm73, %v201, 0
  %217 = vmatpush.bf16.msra.mxu0 0
  %218 = vmatpush.bf16.msra.mxu0 0
  %219 = vmatpush.bf16.msra.mxu0 0
  %220 = vmatpush.bf16.msra.mxu0 0
  %221 = vmatpush.bf16.msra.mxu0 0
  %222 = vmatpush.bf16.msra.mxu0 0
  %223 = vmatpush.bf16.msra.mxu0 %v211
  %224 = vmatpush.bf16.msra.mxu0 %v210
  %225 = vmatmul.bf16.gmra.mxu0 %v215
  %v226 = vpop.f32.mrf.mxu0
  %v227 = vadd.f32 0.0, %v226
  %v228 = vpop.f32.mrf.mxu0
  %229 = vdwg.mxu0
  %v230 = vadd.f32 %v227, %v199
  %v231 = vxor.u32 %v230, 2147483648
  %v232 = vmul.f32 %v231, 1.442695
  %v233 = vpow.pop %v232
  %v234 = vadd.f32 %v233, 1.0
  %v235 = vrcp.pop %v234
  %v236 = vmul.f32 %v234, %v235
  %v237 = vsub.f32 1.0, %v236
  %v238 = vmul.f32 %v235, %v237
  %v239 = vadd.f32 %v235, %v238
  %vm240 = vweird.f32 %v234
  %vm241 = vweird.f32 %v235
  %vm242 = vmor %vm240, %vm241
  %v243 = vsel %vm242, %v235, %v239
  %v244 = vand.u32 2147483647, %v234
  %vm245 = vcmp.eq.f32.partialorder %v244, 8.507059e+37
  %v246 = vand.u32 %v234, 2147483648
  %v247 = vor.u32 1.1754944e-38, %v246
  %v248 = vsel %vm245, %v247, %v243
  %v249 = vmul.f32 1.0, %v248
  %251 = vrot.lane.b32.xlu0 %v200, 32
  %v252 = vpop.permute.xlu0 %251
  %v254 = vadd.f32 %v227, %v252
  %v255 = vxor.u32 %v254, 2147483648
  %v256 = vmul.f32 %v255, 1.442695
  %v257 = vpow.pop %v256
  %v258 = vadd.f32 %v257, 1.0
  %v259 = vrcp.pop %v258
  %v260 = vmul.f32 %v258, %v259
  %v261 = vsub.f32 1.0, %v260
  %v262 = vmul.f32 %v259, %v261
  %v263 = vadd.f32 %v259, %v262
  %vm264 = vweird.f32 %v258
  %vm265 = vweird.f32 %v259
  %vm266 = vmor %vm264, %vm265
  %v267 = vsel %vm266, %v259, %v263
  %v268 = vand.u32 2147483647, %v258
  %vm269 = vcmp.eq.f32.partialorder %v268, 8.507059e+37
  %v270 = vand.u32 %v258, 2147483648
  %v271 = vor.u32 1.1754944e-38, %v270
  %v272 = vsel %vm269, %v271, %v267
  %v273 = vmul.f32 1.0, %v272
  %v274 = vmul.f32 %v249, %v198
  %276 = vrot.lane.b32.xlu0 %v197, 32
  %v277 = vpop.permute.xlu0 %276
  %v279 = vmul.f32 %v273, %v277
  %281 = vrot.lane.b32.xlu0 %v279, 96
  %v282 = vpop.permute.xlu0 %281
  %v284 = vadd.f32 %v274, %v282
  %v285 = vtanh.pop %v284
  %v286 = vpack.c.bf16 %v285, %v285
  %vm287 = vcmask 257024
  %288 = vst.msk [vmem:[%s6] sm:$0xf] %vm287, %v286
  %s289 = scalar_lea.vmem [#allocation3], 8
  %v290 = vld [vmem:[%s289] sm:$0xff]
  %s291 = scalar_lea.vmem [#allocation4], 8
  %v292 = vld [vmem:[%s291] sm:$0xff]
  %s293 = scalar_lea.vmem [#allocation5], 8
  %v294 = vld [vmem:[%s293] sm:$0xff]
  %v296 = vsel %vm73, %v286, 0
  %298 = vmatpush.bf16.msra.mxu0 0
  %299 = vmatpush.bf16.msra.mxu0 0
  %300 = vmatpush.bf16.msra.mxu0 0
  %301 = vmatpush.bf16.msra.mxu0 0
  %302 = vmatpush.bf16.msra.mxu0 0
  %303 = vmatpush.bf16.msra.mxu0 0
  %304 = vmatpush.bf16.msra.mxu0 %v211
  %305 = vmatpush.bf16.msra.mxu0 %v210
  %306 = vmatmul.bf16.gmra.mxu0 %v296
  %v307 = vpop.f32.mrf.mxu0
  %v308 = vadd.f32 0.0, %v307
  %v309 = vpop.f32.mrf.mxu0
  %310 = vdwg.mxu0
  %v311 = vadd.f32 %v308, %v292
  %v312 = vxor.u32 %v311, 2147483648
  %v313 = vmul.f32 %v312, 1.442695
  %v314 = vpow.pop %v313
  %v315 = vadd.f32 %v314, 1.0
  %v316 = vrcp.pop %v315
  %v317 = vmul.f32 %v315, %v316
  %v318 = vsub.f32 1.0, %v317
  %v319 = vmul.f32 %v316, %v318
  %v320 = vadd.f32 %v316, %v319
  %vm321 = vweird.f32 %v315
  %vm322 = vweird.f32 %v316
  %vm323 = vmor %vm321, %vm322
  %v324 = vsel %vm323, %v316, %v320
  %v325 = vand.u32 2147483647, %v315
  %vm326 = vcmp.eq.f32.partialorder %v325, 8.507059e+37
  %v327 = vand.u32 %v315, 2147483648
  %v328 = vor.u32 1.1754944e-38, %v327
  %v329 = vsel %vm326, %v328, %v324
  %v330 = vmul.f32 1.0, %v329
  %332 = vrot.lane.b32.xlu0 %v294, 32
  %v333 = vpop.permute.xlu0 %332
  %v335 = vadd.f32 %v308, %v333
  %v336 = vxor.u32 %v335, 2147483648
  %v337 = vmul.f32 %v336, 1.442695
  %v338 = vpow.pop %v337
  %v339 = vadd.f32 %v338, 1.0
  %v340 = vrcp.pop %v339
  %v341 = vmul.f32 %v339, %v340
  %v342 = vsub.f32 1.0, %v341
  %v343 = vmul.f32 %v340, %v342
  %v344 = vadd.f32 %v340, %v343
  %vm345 = vweird.f32 %v339
  %vm346 = vweird.f32 %v340
  %vm347 = vmor %vm345, %vm346
  %v348 = vsel %vm347, %v340, %v344
  %v349 = vand.u32 2147483647, %v339
  %vm350 = vcmp.eq.f32.partialorder %v349, 8.507059e+37
  %v351 = vand.u32 %v339, 2147483648
  %v352 = vor.u32 1.1754944e-38, %v351
  %v353 = vsel %vm350, %v352, %v348
  %v354 = vmul.f32 1.0, %v353
  %v355 = vmul.f32 %v330, %v290
  %357 = vrot.lane.b32.xlu0 %v284, 32
  %v358 = vpop.permute.xlu0 %357
  %v360 = vmul.f32 %v354, %v358
  %362 = vrot.lane.b32.xlu0 %v360, 96
  %v363 = vpop.permute.xlu0 %362
  %v365 = vadd.f32 %v355, %v363
  %v366 = vtanh.pop %v365
  %v367 = vpack.c.bf16 %v366, %v366
  %s368 = scalar_lea.vmem %s6, 4
  %369 = vst.msk [vmem:[%s368] sm:$0xf] %vm287, %v367
  %s370 = scalar_lea.vmem [#allocation3], 16
  %v371 = vld [vmem:[%s370] sm:$0xff]
  %s372 = scalar_lea.vmem [#allocation4], 16
  %v373 = vld [vmem:[%s372] sm:$0xff]
  %s374 = scalar_lea.vmem [#allocation5], 16
  %v375 = vld [vmem:[%s374] sm:$0xff]
  %v377 = vsel %vm73, %v367, 0
  %379 = vmatpush.bf16.msra.mxu0 0
  %380 = vmatpush.bf16.msra.mxu0 0
  %381 = vmatpush.bf16.msra.mxu0 0
  %382 = vmatpush.bf16.msra.mxu0 0
  %383 = vmatpush.bf16.msra.mxu0 0
  %384 = vmatpush.bf16.msra.mxu0 0
  %385 = vmatpush.bf16.msra.mxu0 %v211
  %386 = vmatpush.bf16.msra.mxu0 %v210
  %387 = vmatmul.bf16.gmra.mxu0 %v377
  %v388 = vpop.f32.mrf.mxu0
  %v389 = vadd.f32 0.0, %v388
  %v390 = vpop.f32.mrf.mxu0
  %391 = vdwg.mxu0
  %v392 = vadd.f32 %v389, %v373
  %v393 = vxor.u32 %v392, 2147483648
  %v394 = vmul.f32 %v393, 1.442695
  %v395 = vpow.pop %v394
  %v396 = vadd.f32 %v395, 1.0
  %v397 = vrcp.pop %v396
  %v398 = vmul.f32 %v396, %v397
  %v399 = vsub.f32 1.0, %v398
  %v400 = vmul.f32 %v397, %v399
  %v401 = vadd.f32 %v397, %v400
  %vm402 = vweird.f32 %v396
  %vm403 = vweird.f32 %v397
  %vm404 = vmor %vm402, %vm403
  %v405 = vsel %vm404, %v397, %v401
  %v406 = vand.u32 2147483647, %v396
  %vm407 = vcmp.eq.f32.partialorder %v406, 8.507059e+37
  %v408 = vand.u32 %v396, 2147483648
  %v409 = vor.u32 1.1754944e-38, %v408
  %v410 = vsel %vm407, %v409, %v405
  %v411 = vmul.f32 1.0, %v410
  %413 = vrot.lane.b32.xlu0 %v375, 32
  %v414 = vpop.permute.xlu0 %413
  %v416 = vadd.f32 %v389, %v414
  %v417 = vxor.u32 %v416, 2147483648
  %v418 = vmul.f32 %v417, 1.442695
  %v419 = vpow.pop %v418
  %v420 = vadd.f32 %v419, 1.0
  %v421 = vrcp.pop %v420
  %v422 = vmul.f32 %v420, %v421
  %v423 = vsub.f32 1.0, %v422
  %v424 = vmul.f32 %v421, %v423
  %v425 = vadd.f32 %v421, %v424
  %vm426 = vweird.f32 %v420
  %vm427 = vweird.f32 %v421
  %vm428 = vmor %vm426, %vm427
  %v429 = vsel %vm428, %v421, %v425
  %v430 = vand.u32 2147483647, %v420
  %vm431 = vcmp.eq.f32.partialorder %v430, 8.507059e+37
  %v432 = vand.u32 %v420, 2147483648
  %v433 = vor.u32 1.1754944e-38, %v432
  %v434 = vsel %vm431, %v433, %v429
  %v435 = vmul.f32 1.0, %v434
  %v436 = vmul.f32 %v411, %v371
  %438 = vrot.lane.b32.xlu0 %v365, 32
  %v439 = vpop.permute.xlu0 %438
  %v441 = vmul.f32 %v435, %v439
  %443 = vrot.lane.b32.xlu0 %v441, 96
  %v444 = vpop.permute.xlu0 %443
  %v446 = vadd.f32 %v436, %v444
  %v447 = vtanh.pop %v446
  %v448 = vpack.c.bf16 %v447, %v447
  %s449 = scalar_lea.vmem %s6, 8
  %450 = vst.msk [vmem:[%s449] sm:$0xf] %vm287, %v448
  %s451 = scalar_lea.vmem [#allocation3], 24
  %v452 = vld [vmem:[%s451] sm:$0xff]
  %s453 = scalar_lea.vmem [#allocation4], 24
  %v454 = vld [vmem:[%s453] sm:$0xff]
  %s455 = scalar_lea.vmem [#allocation5], 24
  %v456 = vld [vmem:[%s455] sm:$0xff]
  %v458 = vsel %vm73, %v448, 0
  %460 = vmatpush.bf16.msra.mxu0 0
  %461 = vmatpush.bf16.msra.mxu0 0
  %462 = vmatpush.bf16.msra.mxu0 0
  %463 = vmatpush.bf16.msra.mxu0 0
  %464 = vmatpush.bf16.msra.mxu0 0
  %465 = vmatpush.bf16.msra.mxu0 0
  %466 = vmatpush.bf16.msra.mxu0 %v211
  %467 = vmatpush.bf16.msra.mxu0 %v210
  %468 = vmatmul.bf16.gmra.mxu0 %v458
  %v469 = vpop.f32.mrf.mxu0
  %v470 = vadd.f32 0.0, %v469
  %v471 = vpop.f32.mrf.mxu0
  %472 = vdwg.mxu0
  %v473 = vadd.f32 %v470, %v454
  %v474 = vxor.u32 %v473, 2147483648
  %v475 = vmul.f32 %v474, 1.442695
  %v476 = vpow.pop %v475
  %v477 = vadd.f32 %v476, 1.0
  %v478 = vrcp.pop %v477
  %v479 = vmul.f32 %v477, %v478
  %v480 = vsub.f32 1.0, %v479
  %v481 = vmul.f32 %v478, %v480
  %v482 = vadd.f32 %v478, %v481
  %vm483 = vweird.f32 %v477
  %vm484 = vweird.f32 %v478
  %vm485 = vmor %vm483, %vm484
  %v486 = vsel %vm485, %v478, %v482
  %v487 = vand.u32 2147483647, %v477
  %vm488 = vcmp.eq.f32.partialorder %v487, 8.507059e+37
  %v489 = vand.u32 %v477, 2147483648
  %v490 = vor.u32 1.1754944e-38, %v489
  %v491 = vsel %vm488, %v490, %v486
  %v492 = vmul.f32 1.0, %v491
  %494 = vrot.lane.b32.xlu0 %v456, 32
  %v495 = vpop.permute.xlu0 %494
  %v497 = vadd.f32 %v470, %v495
  %v498 = vxor.u32 %v497, 2147483648
  %v499 = vmul.f32 %v498, 1.442695
  %v500 = vpow.pop %v499
  %v501 = vadd.f32 %v500, 1.0
  %v502 = vrcp.pop %v501
  %v503 = vmul.f32 %v501, %v502
  %v504 = vsub.f32 1.0, %v503
  %v505 = vmul.f32 %v502, %v504
  %v506 = vadd.f32 %v502, %v505
  %vm507 = vweird.f32 %v501
  %vm508 = vweird.f32 %v502
  %vm509 = vmor %vm507, %vm508
  %v510 = vsel %vm509, %v502, %v506
  %v511 = vand.u32 2147483647, %v501
  %vm512 = vcmp.eq.f32.partialorder %v511, 8.507059e+37
  %v513 = vand.u32 %v501, 2147483648
  %v514 = vor.u32 1.1754944e-38, %v513
  %v515 = vsel %vm512, %v514, %v510
  %v516 = vmul.f32 1.0, %v515
  %v517 = vmul.f32 %v492, %v452
  %519 = vrot.lane.b32.xlu0 %v446, 32
  %v520 = vpop.permute.xlu0 %519
  %v522 = vmul.f32 %v516, %v520
  %524 = vrot.lane.b32.xlu0 %v522, 96
  %v525 = vpop.permute.xlu0 %524
  %v527 = vadd.f32 %v517, %v525
  %v528 = vtanh.pop %v527
  %v529 = vpack.c.bf16 %v528, %v528
  %s530 = scalar_lea.vmem %s6, 12
  %531 = vst.msk [vmem:[%s530] sm:$0xf] %vm287, %v529
  %s532 = scalar_lea.vmem [#allocation3], 32
  %v533 = vld [vmem:[%s532] sm:$0xff]
  %s534 = scalar_lea.vmem [#allocation4], 32
  %v535 = vld [vmem:[%s534] sm:$0xff]
  %s536 = scalar_lea.vmem [#allocation5], 32
  %v537 = vld [vmem:[%s536] sm:$0xff]
  %v539 = vsel %vm73, %v529, 0
  %541 = vmatpush.bf16.msra.mxu0 0
  %542 = vmatpush.bf16.msra.mxu0 0
  %543 = vmatpush.bf16.msra.mxu0 0
  %544 = vmatpush.bf16.msra.mxu0 0
  %545 = vmatpush.bf16.msra.mxu0 0
  %546 = vmatpush.bf16.msra.mxu0 0
  %547 = vmatpush.bf16.msra.mxu0 %v211
  %548 = vmatpush.bf16.msra.mxu0 %v210
  %549 = vmatmul.bf16.gmra.mxu0 %v539
  %v550 = vpop.f32.mrf.mxu0
  %v551 = vadd.f32 0.0, %v550
  %v552 = vpop.f32.mrf.mxu0
  %553 = vdwg.mxu0
  %v554 = vadd.f32 %v551, %v535
  %v555 = vxor.u32 %v554, 2147483648
  %v556 = vmul.f32 %v555, 1.442695
  %v557 = vpow.pop %v556
  %v558 = vadd.f32 %v557, 1.0
  %v559 = vrcp.pop %v558
  %v560 = vmul.f32 %v558, %v559
  %v561 = vsub.f32 1.0, %v560
  %v562 = vmul.f32 %v559, %v561
  %v563 = vadd.f32 %v559, %v562
  %vm564 = vweird.f32 %v558
  %vm565 = vweird.f32 %v559
  %vm566 = vmor %vm564, %vm565
  %v567 = vsel %vm566, %v559, %v563
  %v568 = vand.u32 2147483647, %v558
  %vm569 = vcmp.eq.f32.partialorder %v568, 8.507059e+37
  %v570 = vand.u32 %v558, 2147483648
  %v571 = vor.u32 1.1754944e-38, %v570
  %v572 = vsel %vm569, %v571, %v567
  %v573 = vmul.f32 1.0, %v572
  %575 = vrot.lane.b32.xlu0 %v537, 32
  %v576 = vpop.permute.xlu0 %575
  %v578 = vadd.f32 %v551, %v576
  %v579 = vxor.u32 %v578, 2147483648
  %v580 = vmul.f32 %v579, 1.442695
  %v581 = vpow.pop %v580
  %v582 = vadd.f32 %v581, 1.0
  %v583 = vrcp.pop %v582
  %v584 = vmul.f32 %v582, %v583
  %v585 = vsub.f32 1.0, %v584
  %v586 = vmul.f32 %v583, %v585
  %v587 = vadd.f32 %v583, %v586
  %vm588 = vweird.f32 %v582
  %vm589 = vweird.f32 %v583
  %vm590 = vmor %vm588, %vm589
  %v591 = vsel %vm590, %v583, %v587
  %v592 = vand.u32 2147483647, %v582
  %vm593 = vcmp.eq.f32.partialorder %v592, 8.507059e+37
  %v594 = vand.u32 %v582, 2147483648
  %v595 = vor.u32 1.1754944e-38, %v594
  %v596 = vsel %vm593, %v595, %v591
  %v597 = vmul.f32 1.0, %v596
  %v598 = vmul.f32 %v573, %v533
  %600 = vrot.lane.b32.xlu0 %v527, 32
  %v601 = vpop.permute.xlu0 %600
  %v603 = vmul.f32 %v597, %v601
  %605 = vrot.lane.b32.xlu0 %v603, 96
  %v606 = vpop.permute.xlu0 %605
  %v608 = vadd.f32 %v598, %v606
  %v609 = vtanh.pop %v608
  %v610 = vpack.c.bf16 %v609, %v609
  %s611 = scalar_lea.vmem %s6, 16
  %612 = vst.msk [vmem:[%s611] sm:$0xf] %vm287, %v610
  %s613 = scalar_lea.vmem [#allocation3], 40
  %v614 = vld [vmem:[%s613] sm:$0xff]
  %s615 = scalar_lea.vmem [#allocation4], 40
  %v616 = vld [vmem:[%s615] sm:$0xff]
  %s617 = scalar_lea.vmem [#allocation5], 40
  %v618 = vld [vmem:[%s617] sm:$0xff]
  %v620 = vsel %vm73, %v610, 0
  %622 = vmatpush.bf16.msra.mxu0 0
  %623 = vmatpush.bf16.msra.mxu0 0
  %624 = vmatpush.bf16.msra.mxu0 0
  %625 = vmatpush.bf16.msra.mxu0 0
  %626 = vmatpush.bf16.msra.mxu0 0
  %627 = vmatpush.bf16.msra.mxu0 0
  %628 = vmatpush.bf16.msra.mxu0 %v211
  %629 = vmatpush.bf16.msra.mxu0 %v210
  %630 = vmatmul.bf16.gmra.mxu0 %v620
  %v631 = vpop.f32.mrf.mxu0
  %v632 = vadd.f32 0.0, %v631
  %v633 = vpop.f32.mrf.mxu0
  %634 = vdwg.mxu0
  %v635 = vadd.f32 %v632, %v616
  %v636 = vxor.u32 %v635, 2147483648
  %v637 = vmul.f32 %v636, 1.442695
  %v638 = vpow.pop %v637
  %v639 = vadd.f32 %v638, 1.0
  %v640 = vrcp.pop %v639
  %v641 = vmul.f32 %v639, %v640
  %v642 = vsub.f32 1.0, %v641
  %v643 = vmul.f32 %v640, %v642
  %v644 = vadd.f32 %v640, %v643
  %vm645 = vweird.f32 %v639
  %vm646 = vweird.f32 %v640
  %vm647 = vmor %vm645, %vm646
  %v648 = vsel %vm647, %v640, %v644
  %v649 = vand.u32 2147483647, %v639
  %vm650 = vcmp.eq.f32.partialorder %v649, 8.507059e+37
  %v651 = vand.u32 %v639, 2147483648
  %v652 = vor.u32 1.1754944e-38, %v651
  %v653 = vsel %vm650, %v652, %v648
  %v654 = vmul.f32 1.0, %v653
  %656 = vrot.lane.b32.xlu0 %v618, 32
  %v657 = vpop.permute.xlu0 %656
  %v659 = vadd.f32 %v632, %v657
  %v660 = vxor.u32 %v659, 2147483648
  %v661 = vmul.f32 %v660, 1.442695
  %v662 = vpow.pop %v661
  %v663 = vadd.f32 %v662, 1.0
  %v664 = vrcp.pop %v663
  %v665 = vmul.f32 %v663, %v664
  %v666 = vsub.f32 1.0, %v665
  %v667 = vmul.f32 %v664, %v666
  %v668 = vadd.f32 %v664, %v667
  %vm669 = vweird.f32 %v663
  %vm670 = vweird.f32 %v664
  %vm671 = vmor %vm669, %vm670
  %v672 = vsel %vm671, %v664, %v668
  %v673 = vand.u32 2147483647, %v663
  %vm674 = vcmp.eq.f32.partialorder %v673, 8.507059e+37
  %v675 = vand.u32 %v663, 2147483648
  %v676 = vor.u32 1.1754944e-38, %v675
  %v677 = vsel %vm674, %v676, %v672
  %v678 = vmul.f32 1.0, %v677
  %v679 = vmul.f32 %v654, %v614
  %681 = vrot.lane.b32.xlu0 %v608, 32
  %v682 = vpop.permute.xlu0 %681
  %v684 = vmul.f32 %v678, %v682
  %686 = vrot.lane.b32.xlu0 %v684, 96
  %v687 = vpop.permute.xlu0 %686
  %v689 = vadd.f32 %v679, %v687
  %v690 = vtanh.pop %v689
  %v691 = vpack.c.bf16 %v690, %v690
  %s692 = scalar_lea.vmem %s6, 20
  %693 = vst.msk [vmem:[%s692] sm:$0xf] %vm287, %v691
  %s694 = scalar_lea.vmem [#allocation3], 48
  %v695 = vld [vmem:[%s694] sm:$0xff]
  %s696 = scalar_lea.vmem [#allocation4], 48
  %v697 = vld [vmem:[%s696] sm:$0xff]
  %s698 = scalar_lea.vmem [#allocation5], 48
  %v699 = vld [vmem:[%s698] sm:$0xff]
  %v701 = vsel %vm73, %v691, 0
  %703 = vmatpush.bf16.msra.mxu0 0
  %704 = vmatpush.bf16.msra.mxu0 0
  %705 = vmatpush.bf16.msra.mxu0 0
  %706 = vmatpush.bf16.msra.mxu0 0
  %707 = vmatpush.bf16.msra.mxu0 0
  %708 = vmatpush.bf16.msra.mxu0 0
  %709 = vmatpush.bf16.msra.mxu0 %v211
  %710 = vmatpush.bf16.msra.mxu0 %v210
  %711 = vmatmul.bf16.gmra.mxu0 %v701
  %v712 = vpop.f32.mrf.mxu0
  %v713 = vadd.f32 0.0, %v712
  %v714 = vpop.f32.mrf.mxu0
  %715 = vdwg.mxu0
  %v716 = vadd.f32 %v713, %v697
  %v717 = vxor.u32 %v716, 2147483648
  %v718 = vmul.f32 %v717, 1.442695
  %v719 = vpow.pop %v718
  %v720 = vadd.f32 %v719, 1.0
  %v721 = vrcp.pop %v720
  %v722 = vmul.f32 %v720, %v721
  %v723 = vsub.f32 1.0, %v722
  %v724 = vmul.f32 %v721, %v723
  %v725 = vadd.f32 %v721, %v724
  %vm726 = vweird.f32 %v720
  %vm727 = vweird.f32 %v721
  %vm728 = vmor %vm726, %vm727
  %v729 = vsel %vm728, %v721, %v725
  %v730 = vand.u32 2147483647, %v720
  %vm731 = vcmp.eq.f32.partialorder %v730, 8.507059e+37
  %v732 = vand.u32 %v720, 2147483648
  %v733 = vor.u32 1.1754944e-38, %v732
  %v734 = vsel %vm731, %v733, %v729
  %v735 = vmul.f32 1.0, %v734
  %737 = vrot.lane.b32.xlu0 %v699, 32
  %v738 = vpop.permute.xlu0 %737
  %v740 = vadd.f32 %v713, %v738
  %v741 = vxor.u32 %v740, 2147483648
  %v742 = vmul.f32 %v741, 1.442695
  %v743 = vpow.pop %v742
  %v744 = vadd.f32 %v743, 1.0
  %v745 = vrcp.pop %v744
  %v746 = vmul.f32 %v744, %v745
  %v747 = vsub.f32 1.0, %v746
  %v748 = vmul.f32 %v745, %v747
  %v749 = vadd.f32 %v745, %v748
  %vm750 = vweird.f32 %v744
  %vm751 = vweird.f32 %v745
  %vm752 = vmor %vm750, %vm751
  %v753 = vsel %vm752, %v745, %v749
  %v754 = vand.u32 2147483647, %v744
  %vm755 = vcmp.eq.f32.partialorder %v754, 8.507059e+37
  %v756 = vand.u32 %v744, 2147483648
  %v757 = vor.u32 1.1754944e-38, %v756
  %v758 = vsel %vm755, %v757, %v753
  %v759 = vmul.f32 1.0, %v758
  %v760 = vmul.f32 %v735, %v695
  %762 = vrot.lane.b32.xlu0 %v689, 32
  %v763 = vpop.permute.xlu0 %762
  %v765 = vmul.f32 %v759, %v763
  %767 = vrot.lane.b32.xlu0 %v765, 96
  %v768 = vpop.permute.xlu0 %767
  %v770 = vadd.f32 %v760, %v768
  %v771 = vtanh.pop %v770
  %v772 = vpack.c.bf16 %v771, %v771
  %s773 = scalar_lea.vmem %s6, 24
  %774 = vst.msk [vmem:[%s773] sm:$0xf] %vm287, %v772
  %s775 = scalar_lea.vmem [#allocation3], 56
  %v776 = vld [vmem:[%s775] sm:$0xff]
  %s777 = scalar_lea.vmem [#allocation4], 56
  %v778 = vld [vmem:[%s777] sm:$0xff]
  %s779 = scalar_lea.vmem [#allocation5], 56
  %v780 = vld [vmem:[%s779] sm:$0xff]
  %v782 = vsel %vm73, %v772, 0
  %784 = vmatpush.bf16.msra.mxu0 0
  %785 = vmatpush.bf16.msra.mxu0 0
  %786 = vmatpush.bf16.msra.mxu0 0
  %787 = vmatpush.bf16.msra.mxu0 0
  %788 = vmatpush.bf16.msra.mxu0 0
  %789 = vmatpush.bf16.msra.mxu0 0
  %790 = vmatpush.bf16.msra.mxu0 %v211
  %791 = vmatpush.bf16.msra.mxu0 %v210
  %792 = vmatmul.bf16.gmra.mxu0 %v782
  %v793 = vpop.f32.mrf.mxu0
  %v794 = vadd.f32 0.0, %v793
  %v795 = vpop.f32.mrf.mxu0
  %796 = vdwg.mxu0
  %v797 = vadd.f32 %v794, %v778
  %v798 = vxor.u32 %v797, 2147483648
  %v799 = vmul.f32 %v798, 1.442695
  %v800 = vpow.pop %v799
  %v801 = vadd.f32 %v800, 1.0
  %v802 = vrcp.pop %v801
  %v803 = vmul.f32 %v801, %v802
  %v804 = vsub.f32 1.0, %v803
  %v805 = vmul.f32 %v802, %v804
  %v806 = vadd.f32 %v802, %v805
  %vm807 = vweird.f32 %v801
  %vm808 = vweird.f32 %v802
  %vm809 = vmor %vm807, %vm808
  %v810 = vsel %vm809, %v802, %v806
  %v811 = vand.u32 2147483647, %v801
  %vm812 = vcmp.eq.f32.partialorder %v811, 8.507059e+37
  %v813 = vand.u32 %v801, 2147483648
  %v814 = vor.u32 1.1754944e-38, %v813
  %v815 = vsel %vm812, %v814, %v810
  %v816 = vmul.f32 1.0, %v815
  %818 = vrot.lane.b32.xlu0 %v780, 32
  %v819 = vpop.permute.xlu0 %818
  %v821 = vadd.f32 %v794, %v819
  %v822 = vxor.u32 %v821, 2147483648
  %v823 = vmul.f32 %v822, 1.442695
  %v824 = vpow.pop %v823
  %v825 = vadd.f32 %v824, 1.0
  %v826 = vrcp.pop %v825
  %v827 = vmul.f32 %v825, %v826
  %v828 = vsub.f32 1.0, %v827
  %v829 = vmul.f32 %v826, %v828
  %v830 = vadd.f32 %v826, %v829
  %vm831 = vweird.f32 %v825
  %vm832 = vweird.f32 %v826
  %vm833 = vmor %vm831, %vm832
  %v834 = vsel %vm833, %v826, %v830
  %v835 = vand.u32 2147483647, %v825
  %vm836 = vcmp.eq.f32.partialorder %v835, 8.507059e+37
  %v837 = vand.u32 %v825, 2147483648
  %v838 = vor.u32 1.1754944e-38, %v837
  %v839 = vsel %vm836, %v838, %v834
  %v840 = vmul.f32 1.0, %v839
  %v841 = vmul.f32 %v816, %v776
  %843 = vrot.lane.b32.xlu0 %v770, 32
  %v844 = vpop.permute.xlu0 %843
  %v846 = vmul.f32 %v840, %v844
  %848 = vrot.lane.b32.xlu0 %v846, 96
  %v849 = vpop.permute.xlu0 %848
  %v851 = vadd.f32 %v841, %v849
  %v852 = vtanh.pop %v851
  %v853 = vpack.c.bf16 %v852, %v852
  %s854 = scalar_lea.vmem %s6, 28
  %855 = vst.msk [vmem:[%s854] sm:$0xf] %vm287, %v853
  %856 = vst.msk [vmem:[#allocation2] sm:$0xff] %vm73, %v852
  %857 = vst.msk [vmem:[%s196] sm:$0xff] %vm73, %v851
  // Predicated region
  $region30: #{ran_forward.3} parent=0 // pred_check
    %p858 = pneg %p27
  $region31: #{ran_forward.3} parent=0 // pred_check_branch
    %860 = sbr.rel (%p858) target = $region33
  $region32: #{ran_forward.3} parent=0 // pred_region
    %861 = vst.msk [vmem:[%s7] sm:$0xff] %vm73, %v852
    %862 = vst.msk [vmem:[%s8] sm:$0xff] %vm73, %v851
  $region33: #{ran_forward.3} parent=0 // pred_fallthru
    _
  // Predicated region
  $region34: #{ran_forward.3} parent=0 // pred_check
    _
  $region35: #{ran_forward.3} parent=0 // pred_check_branch
    %864 = sbr.rel (0) target = $region37
  $region36: #{ran_forward.3} parent=0 // pred_region
    _
  $region37: #{ran_forward.3} parent=0 // pred_fallthru
    _
  // Predicated region
  $region38: #{ran_forward.3} parent=0 // pred_check
    _
  $region39: #{ran_forward.3} parent=0 // pred_check_branch
    %866 = sbr.rel (0) target = $region41
  $region40: #{ran_forward.3} parent=0 // pred_region
    _
  $region41: #{ran_forward.3} parent=0 // pred_fallthru
    _
  // Predicated region
  $region42: #{ran_forward.3} parent=0 // pred_check
    _
  $region43: #{ran_forward.3} parent=0 // pred_check_branch
    %868 = sbr.rel (0) target = $region45
  $region44: #{ran_forward.3} parent=0 // pred_region
    _
  $region45: #{ran_forward.3} parent=0 // pred_fallthru
    _
  // Predicated region
  $region46: #{ran_forward.3} parent=0 // pred_check
    _
  $region47: #{ran_forward.3} parent=0 // pred_check_branch
    %870 = sbr.rel (0) target = $region49
  $region48: #{ran_forward.3} parent=0 // pred_region
    _
  $region49: #{ran_forward.3} parent=0 // pred_fallthru
    _
  // Predicated region
  $region50: #{ran_forward.3} parent=0 // pred_check
    _
  $region51: #{ran_forward.3} parent=0 // pred_check_branch
    %872 = sbr.rel (0) target = $region53
  $region52: #{ran_forward.3} parent=0 // pred_region
    _
  $region53: #{ran_forward.3} parent=0 // pred_fallthru
    _
  // Predicated region
  $region54: #{ran_forward.3} parent=0 // pred_check
    _
  $region55: #{ran_forward.3} parent=0 // pred_check_branch
    %874 = sbr.rel (0) target = $region57
  $region56: #{ran_forward.3} parent=0 // pred_region
    _
  $region57: #{ran_forward.3} parent=0 // pred_fallthru
    _

</llo_original>
